<compile_context>
chip_gen: v7x
topology: tpu7x:2x2x1
jax: 0.10.0
libtpu: 0.0.40
codegen_flags: <defaults>
</compile_context>

<pallas_src>
import functools

import jax
import jax.numpy as jnp
from jax.experimental import pallas as pl
from jax.experimental.pallas import tpu as pltpu


# ---------------------------------------------------------------------------
# Generation-aware VMEM budget
# ---------------------------------------------------------------------------

@functools.lru_cache(maxsize=None)
def _vmem_limit_bytes():
    cap = 64 * 1024 * 1024
    try:
        cap = int(pltpu.get_tpu_info().vmem_capacity_bytes)
    except Exception:
        pass
    # ~96 MiB on 128-MiB parts (v5e/v6e), ~44 MiB on 64-MiB parts (v7x).
    return int(min(max(cap - (32 << 20), int(cap * 0.7)), 128 << 20))


def _pick_tile(dim, target, align):
    """Largest tile <= target that is a multiple of `align` and divides dim.
    TODO(synk): large dims not divisible by `align` fall back to one full block."""
    if dim <= target or dim % align:
        return dim
    t = (target // align) * align
    while dim % t:
        t -= align
    return t


# ---------------------------------------------------------------------------
# Tiled linear kernel (bf16 MXU operands, f32 accumulation)
# ---------------------------------------------------------------------------

def _linear_kernel(a_ref, w_ref, o_ref, acc_ref):
    @pl.when(pl.program_id(2) == 0)
    def _():
        acc_ref[...] = jnp.zeros_like(acc_ref)

    acc_ref[...] += jnp.dot(a_ref[...].astype(jnp.bfloat16), w_ref[...],
                            preferred_element_type=jnp.float32)

    @pl.when(pl.program_id(2) == pl.num_programs(2) - 1)
    def _():
        o_ref[...] = acc_ref[...].astype(o_ref.dtype)


def pallas_linear(a, w, out_dtype=jnp.float32,
                  tm_target=512, tn_target=512, tk_target=512):
    """a: (M, K) f32/bf16 (cast to bf16 in-kernel), w: (K, N) bf16 -> (M, N)."""
    M, K = a.shape
    N = w.shape[1]
    tm = _pick_tile(M, tm_target, 8)
    tn = _pick_tile(N, tn_target, 128)
    tk = _pick_tile(K, tk_target, 128)
    return pl.pallas_call(
        _linear_kernel,
        grid=(M // tm, N // tn, K // tk),
        out_shape=jax.ShapeDtypeStruct((M, N), out_dtype),
        in_specs=[
            pl.BlockSpec((tm, tk), lambda i, j, k: (i, k)),
            pl.BlockSpec((tk, tn), lambda i, j, k: (k, j)),
        ],
        out_specs=pl.BlockSpec((tm, tn), lambda i, j, k: (i, j)),
        scratch_shapes=[pltpu.VMEM((tm, tn), jnp.float32)],
        compiler_params=pltpu.CompilerParams(
            dimension_semantics=("parallel", "parallel", "arbitrary"),
            vmem_limit_bytes=_vmem_limit_bytes()),
    )(a, w)


# ---------------------------------------------------------------------------
# LayerNorm kernel (f32 math; can emit bf16 directly for bf16 consumers)
# ---------------------------------------------------------------------------

def _ln_kernel(x_ref, g_ref, b_ref, o_ref):
    x = x_ref[...].astype(jnp.float32)
    mu = jnp.mean(x, axis=-1, keepdims=True)
    var = jnp.mean((x - mu) * (x - mu), axis=-1, keepdims=True)
    y = (x - mu) * jax.lax.rsqrt(var + 1e-5)
    o_ref[...] = (y * g_ref[...] + b_ref[...]).astype(o_ref.dtype)


def pallas_layer_norm(x, gamma, beta, out_dtype=jnp.float32):
    shape = x.shape
    D = shape[-1]
    x2 = x.reshape(-1, D)
    M = x2.shape[0]
    tm = _pick_tile(M, 1024, 8)
    out = pl.pallas_call(
        _ln_kernel,
        grid=(M // tm,),
        out_shape=jax.ShapeDtypeStruct((M, D), out_dtype),
        in_specs=[
            pl.BlockSpec((tm, D), lambda i: (i, 0)),
            pl.BlockSpec((1, D), lambda i: (0, 0)),
            pl.BlockSpec((1, D), lambda i: (0, 0)),
        ],
        out_specs=pl.BlockSpec((tm, D), lambda i: (i, 0)),
        compiler_params=pltpu.CompilerParams(
            dimension_semantics=("parallel",),
            vmem_limit_bytes=_vmem_limit_bytes()),
    )(x2, gamma, beta)
    return out.reshape(shape)


# ---------------------------------------------------------------------------
# Fused Transformer kernel: grid=(batch, layer), activation carried in VMEM
# ---------------------------------------------------------------------------

_STACK_KEYS = ("wqkv", "bqkv", "wo", "bo", "ln1_g", "ln1_b", "ln2_g", "ln2_b",
               "wfc", "bfc", "wpj", "bpj")


def _transformer_kernel(x_ref, wqkv_ref, bqkv_ref, wo_ref, bo_ref,
                        ln1g_ref, ln1b_ref, ln2g_ref, ln2b_ref,
                        wfc_ref, bfc_ref, wpj_ref, bpj_ref,
                        o_ref, act_ref, qkv_ref, ctx_ref,
                        *, n_head, causal, mlp_chunk):
    layer = pl.program_id(1)
    n_layers = pl.num_programs(1)
    L, D = act_ref.shape
    dh = D // n_head
    scale = dh ** (-0.5)

    # First layer of this batch element: load the input into the VMEM carry.
    @pl.when(layer == 0)
    def _():
        act_ref[...] = x_ref[0].astype(jnp.float32)

    x = act_ref[...]                                            # (L, D) f32

    def _ln(v, g, b):
        mu = jnp.mean(v, axis=-1, keepdims=True)
        var = jnp.mean((v - mu) * (v - mu), axis=-1, keepdims=True)
        return (v - mu) * jax.lax.rsqrt(var + 1e-5) * g + b

    # ---- attention sub-block: x + out_proj(MHA(ln_1(x))) --------------------
    y16 = _ln(x, ln1g_ref[0], ln1b_ref[0]).astype(jnp.bfloat16)
    # Fused full-width QKV projection: one (L,D)@(D,3D) MXU pass.
    qkv = jnp.dot(y16, wqkv_ref[0], preferred_element_type=jnp.float32)
    qkv_ref[...] = (qkv + bqkv_ref[0]).astype(jnp.bfloat16)

    if causal:
        row = jax.lax.broadcasted_iota(jnp.int32, (L, L), 0)
        col = jax.lax.broadcasted_iota(jnp.int32, (L, L), 1)
        mask = jnp.where(col <= row, 0.0, -jnp.inf).astype(jnp.float32)

    # Per-head score / softmax / PV (inherently (L,L,Dh)-sized).  Static unroll
    # (H is small); each head's temporaries die at the ctx_ref store, so vreg
    # pressure is bounded and there is no carried f32 accumulator.
    # TODO(synk): for large H switch to a head-batched dot_general / fori_loop.
    for h in range(n_head):
        q = qkv_ref[:, h * dh:(h + 1) * dh]
        k = qkv_ref[:, D + h * dh:D + (h + 1) * dh]
        v = qkv_ref[:, 2 * D + h * dh:2 * D + (h + 1) * dh]
        # q @ k^T via contraction of last dims (no explicit k transpose).
        s = jax.lax.dot_general(q, k, (((1,), (1,)), ((), ())),
                                preferred_element_type=jnp.float32) * scale
        if causal:
            s = s + mask
        s = s - jnp.max(s, axis=-1, keepdims=True)
        e = jnp.exp(s)
        p = e * pl.reciprocal(jnp.sum(e, axis=-1, keepdims=True), approx=True)
        ctx_ref[:, h * dh:(h + 1) * dh] = jnp.dot(
            p.astype(jnp.bfloat16), v,
            preferred_element_type=jnp.float32).astype(jnp.bfloat16)

    # Fused full-width output projection: one (L,D)@(D,D) MXU pass.
    attn = jnp.dot(ctx_ref[...], wo_ref[0],
                   preferred_element_type=jnp.float32) + bo_ref[0]
    x = x + attn

    # ---- MLP sub-block: x + c_proj(QuickGELU(c_fc(ln_2(x)))) ----------------
    z16 = _ln(x, ln2g_ref[0], ln2b_ref[0]).astype(jnp.bfloat16)
    hid = wfc_ref.shape[-1]
    h2 = jnp.zeros_like(x)
    for c0 in range(0, hid, mlp_chunk):     # bounds the (L, 4D) f32 live value
        h1 = (jnp.dot(z16, wfc_ref[0, :, c0:c0 + mlp_chunk],
                      preferred_element_type=jnp.float32)
              + bfc_ref[0, :, c0:c0 + mlp_chunk])
        h1 = h1 * jax.nn.sigmoid(1.702 * h1)            # QuickGELU (f32)
        h2 = h2 + jnp.dot(h1.astype(jnp.bfloat16),
                          wpj_ref[0, c0:c0 + mlp_chunk, :],
                          preferred_element_type=jnp.float32)
    x = x + h2 + bpj_ref[0]

    act_ref[...] = x

    @pl.when(layer == n_layers - 1)
    def _():
        o_ref[0] = x.astype(o_ref.dtype)


def _mlp_chunk_cols(hid, target=1024):
    if hid <= target:
        return hid
    c = (target // 128) * 128
    while c > 0 and hid % c:
        c -= 128
    return c if c > 0 else hid


def pallas_transformer(x, blocks, n_head, causal):
    """All residual attention blocks of one Transformer in a single pallas_call."""
    B, L, D = x.shape
    nl = blocks["wqkv"].shape[0]
    mlp_chunk = _mlp_chunk_cols(blocks["wfc"].shape[-1])

    args = [x]
    in_specs = [pl.BlockSpec((1, L, D), lambda b, l: (b, 0, 0))]
    for name in _STACK_KEYS:
        w = blocks[name]
        args.append(w)
        in_specs.append(pl.BlockSpec((1,) + w.shape[1:], lambda b, l: (l, 0, 0)))

    return pl.pallas_call(
        functools.partial(_transformer_kernel, n_head=n_head, causal=causal,
                          mlp_chunk=mlp_chunk),
        grid=(B, nl),
        out_shape=jax.ShapeDtypeStruct((B, L, D), jnp.float32),
        in_specs=in_specs,
        out_specs=pl.BlockSpec((1, L, D), lambda b, l: (b, 0, 0)),
        scratch_shapes=[
            pltpu.VMEM((L, D), jnp.float32),       # carried activation
            pltpu.VMEM((L, 3 * D), jnp.bfloat16),  # fused qkv
            pltpu.VMEM((L, D), jnp.bfloat16),      # per-head context
        ],
        compiler_params=pltpu.CompilerParams(
            dimension_semantics=("parallel", "arbitrary"),
            vmem_limit_bytes=_vmem_limit_bytes()),
    )(*args)


# ---------------------------------------------------------------------------
# Model glue (plain JAX outside the hot Pallas kernels)
# ---------------------------------------------------------------------------

def visual_transformer(img, vp, cfg):
    B = img.shape[0]
    p = cfg["patch"]
    width = cfg["vision_width"]
    nH = cfg["resolution"] // p
    num_patches = nH * nH

    # stride==kernel conv lowered to patch extraction + Pallas matmul.
    patches = img.reshape(B, 3, nH, p, nH, p).transpose(0, 2, 4, 1, 3, 5)
    patches = patches.reshape(B * num_patches, 3 * p * p)
    x = pallas_linear(patches, vp["patch_w"]).reshape(B, num_patches, width)

    cls = jnp.broadcast_to(vp["class_embedding"].reshape(1, 1, width),
                           (B, 1, width))
    x = jnp.concatenate([cls, x], axis=1)
    x = x + vp["pos_embedding"]
    x = pallas_layer_norm(x, vp["ln_pre_g"], vp["ln_pre_b"])
    x = pallas_transformer(x, vp["blocks"], cfg["vision_heads"], causal=False)
    # ln_post emits bf16 straight into the bf16 projection (no wrapper cast).
    xb = pallas_layer_norm(x, vp["ln_post_g"], vp["ln_post_b"],
                           out_dtype=jnp.bfloat16)
    L = xb.shape[1]
    out = pallas_linear(xb.reshape(B * L, width), vp["proj"])
    return out.reshape(B, L, cfg["embed_dim"])


def encode_text(text, params, cfg):
    B, T = text.shape
    D = cfg["transformer_width"]
    x = params["token_embedding"][text] + params["text_pos_embedding"]
    x = pallas_transformer(x, params["text_blocks"], cfg["transformer_heads"],
                           causal=True)
    xb = pallas_layer_norm(x, params["ln_final_g"], params["ln_final_b"],
                           out_dtype=jnp.bfloat16)
    out = pallas_linear(xb.reshape(B * T, D), params["text_projection"])
    return out.reshape(B, T, cfg["embed_dim"])


def mga_forward(params, image, text, sketch, cates, tokens, masks, cfg):
    image_feats = visual_transformer(image, params["visual"], cfg)
    sketch_feats = visual_transformer(sketch, params["visual2"], cfg)
    text_feats = encode_text(text, params, cfg)

    image_feat_global = image_feats[:, 0, :]
    sketch_feat_global = sketch_feats[:, 0, :]
    eot = jnp.argmax(text, axis=-1)
    text_feat_global = text_feats[jnp.arange(text_feats.shape[0]), eot]

    def _norm(v):
        return v / jnp.linalg.norm(v, axis=-1, keepdims=True)

    # TODO(synk): the PyTorch forward also builds text_masks, the get_select()
    # top-k + `self.block` cross-attention (ResidualAttention is not defined in
    # the reference source), BatchNorm1d bottlenecks and a training-only
    # similarity branch; none of them contribute to the eval-mode return tuple,
    # so that dead work (and the per-layer attention-score HBM writes it needed)
    # is skipped.
    return _norm(image_feat_global), _norm(text_feat_global), _norm(sketch_feat_global)


# ---------------------------------------------------------------------------
# Deterministic parameter initialization
# (matmul weights pre-transposed to (in, out) and cast to bf16; LN / biases f32)
# ---------------------------------------------------------------------------

def _normal(key, shape, std):
    return std * jax.random.normal(key, shape, dtype=jnp.float32)


def init_transformer_blocks(key, d, nlayers, attn_std, proj_std, fc_std):
    keys = jax.random.split(key, nlayers)
    wqkv, wo, wfc, wpj = [], [], [], []
    for i in range(nlayers):
        k1, k2, k3, k4 = jax.random.split(keys[i], 4)
        wqkv.append(_normal(k1, (3 * d, d), attn_std).T)      # (d, 3d)
        wo.append(_normal(k2, (d, d), proj_std).T)            # (d, d)
        wfc.append(_normal(k3, (4 * d, d), fc_std).T)         # (d, 4d)
        wpj.append(_normal(k4, (d, 4 * d), proj_std).T)       # (4d, d)
    f32 = jnp.float32
    return dict(
        wqkv=jnp.stack(wqkv).astype(jnp.bfloat16),
        bqkv=jnp.zeros((nlayers, 1, 3 * d), f32),
        wo=jnp.stack(wo).astype(jnp.bfloat16),
        bo=jnp.zeros((nlayers, 1, d), f32),
        ln1_g=jnp.ones((nlayers, 1, d), f32),
        ln1_b=jnp.zeros((nlayers, 1, d), f32),
        ln2_g=jnp.ones((nlayers, 1, d), f32),
        ln2_b=jnp.zeros((nlayers, 1, d), f32),
        wfc=jnp.stack(wfc).astype(jnp.bfloat16),
        bfc=jnp.zeros((nlayers, 1, 4 * d), f32),
        wpj=jnp.stack(wpj).astype(jnp.bfloat16),
        bpj=jnp.zeros((nlayers, 1, d), f32),
    )


def init_visual(key, cfg):
    width = cfg["vision_width"]
    p = cfg["patch"]
    L = (cfg["resolution"] // p) ** 2 + 1
    scale = width ** (-0.5)
    nlayers = cfg["vision_layers"]
    k_conv, k_cls, k_pos, k_proj, k_blocks = jax.random.split(key, 5)
    attn_std = width ** (-0.5)
    proj_std = (width ** (-0.5)) * ((2 * nlayers) ** (-0.5))
    fc_std = (2 * width) ** (-0.5)
    conv_w = _normal(k_conv, (width, 3, p, p), (3 * p * p) ** (-0.5))
    return dict(
        patch_w=conv_w.reshape(width, 3 * p * p).T.astype(jnp.bfloat16),
        class_embedding=scale * jax.random.normal(k_cls, (width,), jnp.float32),
        pos_embedding=scale * jax.random.normal(k_pos, (L, width), jnp.float32),
        ln_pre_g=jnp.ones((1, width), jnp.float32),
        ln_pre_b=jnp.zeros((1, width), jnp.float32),
        blocks=init_transformer_blocks(k_blocks, width, nlayers,
                                       attn_std, proj_std, fc_std),
        ln_post_g=jnp.ones((1, width), jnp.float32),
        ln_post_b=jnp.zeros((1, width), jnp.float32),
        proj=(scale * jax.random.normal(k_proj, (width, cfg["embed_dim"]),
                                        jnp.float32)).astype(jnp.bfloat16),
    )


def init_params(seed, cfg):
    key = jax.random.PRNGKey(seed)
    k_vis, k_vis2, k_tok, k_pos, k_proj, k_blocks = jax.random.split(key, 6)
    D = cfg["transformer_width"]
    T = cfg["context_length"]
    nlayers = cfg["transformer_layers"]
    attn_std = D ** (-0.5)
    proj_std = (D ** (-0.5)) * ((2 * nlayers) ** (-0.5))
    fc_std = (2 * D) ** (-0.5)
    return dict(
        visual=init_visual(k_vis, cfg),
        visual2=init_visual(k_vis2, cfg),            # weight_sharing=False
        token_embedding=_normal(k_tok, (cfg["vocab_size"], D), 0.02),
        text_pos_embedding=_normal(k_pos, (T, D), 0.01),
        text_blocks=init_transformer_blocks(k_blocks, D, nlayers,
                                            attn_std, proj_std, fc_std),
        ln_final_g=jnp.ones((1, D), jnp.float32),
        ln_final_b=jnp.zeros((1, D), jnp.float32),
        text_projection=_normal(k_proj, (D, cfg["embed_dim"]),
                                D ** (-0.5)).astype(jnp.bfloat16),
        logit_scale=jnp.asarray(jnp.log(1.0 / 0.07), jnp.float32),
    )


# ---------------------------------------------------------------------------
# Main
# ---------------------------------------------------------------------------

if __name__ == "__main__":
    cfg = dict(
        embed_dim=32,
        resolution=16,
        patch=8,
        vision_width=64,
        vision_layers=2,
        vision_heads=64 // 64,
        context_length=8,
        vocab_size=50,
        transformer_width=32,
        transformer_heads=4,
        transformer_layers=2,
    )

    params = init_params(0, cfg)

    key = jax.random.PRNGKey(0)
    k_img, k_sk, k_txt, k_tok = jax.random.split(key, 4)
    B = 2
    image = jax.random.normal(k_img, (B, 3, 16, 16), jnp.float32)
    sketch = jax.random.normal(k_sk, (B, 3, 16, 16), jnp.float32)
    text = jax.random.randint(k_txt, (B, cfg["context_length"]), 0,
                              cfg["vocab_size"], jnp.int32)
    cates = jnp.zeros((B,), jnp.int32)
    tokens = jax.random.randint(k_tok, (B, cfg["context_length"]), 0,
                                cfg["vocab_size"], jnp.int32)
    masks = jnp.ones((B, cfg["context_length"]), jnp.int32)

    fwd = jax.jit(functools.partial(mga_forward, cfg=cfg))
    out = jax.block_until_ready(fwd(params, image, text, sketch, cates,
                                    tokens, masks))

    img_g, txt_g, sk_g = out
    assert img_g.shape == (B, cfg["embed_dim"])
    assert txt_g.shape == (B, cfg["embed_dim"])
    assert sk_g.shape == (B, cfg["embed_dim"])
    assert all(bool(jnp.all(jnp.isfinite(o))) for o in out)
    print("KERNEL_OK")
</pallas_src>

<mosaic_0001>
module attributes {stable_mosaic.version = 11 : i64} {
  func.func @_linear_kernel(%arg0: i32, %arg1: i32, %arg2: i32, %arg3: memref<8x192xf32, #tpu.memory_space<vmem>>, %arg4: memref<192x64xbf16, #tpu.memory_space<vmem>>, %arg5: memref<8x64xf32, #tpu.memory_space<vmem>>, %arg6: memref<8x64xf32, #tpu.memory_space<vmem>>) attributes {dimension_semantics = [#tpu.dimension_semantics<parallel>, #tpu.dimension_semantics<parallel>, #tpu.dimension_semantics<arbitrary>], iteration_bounds = array<i64: 1, 1, 1>, scalar_prefetch = 0 : i64, scratch_operands = 1 : i64, tpu.core_type = #tpu.core_type<tc>, window_params = [{transform_indices = @transform_0, window_bounds = array<i64: 8, 192>}, {transform_indices = @transform_1, window_bounds = array<i64: 192, 64>}, {transform_indices = @transform_2, window_bounds = array<i64: 8, 64>}]} {
    %c0_i32 = arith.constant 0 : i32
    %0 = arith.cmpi eq, %arg2, %c0_i32 : i32
    %1 = arith.extui %0 : i1 to i32
    %c0_i32_0 = arith.constant 0 : i32
    %2 = arith.cmpi ne, %1, %c0_i32_0 : i32
    scf.if %2 {
      %cst_10 = arith.constant 0.000000e+00 : f32
      %13 = vector.broadcast %cst_10 : f32 to vector<8x64xf32>
      %c0_11 = arith.constant 0 : index
      %c0_12 = arith.constant 0 : index
      %14 = vector.load %arg6[%c0_11, %c0_12] : memref<8x64xf32, #tpu.memory_space<vmem>>, vector<8x64xf32>
      tpu.vector_store %arg6[%c0_11, %c0_12], %13 {strides = array<i32>} : memref<8x64xf32, #tpu.memory_space<vmem>>, vector<8x64xf32>,
    } else {
    }
    %c0 = arith.constant 0 : index
    %c0_1 = arith.constant 0 : index
    %3 = vector.load %arg6[%c0, %c0_1] : memref<8x64xf32, #tpu.memory_space<vmem>>, vector<8x64xf32>
    %c0_2 = arith.constant 0 : index
    %c0_3 = arith.constant 0 : index
    %4 = vector.load %arg3[%c0_2, %c0_3] : memref<8x192xf32, #tpu.memory_space<vmem>>, vector<8x192xf32>
    %5 = arith.truncf %4 : vector<8x192xf32> to vector<8x192xbf16>
    %c0_4 = arith.constant 0 : index
    %c0_5 = arith.constant 0 : index
    %6 = vector.load %arg4[%c0_4, %c0_5] : memref<192x64xbf16, #tpu.memory_space<vmem>>, vector<192x64xbf16>
    %cst = arith.constant dense<0.000000e+00> : vector<8x64xf32>
    %7 = tpu.matmul %5, %6, %cst {dimension_numbers = #tpu.dot_dimension_numbers<[1], [0], [0], [1], [0, 0, 1, 1], [], []>} : vector<8x192xbf16>, vector<192x64xbf16>, vector<8x64xf32> -> vector<8x64xf32>
    %8 = arith.addf %3, %7 : vector<8x64xf32>
    %c0_6 = arith.constant 0 : index
    %c0_7 = arith.constant 0 : index
    %9 = vector.load %arg6[%c0_6, %c0_7] : memref<8x64xf32, #tpu.memory_space<vmem>>, vector<8x64xf32>
    tpu.vector_store %arg6[%c0_6, %c0_7], %8 {strides = array<i32>} : memref<8x64xf32, #tpu.memory_space<vmem>>, vector<8x64xf32>,
    %c0_i32_8 = arith.constant 0 : i32
    %10 = arith.cmpi eq, %arg2, %c0_i32_8 : i32
    %11 = arith.extui %10 : i1 to i32
    %c0_i32_9 = arith.constant 0 : i32
    %12 = arith.cmpi ne, %11, %c0_i32_9 : i32
    scf.if %12 {
      %c0_10 = arith.constant 0 : index
      %c0_11 = arith.constant 0 : index
      %13 = vector.load %arg6[%c0_10, %c0_11] : memref<8x64xf32, #tpu.memory_space<vmem>>, vector<8x64xf32>
      %c0_12 = arith.constant 0 : index
      %c0_13 = arith.constant 0 : index
      %14 = vector.load %arg5[%c0_12, %c0_13] : memref<8x64xf32, #tpu.memory_space<vmem>>, vector<8x64xf32>
      tpu.vector_store %arg5[%c0_12, %c0_13], %13 {strides = array<i32>} : memref<8x64xf32, #tpu.memory_space<vmem>>, vector<8x64xf32>,
    } else {
    }
    return
  }
  func.func @transform_0(%arg0: i32, %arg1: i32, %arg2: i32) -> (i32, i32) {
    %c0_i32 = arith.constant 0 : i32
    return %arg0, %arg2 : i32, i32
  }
  func.func @transform_1(%arg0: i32, %arg1: i32, %arg2: i32) -> (i32, i32) {
    %c0_i32 = arith.constant 0 : i32
    return %arg2, %arg1 : i32, i32
  }
  func.func @transform_2(%arg0: i32, %arg1: i32, %arg2: i32) -> (i32, i32) {
    %c0_i32 = arith.constant 0 : i32
    return %arg0, %arg1 : i32, i32
  }
}

module attributes {stable_mosaic.version = 11 : i64} {
  func.func @_ln_kernel(%arg0: i32, %arg1: memref<10x64xf32, #tpu.memory_space<vmem>>, %arg2: memref<1x64xf32, #tpu.memory_space<vmem>>, %arg3: memref<1x64xf32, #tpu.memory_space<vmem>>, %arg4: memref<10x64xf32, #tpu.memory_space<vmem>>) attributes {dimension_semantics = [#tpu.dimension_semantics<parallel>], iteration_bounds = array<i64: 1>, scalar_prefetch = 0 : i64, scratch_operands = 0 : i64, tpu.core_type = #tpu.core_type<tc>, window_params = [{transform_indices = @transform_0, window_bounds = array<i64: 10, 64>}, {pipeline_mode = #tpu.pipeline_mode<synchronous>, transform_indices = @transform_1, window_bounds = array<i64: 1, 64>}, {pipeline_mode = #tpu.pipeline_mode<synchronous>, transform_indices = @transform_2, window_bounds = array<i64: 1, 64>}, {transform_indices = @transform_3, window_bounds = array<i64: 10, 64>}]} {
    %c0 = arith.constant 0 : index
    %c0_0 = arith.constant 0 : index
    %0 = vector.load %arg1[%c0, %c0_0] : memref<10x64xf32, #tpu.memory_space<vmem>>, vector<10x64xf32>
    %cst = arith.constant dense<0.000000e+00> : vector<10xf32>
    %1 = vector.multi_reduction <add>, %0, %cst [1] : vector<10x64xf32> to vector<10xf32>
    %2 = vector.shape_cast %1 : vector<10xf32> to vector<10x1xf32>
    %cst_1 = arith.constant 6.400000e+01 : f32
    %3 = vector.broadcast %cst_1 : f32 to vector<10x1xf32>
    %4 = arith.divf %2, %3 : vector<10x1xf32>
    %5 = vector.broadcast %4 : vector<10x1xf32> to vector<10x64xf32>
    %6 = arith.subf %0, %5 : vector<10x64xf32>
    %7 = vector.broadcast %4 : vector<10x1xf32> to vector<10x64xf32>
    %8 = arith.subf %0, %7 : vector<10x64xf32>
    %9 = arith.mulf %6, %8 : vector<10x64xf32>
    %cst_2 = arith.constant dense<0.000000e+00> : vector<10xf32>
    %10 = vector.multi_reduction <add>, %9, %cst_2 [1] : vector<10x64xf32> to vector<10xf32>
    %11 = vector.shape_cast %10 : vector<10xf32> to vector<10x1xf32>
    %cst_3 = arith.constant 6.400000e+01 : f32
    %12 = vector.broadcast %cst_3 : f32 to vector<10x1xf32>
    %13 = arith.divf %11, %12 : vector<10x1xf32>
    %14 = vector.broadcast %4 : vector<10x1xf32> to vector<10x64xf32>
    %15 = arith.subf %0, %14 : vector<10x64xf32>
    %cst_4 = arith.constant 9.99999974E-6 : f32
    %16 = vector.broadcast %cst_4 : f32 to vector<10x1xf32>
    %17 = arith.addf %13, %16 : vector<10x1xf32>
    %18 = math.rsqrt %17 : vector<10x1xf32>
    %19 = vector.broadcast %18 : vector<10x1xf32> to vector<10x64xf32>
    %20 = arith.mulf %15, %19 : vector<10x64xf32>
    %c0_5 = arith.constant 0 : index
    %c0_6 = arith.constant 0 : index
    %21 = vector.load %arg2[%c0_5, %c0_6] : memref<1x64xf32, #tpu.memory_space<vmem>>, vector<1x64xf32>
    %22 = vector.broadcast %21 : vector<1x64xf32> to vector<10x64xf32>
    %23 = arith.mulf %20, %22 : vector<10x64xf32>
    %c0_7 = arith.constant 0 : index
    %c0_8 = arith.constant 0 : index
    %24 = vector.load %arg3[%c0_7, %c0_8] : memref<1x64xf32, #tpu.memory_space<vmem>>, vector<1x64xf32>
    %25 = vector.broadcast %24 : vector<1x64xf32> to vector<10x64xf32>
    %26 = arith.addf %23, %25 : vector<10x64xf32>
    %c0_9 = arith.constant 0 : index
    %c0_10 = arith.constant 0 : index
    %27 = vector.load %arg4[%c0_9, %c0_10] : memref<10x64xf32, #tpu.memory_space<vmem>>, vector<10x64xf32>
    tpu.vector_store %arg4[%c0_9, %c0_10], %26 {strides = array<i32>} : memref<10x64xf32, #tpu.memory_space<vmem>>, vector<10x64xf32>,
    return
  }
  func.func @transform_0(%arg0: i32) -> (i32, i32) {
    %c0_i32 = arith.constant 0 : i32
    %c0_i32_0 = arith.constant 0 : i32
    return %arg0, %c0_i32 : i32, i32
  }
  func.func @transform_1(%arg0: i32) -> (i32, i32) {
    %c0_i32 = arith.constant 0 : i32
    %c0_i32_0 = arith.constant 0 : i32
    %c0_i32_1 = arith.constant 0 : i32
    return %c0_i32, %c0_i32_0 : i32, i32
  }
  func.func @transform_2(%arg0: i32) -> (i32, i32) {
    %c0_i32 = arith.constant 0 : i32
    %c0_i32_0 = arith.constant 0 : i32
    %c0_i32_1 = arith.constant 0 : i32
    return %c0_i32, %c0_i32_0 : i32, i32
  }
  func.func @transform_3(%arg0: i32) -> (i32, i32) {
    %c0_i32 = arith.constant 0 : i32
    %c0_i32_0 = arith.constant 0 : i32
    return %arg0, %c0_i32 : i32, i32
  }
}

module attributes {stable_mosaic.version = 11 : i64} {
  func.func @_transformer_kernel(%arg0: i32, %arg1: i32, %arg2: memref<1x5x64xf32, #tpu.memory_space<vmem>>, %arg3: memref<1x64x192xbf16, #tpu.memory_space<vmem>>, %arg4: memref<1x1x192xf32, #tpu.memory_space<vmem>>, %arg5: memref<1x64x64xbf16, #tpu.memory_space<vmem>>, %arg6: memref<1x1x64xf32, #tpu.memory_space<vmem>>, %arg7: memref<1x1x64xf32, #tpu.memory_space<vmem>>, %arg8: memref<1x1x64xf32, #tpu.memory_space<vmem>>, %arg9: memref<1x1x64xf32, #tpu.memory_space<vmem>>, %arg10: memref<1x1x64xf32, #tpu.memory_space<vmem>>, %arg11: memref<1x64x256xbf16, #tpu.memory_space<vmem>>, %arg12: memref<1x1x256xf32, #tpu.memory_space<vmem>>, %arg13: memref<1x256x64xbf16, #tpu.memory_space<vmem>>, %arg14: memref<1x1x64xf32, #tpu.memory_space<vmem>>, %arg15: memref<1x5x64xf32, #tpu.memory_space<vmem>>, %arg16: memref<5x64xf32, #tpu.memory_space<vmem>>, %arg17: memref<5x192xbf16, #tpu.memory_space<vmem>>, %arg18: memref<5x64xbf16, #tpu.memory_space<vmem>>) attributes {dimension_semantics = [#tpu.dimension_semantics<parallel>, #tpu.dimension_semantics<arbitrary>], iteration_bounds = array<i64: 2, 2>, scalar_prefetch = 0 : i64, scratch_operands = 3 : i64, tpu.core_type = #tpu.core_type<tc>, window_params = [{transform_indices = @transform_0, window_bounds = array<i64: 1, 5, 64>}, {transform_indices = @transform_1, window_bounds = array<i64: 1, 64, 192>}, {transform_indices = @transform_2, window_bounds = array<i64: 1, 1, 192>}, {transform_indices = @transform_3, window_bounds = array<i64: 1, 64, 64>}, {transform_indices = @transform_4, window_bounds = array<i64: 1, 1, 64>}, {transform_indices = @transform_5, window_bounds = array<i64: 1, 1, 64>}, {transform_indices = @transform_6, window_bounds = array<i64: 1, 1, 64>}, {transform_indices = @transform_7, window_bounds = array<i64: 1, 1, 64>}, {transform_indices = @transform_8, window_bounds = array<i64: 1, 1, 64>}, {transform_indices = @transform_9, window_bounds = array<i64: 1, 64, 256>}, {transform_indices = @transform_10, window_bounds = array<i64: 1, 1, 256>}, {transform_indices = @transform_11, window_bounds = array<i64: 1, 256, 64>}, {transform_indices = @transform_12, window_bounds = array<i64: 1, 1, 64>}, {transform_indices = @transform_13, window_bounds = array<i64: 1, 5, 64>}]} {
    %c0_i32 = arith.constant 0 : i32
    %0 = arith.cmpi eq, %arg1, %c0_i32 : i32
    %1 = arith.extui %0 : i1 to i32
    %c0_i32_0 = arith.constant 0 : i32
    %2 = arith.cmpi ne, %1, %c0_i32_0 : i32
    scf.if %2 {
      %c0_72 = arith.constant 0 : index
      %c0_73 = arith.constant 0 : index
      %c0_74 = arith.constant 0 : index
      %130 = vector.load %arg2[%c0_72, %c0_73, %c0_74] : memref<1x5x64xf32, #tpu.memory_space<vmem>>, vector<1x5x64xf32>
      %131 = vector.shape_cast %130 : vector<1x5x64xf32> to vector<5x64xf32>
      %c0_75 = arith.constant 0 : index
      %c0_76 = arith.constant 0 : index
      %132 = vector.load %arg16[%c0_75, %c0_76] : memref<5x64xf32, #tpu.memory_space<vmem>>, vector<5x64xf32>
      tpu.vector_store %arg16[%c0_75, %c0_76], %131 {strides = array<i32>} : memref<5x64xf32, #tpu.memory_space<vmem>>, vector<5x64xf32>,
    } else {
    }
    %c0 = arith.constant 0 : index
    %c0_1 = arith.constant 0 : index
    %3 = vector.load %arg16[%c0, %c0_1] : memref<5x64xf32, #tpu.memory_space<vmem>>, vector<5x64xf32>
    %c0_2 = arith.constant 0 : index
    %c0_3 = arith.constant 0 : index
    %c0_4 = arith.constant 0 : index
    %4 = vector.load %arg7[%c0_2, %c0_3, %c0_4] : memref<1x1x64xf32, #tpu.memory_space<vmem>>, vector<1x1x64xf32>
    %5 = vector.shape_cast %4 : vector<1x1x64xf32> to vector<1x64xf32>
    %c0_5 = arith.constant 0 : index
    %c0_6 = arith.constant 0 : index
    %c0_7 = arith.constant 0 : index
    %6 = vector.load %arg8[%c0_5, %c0_6, %c0_7] : memref<1x1x64xf32, #tpu.memory_space<vmem>>, vector<1x1x64xf32>
    %7 = vector.shape_cast %6 : vector<1x1x64xf32> to vector<1x64xf32>
    %cst = arith.constant dense<0.000000e+00> : vector<5xf32>
    %8 = vector.multi_reduction <add>, %3, %cst [1] : vector<5x64xf32> to vector<5xf32>
    %9 = vector.shape_cast %8 : vector<5xf32> to vector<5x1xf32>
    %cst_8 = arith.constant 6.400000e+01 : f32
    %10 = vector.broadcast %cst_8 : f32 to vector<5x1xf32>
    %11 = arith.divf %9, %10 : vector<5x1xf32>
    %12 = vector.broadcast %11 : vector<5x1xf32> to vector<5x64xf32>
    %13 = arith.subf %3, %12 : vector<5x64xf32>
    %14 = vector.broadcast %11 : vector<5x1xf32> to vector<5x64xf32>
    %15 = arith.subf %3, %14 : vector<5x64xf32>
    %16 = arith.mulf %13, %15 : vector<5x64xf32>
    %cst_9 = arith.constant dense<0.000000e+00> : vector<5xf32>
    %17 = vector.multi_reduction <add>, %16, %cst_9 [1] : vector<5x64xf32> to vector<5xf32>
    %18 = vector.shape_cast %17 : vector<5xf32> to vector<5x1xf32>
    %cst_10 = arith.constant 6.400000e+01 : f32
    %19 = vector.broadcast %cst_10 : f32 to vector<5x1xf32>
    %20 = arith.divf %18, %19 : vector<5x1xf32>
    %21 = vector.broadcast %11 : vector<5x1xf32> to vector<5x64xf32>
    %22 = arith.subf %3, %21 : vector<5x64xf32>
    %cst_11 = arith.constant 9.99999974E-6 : f32
    %23 = vector.broadcast %cst_11 : f32 to vector<5x1xf32>
    %24 = arith.addf %20, %23 : vector<5x1xf32>
    %25 = math.rsqrt %24 : vector<5x1xf32>
    %26 = vector.broadcast %25 : vector<5x1xf32> to vector<5x64xf32>
    %27 = arith.mulf %22, %26 : vector<5x64xf32>
    %28 = vector.broadcast %5 : vector<1x64xf32> to vector<5x64xf32>
    %29 = arith.mulf %27, %28 : vector<5x64xf32>
    %30 = vector.broadcast %7 : vector<1x64xf32> to vector<5x64xf32>
    %31 = arith.addf %29, %30 : vector<5x64xf32>
    %32 = arith.truncf %31 : vector<5x64xf32> to vector<5x64xbf16>
    %c0_12 = arith.constant 0 : index
    %c0_13 = arith.constant 0 : index
    %c0_14 = arith.constant 0 : index
    %33 = vector.load %arg3[%c0_12, %c0_13, %c0_14] : memref<1x64x192xbf16, #tpu.memory_space<vmem>>, vector<1x64x192xbf16>
    %34 = vector.shape_cast %33 : vector<1x64x192xbf16> to vector<64x192xbf16>
    %cst_15 = arith.constant dense<0.000000e+00> : vector<5x192xf32>
    %35 = tpu.matmul %32, %34, %cst_15 {dimension_numbers = #tpu.dot_dimension_numbers<[1], [0], [0], [1], [0, 0, 1, 1], [], []>} : vector<5x64xbf16>, vector<64x192xbf16>, vector<5x192xf32> -> vector<5x192xf32>
    %c0_16 = arith.constant 0 : index
    %c0_17 = arith.constant 0 : index
    %c0_18 = arith.constant 0 : index
    %36 = vector.load %arg4[%c0_16, %c0_17, %c0_18] : memref<1x1x192xf32, #tpu.memory_space<vmem>>, vector<1x1x192xf32>
    %37 = vector.shape_cast %36 : vector<1x1x192xf32> to vector<1x192xf32>
    %38 = vector.broadcast %37 : vector<1x192xf32> to vector<5x192xf32>
    %39 = arith.addf %35, %38 : vector<5x192xf32>
    %40 = arith.truncf %39 : vector<5x192xf32> to vector<5x192xbf16>
    %c0_19 = arith.constant 0 : index
    %c0_20 = arith.constant 0 : index
    %41 = vector.load %arg17[%c0_19, %c0_20] : memref<5x192xbf16, #tpu.memory_space<vmem>>, vector<5x192xbf16>
    tpu.vector_store %arg17[%c0_19, %c0_20], %40 {strides = array<i32>} : memref<5x192xbf16, #tpu.memory_space<vmem>>, vector<5x192xbf16>,
    %c0_21 = arith.constant 0 : index
    %c0_22 = arith.constant 0 : index
    %42 = vector.load %arg17[%c0_21, %c0_22] : memref<5x192xbf16, #tpu.memory_space<vmem>>, vector<5x64xbf16>
    %c0_23 = arith.constant 0 : index
    %c64 = arith.constant 64 : index
    %43 = vector.load %arg17[%c0_23, %c64] : memref<5x192xbf16, #tpu.memory_space<vmem>>, vector<5x64xbf16>
    %c0_24 = arith.constant 0 : index
    %c128 = arith.constant 128 : index
    %44 = vector.load %arg17[%c0_24, %c128] : memref<5x192xbf16, #tpu.memory_space<vmem>>, vector<5x64xbf16>
    %cst_25 = arith.constant dense<0.000000e+00> : vector<5x5xf32>
    %45 = tpu.matmul %42, %43, %cst_25 {dimension_numbers = #tpu.dot_dimension_numbers<[1], [1], [0], [0], [0, 0, 1, 0], [], []>} : vector<5x64xbf16>, vector<5x64xbf16>, vector<5x5xf32> -> vector<5x5xf32>
    %cst_26 = arith.constant 1.250000e-01 : f32
    %46 = vector.broadcast %cst_26 : f32 to vector<5x5xf32>
    %47 = arith.mulf %45, %46 : vector<5x5xf32>
    %cst_27 = arith.constant dense<0xFF800000> : vector<5xf32>
    %48 = vector.multi_reduction <maximumf>, %47, %cst_27 [1] : vector<5x5xf32> to vector<5xf32>
    %49 = vector.shape_cast %48 : vector<5xf32> to vector<5x1xf32>
    %50 = vector.broadcast %49 : vector<5x1xf32> to vector<5x5xf32>
    %51 = arith.subf %47, %50 : vector<5x5xf32>
    %52 = math.exp %51 : vector<5x5xf32>
    %cst_28 = arith.constant dense<0.000000e+00> : vector<5xf32>
    %53 = vector.multi_reduction <add>, %52, %cst_28 [1] : vector<5x5xf32> to vector<5xf32>
    %54 = vector.shape_cast %53 : vector<5xf32> to vector<5x1xf32>
    %55 = tpu.reciprocal %54 {approx = true} : vector<5x1xf32> -> vector<5x1xf32>
    %56 = vector.broadcast %55 : vector<5x1xf32> to vector<5x5xf32>
    %57 = arith.mulf %52, %56 : vector<5x5xf32>
    %58 = arith.truncf %57 : vector<5x5xf32> to vector<5x5xbf16>
    %cst_29 = arith.constant dense<0.000000e+00> : vector<5x64xf32>
    %59 = tpu.matmul %58, %44, %cst_29 {dimension_numbers = #tpu.dot_dimension_numbers<[1], [0], [0], [1], [0, 0, 1, 1], [], []>} : vector<5x5xbf16>, vector<5x64xbf16>, vector<5x64xf32> -> vector<5x64xf32>
    %60 = arith.truncf %59 : vector<5x64xf32> to vector<5x64xbf16>
    %c0_30 = arith.constant 0 : index
    %c0_31 = arith.constant 0 : index
    %61 = vector.load %arg18[%c0_30, %c0_31] : memref<5x64xbf16, #tpu.memory_space<vmem>>, vector<5x64xbf16>
    tpu.vector_store %arg18[%c0_30, %c0_31], %60 {strides = array<i32>} : memref<5x64xbf16, #tpu.memory_space<vmem>>, vector<5x64xbf16>,
    %c0_32 = arith.constant 0 : index
    %c0_33 = arith.constant 0 : index
    %62 = vector.load %arg18[%c0_32, %c0_33] : memref<5x64xbf16, #tpu.memory_space<vmem>>, vector<5x64xbf16>
    %c0_34 = arith.constant 0 : index
    %c0_35 = arith.constant 0 : index
    %c0_36 = arith.constant 0 : index
    %63 = vector.load %arg5[%c0_34, %c0_35, %c0_36] : memref<1x64x64xbf16, #tpu.memory_space<vmem>>, vector<1x64x64xbf16>
    %64 = vector.shape_cast %63 : vector<1x64x64xbf16> to vector<64x64xbf16>
    %cst_37 = arith.constant dense<0.000000e+00> : vector<5x64xf32>
    %65 = tpu.matmul %62, %64, %cst_37 {dimension_numbers = #tpu.dot_dimension_numbers<[1], [0], [0], [1], [0, 0, 1, 1], [], []>} : vector<5x64xbf16>, vector<64x64xbf16>, vector<5x64xf32> -> vector<5x64xf32>
    %c0_38 = arith.constant 0 : index
    %c0_39 = arith.constant 0 : index
    %c0_40 = arith.constant 0 : index
    %66 = vector.load %arg6[%c0_38, %c0_39, %c0_40] : memref<1x1x64xf32, #tpu.memory_space<vmem>>, vector<1x1x64xf32>
    %67 = vector.shape_cast %66 : vector<1x1x64xf32> to vector<1x64xf32>
    %68 = vector.broadcast %67 : vector<1x64xf32> to vector<5x64xf32>
    %69 = arith.addf %65, %68 : vector<5x64xf32>
    %70 = arith.addf %3, %69 : vector<5x64xf32>
    %c0_41 = arith.constant 0 : index
    %c0_42 = arith.constant 0 : index
    %c0_43 = arith.constant 0 : index
    %71 = vector.load %arg9[%c0_41, %c0_42, %c0_43] : memref<1x1x64xf32, #tpu.memory_space<vmem>>, vector<1x1x64xf32>
    %72 = vector.shape_cast %71 : vector<1x1x64xf32> to vector<1x64xf32>
    %c0_44 = arith.constant 0 : index
    %c0_45 = arith.constant 0 : index
    %c0_46 = arith.constant 0 : index
    %73 = vector.load %arg10[%c0_44, %c0_45, %c0_46] : memref<1x1x64xf32, #tpu.memory_space<vmem>>, vector<1x1x64xf32>
    %74 = vector.shape_cast %73 : vector<1x1x64xf32> to vector<1x64xf32>
    %cst_47 = arith.constant dense<0.000000e+00> : vector<5xf32>
    %75 = vector.multi_reduction <add>, %70, %cst_47 [1] : vector<5x64xf32> to vector<5xf32>
    %76 = vector.shape_cast %75 : vector<5xf32> to vector<5x1xf32>
    %cst_48 = arith.constant 6.400000e+01 : f32
    %77 = vector.broadcast %cst_48 : f32 to vector<5x1xf32>
    %78 = arith.divf %76, %77 : vector<5x1xf32>
    %79 = vector.broadcast %78 : vector<5x1xf32> to vector<5x64xf32>
    %80 = arith.subf %70, %79 : vector<5x64xf32>
    %81 = vector.broadcast %78 : vector<5x1xf32> to vector<5x64xf32>
    %82 = arith.subf %70, %81 : vector<5x64xf32>
    %83 = arith.mulf %80, %82 : vector<5x64xf32>
    %cst_49 = arith.constant dense<0.000000e+00> : vector<5xf32>
    %84 = vector.multi_reduction <add>, %83, %cst_49 [1] : vector<5x64xf32> to vector<5xf32>
    %85 = vector.shape_cast %84 : vector<5xf32> to vector<5x1xf32>
    %cst_50 = arith.constant 6.400000e+01 : f32
    %86 = vector.broadcast %cst_50 : f32 to vector<5x1xf32>
    %87 = arith.divf %85, %86 : vector<5x1xf32>
    %88 = vector.broadcast %78 : vector<5x1xf32> to vector<5x64xf32>
    %89 = arith.subf %70, %88 : vector<5x64xf32>
    %cst_51 = arith.constant 9.99999974E-6 : f32
    %90 = vector.broadcast %cst_51 : f32 to vector<5x1xf32>
    %91 = arith.addf %87, %90 : vector<5x1xf32>
    %92 = math.rsqrt %91 : vector<5x1xf32>
    %93 = vector.broadcast %92 : vector<5x1xf32> to vector<5x64xf32>
    %94 = arith.mulf %89, %93 : vector<5x64xf32>
    %95 = vector.broadcast %72 : vector<1x64xf32> to vector<5x64xf32>
    %96 = arith.mulf %94, %95 : vector<5x64xf32>
    %97 = vector.broadcast %74 : vector<1x64xf32> to vector<5x64xf32>
    %98 = arith.addf %96, %97 : vector<5x64xf32>
    %99 = arith.truncf %98 : vector<5x64xf32> to vector<5x64xbf16>
    %cst_52 = arith.constant 0.000000e+00 : f32
    %100 = vector.broadcast %cst_52 : f32 to vector<5x64xf32>
    %c0_53 = arith.constant 0 : index
    %c0_54 = arith.constant 0 : index
    %c0_55 = arith.constant 0 : index
    %101 = vector.load %arg11[%c0_53, %c0_54, %c0_55] : memref<1x64x256xbf16, #tpu.memory_space<vmem>>, vector<1x64x256xbf16>
    %102 = vector.shape_cast %101 : vector<1x64x256xbf16> to vector<64x256xbf16>
    %cst_56 = arith.constant dense<0.000000e+00> : vector<5x256xf32>
    %103 = tpu.matmul %99, %102, %cst_56 {dimension_numbers = #tpu.dot_dimension_numbers<[1], [0], [0], [1], [0, 0, 1, 1], [], []>} : vector<5x64xbf16>, vector<64x256xbf16>, vector<5x256xf32> -> vector<5x256xf32>
    %c0_57 = arith.constant 0 : index
    %c0_58 = arith.constant 0 : index
    %c0_59 = arith.constant 0 : index
    %104 = vector.load %arg12[%c0_57, %c0_58, %c0_59] : memref<1x1x256xf32, #tpu.memory_space<vmem>>, vector<1x1x256xf32>
    %105 = vector.shape_cast %104 : vector<1x1x256xf32> to vector<1x256xf32>
    %106 = vector.broadcast %105 : vector<1x256xf32> to vector<5x256xf32>
    %107 = arith.addf %103, %106 : vector<5x256xf32>
    %cst_60 = arith.constant 1.702000e+00 : f32
    %108 = vector.broadcast %cst_60 : f32 to vector<5x256xf32>
    %109 = arith.mulf %108, %107 : vector<5x256xf32>
    %110 = arith.negf %109 : vector<5x256xf32>
    %111 = math.exp %110 : vector<5x256xf32>
    %cst_61 = arith.constant 1.000000e+00 : f32
    %112 = vector.broadcast %cst_61 : f32 to vector<5x256xf32>
    %113 = arith.addf %112, %111 : vector<5x256xf32>
    %114 = arith.divf %112, %113 : vector<5x256xf32>
    %115 = arith.mulf %107, %114 : vector<5x256xf32>
    %116 = arith.truncf %115 : vector<5x256xf32> to vector<5x256xbf16>
    %c0_62 = arith.constant 0 : index
    %c0_63 = arith.constant 0 : index
    %c0_64 = arith.constant 0 : index
    %117 = vector.load %arg13[%c0_62, %c0_63, %c0_64] : memref<1x256x64xbf16, #tpu.memory_space<vmem>>, vector<1x256x64xbf16>
    %118 = vector.shape_cast %117 : vector<1x256x64xbf16> to vector<256x64xbf16>
    %cst_65 = arith.constant dense<0.000000e+00> : vector<5x64xf32>
    %119 = tpu.matmul %116, %118, %cst_65 {dimension_numbers = #tpu.dot_dimension_numbers<[1], [0], [0], [1], [0, 0, 1, 1], [], []>} : vector<5x256xbf16>, vector<256x64xbf16>, vector<5x64xf32> -> vector<5x64xf32>
    %120 = arith.addf %100, %119 : vector<5x64xf32>
    %121 = arith.addf %70, %120 : vector<5x64xf32>
    %c0_66 = arith.constant 0 : index
    %c0_67 = arith.constant 0 : index
    %c0_68 = arith.constant 0 : index
    %122 = vector.load %arg14[%c0_66, %c0_67, %c0_68] : memref<1x1x64xf32, #tpu.memory_space<vmem>>, vector<1x1x64xf32>
    %123 = vector.shape_cast %122 : vector<1x1x64xf32> to vector<1x64xf32>
    %124 = vector.broadcast %123 : vector<1x64xf32> to vector<5x64xf32>
    %125 = arith.addf %121, %124 : vector<5x64xf32>
    %c0_69 = arith.constant 0 : index
    %c0_70 = arith.constant 0 : index
    %126 = vector.load %arg16[%c0_69, %c0_70] : memref<5x64xf32, #tpu.memory_space<vmem>>, vector<5x64xf32>
    tpu.vector_store %arg16[%c0_69, %c0_70], %125 {strides = array<i32>} : memref<5x64xf32, #tpu.memory_space<vmem>>, vector<5x64xf32>,
    %c1_i32 = arith.constant 1 : i32
    %127 = arith.cmpi eq, %arg1, %c1_i32 : i32
    %128 = arith.extui %127 : i1 to i32
    %c0_i32_71 = arith.constant 0 : i32
    %129 = arith.cmpi ne, %128, %c0_i32_71 : i32
    scf.if %129 {
      %c0_72 = arith.constant 0 : index
      %c0_73 = arith.constant 0 : index
      %c0_74 = arith.constant 0 : index
      %130 = vector.load %arg15[%c0_72, %c0_73, %c0_74] : memref<1x5x64xf32, #tpu.memory_space<vmem>>, vector<1x5x64xf32>
      %131 = vector.shape_cast %130 : vector<1x5x64xf32> to vector<5x64xf32>
      %132 = vector.shape_cast %125 : vector<5x64xf32> to vector<1x5x64xf32>
      tpu.vector_store %arg15[%c0_72, %c0_73, %c0_74], %132 {strides = array<i32>} : memref<1x5x64xf32, #tpu.memory_space<vmem>>, vector<1x5x64xf32>,
    } else {
    }
    return
  }
  func.func @transform_0(%arg0: i32, %arg1: i32) -> (i32, i32, i32) {
    %c0_i32 = arith.constant 0 : i32
    %c0_i32_0 = arith.constant 0 : i32
    %c0_i32_1 = arith.constant 0 : i32
    return %arg0, %c0_i32, %c0_i32_0 : i32, i32, i32
  }
  func.func @transform_1(%arg0: i32, %arg1: i32) -> (i32, i32, i32) {
    %c0_i32 = arith.constant 0 : i32
    %c0_i32_0 = arith.constant 0 : i32
    %c0_i32_1 = arith.constant 0 : i32
    return %arg1, %c0_i32, %c0_i32_0 : i32, i32, i32
  }
  func.func @transform_2(%arg0: i32, %arg1: i32) -> (i32, i32, i32) {
    %c0_i32 = arith.constant 0 : i32
    %c0_i32_0 = arith.constant 0 : i32
    %c0_i32_1 = arith.constant 0 : i32
    return %arg1, %c0_i32, %c0_i32_0 : i32, i32, i32
  }
  func.func @transform_3(%arg0: i32, %arg1: i32) -> (i32, i32, i32) {
    %c0_i32 = arith.constant 0 : i32
    %c0_i32_0 = arith.constant 0 : i32
    %c0_i32_1 = arith.constant 0 : i32
    return %arg1, %c0_i32, %c0_i32_0 : i32, i32, i32
  }
  func.func @transform_4(%arg0: i32, %arg1: i32) -> (i32, i32, i32) {
    %c0_i32 = arith.constant 0 : i32
    %c0_i32_0 = arith.constant 0 : i32
    %c0_i32_1 = arith.constant 0 : i32
    return %arg1, %c0_i32, %c0_i32_0 : i32, i32, i32
  }
  func.func @transform_5(%arg0: i32, %arg1: i32) -> (i32, i32, i32) {
    %c0_i32 = arith.constant 0 : i32
    %c0_i32_0 = arith.constant 0 : i32
    %c0_i32_1 = arith.constant 0 : i32
    return %arg1, %c0_i32, %c0_i32_0 : i32, i32, i32
  }
  func.func @transform_6(%arg0: i32, %arg1: i32) -> (i32, i32, i32) {
    %c0_i32 = arith.constant 0 : i32
    %c0_i32_0 = arith.constant 0 : i32
    %c0_i32_1 = arith.constant 0 : i32
    return %arg1, %c0_i32, %c0_i32_0 : i32, i32, i32
  }
  func.func @transform_7(%arg0: i32, %arg1: i32) -> (i32, i32, i32) {
    %c0_i32 = arith.constant 0 : i32
    %c0_i32_0 = arith.constant 0 : i32
    %c0_i32_1 = arith.constant 0 : i32
    return %arg1, %c0_i32, %c0_i32_0 : i32, i32, i32
  }
  func.func @transform_8(%arg0: i32, %arg1: i32) -> (i32, i32, i32) {
    %c0_i32 = arith.constant 0 : i32
    %c0_i32_0 = arith.constant 0 : i32
    %c0_i32_1 = arith.constant 0 : i32
    return %arg1, %c0_i32, %c0_i32_0 : i32, i32, i32
  }
  func.func @transform_9(%arg0: i32, %arg1: i32) -> (i32, i32, i32) {
    %c0_i32 = arith.constant 0 : i32
    %c0_i32_0 = arith.constant 0 : i32
    %c0_i32_1 = arith.constant 0 : i32
    return %arg1, %c0_i32, %c0_i32_0 : i32, i32, i32
  }
  func.func @transform_10(%arg0: i32, %arg1: i32) -> (i32, i32, i32) {
    %c0_i32 = arith.constant 0 : i32
    %c0_i32_0 = arith.constant 0 : i32
    %c0_i32_1 = arith.constant 0 : i32
    return %arg1, %c0_i32, %c0_i32_0 : i32, i32, i32
  }
  func.func @transform_11(%arg0: i32, %arg1: i32) -> (i32, i32, i32) {
    %c0_i32 = arith.constant 0 : i32
    %c0_i32_0 = arith.constant 0 : i32
    %c0_i32_1 = arith.constant 0 : i32
    return %arg1, %c0_i32, %c0_i32_0 : i32, i32, i32
  }
  func.func @transform_12(%arg0: i32, %arg1: i32) -> (i32, i32, i32) {
    %c0_i32 = arith.constant 0 : i32
    %c0_i32_0 = arith.constant 0 : i32
    %c0_i32_1 = arith.constant 0 : i32
    return %arg1, %c0_i32, %c0_i32_0 : i32, i32, i32
  }
  func.func @transform_13(%arg0: i32, %arg1: i32) -> (i32, i32, i32) {
    %c0_i32 = arith.constant 0 : i32
    %c0_i32_0 = arith.constant 0 : i32
    %c0_i32_1 = arith.constant 0 : i32
    return %arg0, %c0_i32, %c0_i32_0 : i32, i32, i32
  }
}

module attributes {stable_mosaic.version = 11 : i64} {
  func.func @_ln_kernel(%arg0: i32, %arg1: memref<10x64xf32, #tpu.memory_space<vmem>>, %arg2: memref<1x64xf32, #tpu.memory_space<vmem>>, %arg3: memref<1x64xf32, #tpu.memory_space<vmem>>, %arg4: memref<10x64xbf16, #tpu.memory_space<vmem>>) attributes {dimension_semantics = [#tpu.dimension_semantics<parallel>], iteration_bounds = array<i64: 1>, scalar_prefetch = 0 : i64, scratch_operands = 0 : i64, tpu.core_type = #tpu.core_type<tc>, window_params = [{transform_indices = @transform_0, window_bounds = array<i64: 10, 64>}, {pipeline_mode = #tpu.pipeline_mode<synchronous>, transform_indices = @transform_1, window_bounds = array<i64: 1, 64>}, {pipeline_mode = #tpu.pipeline_mode<synchronous>, transform_indices = @transform_2, window_bounds = array<i64: 1, 64>}, {transform_indices = @transform_3, window_bounds = array<i64: 10, 64>}]} {
    %c0 = arith.constant 0 : index
    %c0_0 = arith.constant 0 : index
    %0 = vector.load %arg1[%c0, %c0_0] : memref<10x64xf32, #tpu.memory_space<vmem>>, vector<10x64xf32>
    %cst = arith.constant dense<0.000000e+00> : vector<10xf32>
    %1 = vector.multi_reduction <add>, %0, %cst [1] : vector<10x64xf32> to vector<10xf32>
    %2 = vector.shape_cast %1 : vector<10xf32> to vector<10x1xf32>
    %cst_1 = arith.constant 6.400000e+01 : f32
    %3 = vector.broadcast %cst_1 : f32 to vector<10x1xf32>
    %4 = arith.divf %2, %3 : vector<10x1xf32>
    %5 = vector.broadcast %4 : vector<10x1xf32> to vector<10x64xf32>
    %6 = arith.subf %0, %5 : vector<10x64xf32>
    %7 = vector.broadcast %4 : vector<10x1xf32> to vector<10x64xf32>
    %8 = arith.subf %0, %7 : vector<10x64xf32>
    %9 = arith.mulf %6, %8 : vector<10x64xf32>
    %cst_2 = arith.constant dense<0.000000e+00> : vector<10xf32>
    %10 = vector.multi_reduction <add>, %9, %cst_2 [1] : vector<10x64xf32> to vector<10xf32>
    %11 = vector.shape_cast %10 : vector<10xf32> to vector<10x1xf32>
    %cst_3 = arith.constant 6.400000e+01 : f32
    %12 = vector.broadcast %cst_3 : f32 to vector<10x1xf32>
    %13 = arith.divf %11, %12 : vector<10x1xf32>
    %14 = vector.broadcast %4 : vector<10x1xf32> to vector<10x64xf32>
    %15 = arith.subf %0, %14 : vector<10x64xf32>
    %cst_4 = arith.constant 9.99999974E-6 : f32
    %16 = vector.broadcast %cst_4 : f32 to vector<10x1xf32>
    %17 = arith.addf %13, %16 : vector<10x1xf32>
    %18 = math.rsqrt %17 : vector<10x1xf32>
    %19 = vector.broadcast %18 : vector<10x1xf32> to vector<10x64xf32>
    %20 = arith.mulf %15, %19 : vector<10x64xf32>
    %c0_5 = arith.constant 0 : index
    %c0_6 = arith.constant 0 : index
    %21 = vector.load %arg2[%c0_5, %c0_6] : memref<1x64xf32, #tpu.memory_space<vmem>>, vector<1x64xf32>
    %22 = vector.broadcast %21 : vector<1x64xf32> to vector<10x64xf32>
    %23 = arith.mulf %20, %22 : vector<10x64xf32>
    %c0_7 = arith.constant 0 : index
    %c0_8 = arith.constant 0 : index
    %24 = vector.load %arg3[%c0_7, %c0_8] : memref<1x64xf32, #tpu.memory_space<vmem>>, vector<1x64xf32>
    %25 = vector.broadcast %24 : vector<1x64xf32> to vector<10x64xf32>
    %26 = arith.addf %23, %25 : vector<10x64xf32>
    %27 = arith.truncf %26 : vector<10x64xf32> to vector<10x64xbf16>
    %c0_9 = arith.constant 0 : index
    %c0_10 = arith.constant 0 : index
    %28 = vector.load %arg4[%c0_9, %c0_10] : memref<10x64xbf16, #tpu.memory_space<vmem>>, vector<10x64xbf16>
    tpu.vector_store %arg4[%c0_9, %c0_10], %27 {strides = array<i32>} : memref<10x64xbf16, #tpu.memory_space<vmem>>, vector<10x64xbf16>,
    return
  }
  func.func @transform_0(%arg0: i32) -> (i32, i32) {
    %c0_i32 = arith.constant 0 : i32
    %c0_i32_0 = arith.constant 0 : i32
    return %arg0, %c0_i32 : i32, i32
  }
  func.func @transform_1(%arg0: i32) -> (i32, i32) {
    %c0_i32 = arith.constant 0 : i32
    %c0_i32_0 = arith.constant 0 : i32
    %c0_i32_1 = arith.constant 0 : i32
    return %c0_i32, %c0_i32_0 : i32, i32
  }
  func.func @transform_2(%arg0: i32) -> (i32, i32) {
    %c0_i32 = arith.constant 0 : i32
    %c0_i32_0 = arith.constant 0 : i32
    %c0_i32_1 = arith.constant 0 : i32
    return %c0_i32, %c0_i32_0 : i32, i32
  }
  func.func @transform_3(%arg0: i32) -> (i32, i32) {
    %c0_i32 = arith.constant 0 : i32
    %c0_i32_0 = arith.constant 0 : i32
    return %arg0, %c0_i32 : i32, i32
  }
}

module attributes {stable_mosaic.version = 11 : i64} {
  func.func @_linear_kernel(%arg0: i32, %arg1: i32, %arg2: i32, %arg3: memref<10x64xbf16, #tpu.memory_space<vmem>>, %arg4: memref<64x32xbf16, #tpu.memory_space<vmem>>, %arg5: memref<10x32xf32, #tpu.memory_space<vmem>>, %arg6: memref<10x32xf32, #tpu.memory_space<vmem>>) attributes {dimension_semantics = [#tpu.dimension_semantics<parallel>, #tpu.dimension_semantics<parallel>, #tpu.dimension_semantics<arbitrary>], iteration_bounds = array<i64: 1, 1, 1>, scalar_prefetch = 0 : i64, scratch_operands = 1 : i64, tpu.core_type = #tpu.core_type<tc>, window_params = [{transform_indices = @transform_0, window_bounds = array<i64: 10, 64>}, {transform_indices = @transform_1, window_bounds = array<i64: 64, 32>}, {transform_indices = @transform_2, window_bounds = array<i64: 10, 32>}]} {
    %c0_i32 = arith.constant 0 : i32
    %0 = arith.cmpi eq, %arg2, %c0_i32 : i32
    %1 = arith.extui %0 : i1 to i32
    %c0_i32_0 = arith.constant 0 : i32
    %2 = arith.cmpi ne, %1, %c0_i32_0 : i32
    scf.if %2 {
      %cst_10 = arith.constant 0.000000e+00 : f32
      %12 = vector.broadcast %cst_10 : f32 to vector<10x32xf32>
      %c0_11 = arith.constant 0 : index
      %c0_12 = arith.constant 0 : index
      %13 = vector.load %arg6[%c0_11, %c0_12] : memref<10x32xf32, #tpu.memory_space<vmem>>, vector<10x32xf32>
      tpu.vector_store %arg6[%c0_11, %c0_12], %12 {strides = array<i32>} : memref<10x32xf32, #tpu.memory_space<vmem>>, vector<10x32xf32>,
    } else {
    }
    %c0 = arith.constant 0 : index
    %c0_1 = arith.constant 0 : index
    %3 = vector.load %arg6[%c0, %c0_1] : memref<10x32xf32, #tpu.memory_space<vmem>>, vector<10x32xf32>
    %c0_2 = arith.constant 0 : index
    %c0_3 = arith.constant 0 : index
    %4 = vector.load %arg3[%c0_2, %c0_3] : memref<10x64xbf16, #tpu.memory_space<vmem>>, vector<10x64xbf16>
    %c0_4 = arith.constant 0 : index
    %c0_5 = arith.constant 0 : index
    %5 = vector.load %arg4[%c0_4, %c0_5] : memref<64x32xbf16, #tpu.memory_space<vmem>>, vector<64x32xbf16>
    %cst = arith.constant dense<0.000000e+00> : vector<10x32xf32>
    %6 = tpu.matmul %4, %5, %cst {dimension_numbers = #tpu.dot_dimension_numbers<[1], [0], [0], [1], [0, 0, 1, 1], [], []>} : vector<10x64xbf16>, vector<64x32xbf16>, vector<10x32xf32> -> vector<10x32xf32>
    %7 = arith.addf %3, %6 : vector<10x32xf32>
    %c0_6 = arith.constant 0 : index
    %c0_7 = arith.constant 0 : index
    %8 = vector.load %arg6[%c0_6, %c0_7] : memref<10x32xf32, #tpu.memory_space<vmem>>, vector<10x32xf32>
    tpu.vector_store %arg6[%c0_6, %c0_7], %7 {strides = array<i32>} : memref<10x32xf32, #tpu.memory_space<vmem>>, vector<10x32xf32>,
    %c0_i32_8 = arith.constant 0 : i32
    %9 = arith.cmpi eq, %arg2, %c0_i32_8 : i32
    %10 = arith.extui %9 : i1 to i32
    %c0_i32_9 = arith.constant 0 : i32
    %11 = arith.cmpi ne, %10, %c0_i32_9 : i32
    scf.if %11 {
      %c0_10 = arith.constant 0 : index
      %c0_11 = arith.constant 0 : index
      %12 = vector.load %arg6[%c0_10, %c0_11] : memref<10x32xf32, #tpu.memory_space<vmem>>, vector<10x32xf32>
      %c0_12 = arith.constant 0 : index
      %c0_13 = arith.constant 0 : index
      %13 = vector.load %arg5[%c0_12, %c0_13] : memref<10x32xf32, #tpu.memory_space<vmem>>, vector<10x32xf32>
      tpu.vector_store %arg5[%c0_12, %c0_13], %12 {strides = array<i32>} : memref<10x32xf32, #tpu.memory_space<vmem>>, vector<10x32xf32>,
    } else {
    }
    return
  }
  func.func @transform_0(%arg0: i32, %arg1: i32, %arg2: i32) -> (i32, i32) {
    %c0_i32 = arith.constant 0 : i32
    return %arg0, %arg2 : i32, i32
  }
  func.func @transform_1(%arg0: i32, %arg1: i32, %arg2: i32) -> (i32, i32) {
    %c0_i32 = arith.constant 0 : i32
    return %arg2, %arg1 : i32, i32
  }
  func.func @transform_2(%arg0: i32, %arg1: i32, %arg2: i32) -> (i32, i32) {
    %c0_i32 = arith.constant 0 : i32
    return %arg0, %arg1 : i32, i32
  }
}

module attributes {stable_mosaic.version = 11 : i64} {
  func.func @_ln_kernel(%arg0: i32, %arg1: memref<16x32xf32, #tpu.memory_space<vmem>>, %arg2: memref<1x32xf32, #tpu.memory_space<vmem>>, %arg3: memref<1x32xf32, #tpu.memory_space<vmem>>, %arg4: memref<16x32xbf16, #tpu.memory_space<vmem>>) attributes {dimension_semantics = [#tpu.dimension_semantics<parallel>], iteration_bounds = array<i64: 1>, scalar_prefetch = 0 : i64, scratch_operands = 0 : i64, tpu.core_type = #tpu.core_type<tc>, window_params = [{transform_indices = @transform_0, window_bounds = array<i64: 16, 32>}, {pipeline_mode = #tpu.pipeline_mode<synchronous>, transform_indices = @transform_1, window_bounds = array<i64: 1, 32>}, {pipeline_mode = #tpu.pipeline_mode<synchronous>, transform_indices = @transform_2, window_bounds = array<i64: 1, 32>}, {transform_indices = @transform_3, window_bounds = array<i64: 16, 32>}]} {
    %c0 = arith.constant 0 : index
    %c0_0 = arith.constant 0 : index
    %0 = vector.load %arg1[%c0, %c0_0] : memref<16x32xf32, #tpu.memory_space<vmem>>, vector<16x32xf32>
    %cst = arith.constant dense<0.000000e+00> : vector<16xf32>
    %1 = vector.multi_reduction <add>, %0, %cst [1] : vector<16x32xf32> to vector<16xf32>
    %2 = vector.shape_cast %1 : vector<16xf32> to vector<16x1xf32>
    %cst_1 = arith.constant 3.200000e+01 : f32
    %3 = vector.broadcast %cst_1 : f32 to vector<16x1xf32>
    %4 = arith.divf %2, %3 : vector<16x1xf32>
    %5 = vector.broadcast %4 : vector<16x1xf32> to vector<16x32xf32>
    %6 = arith.subf %0, %5 : vector<16x32xf32>
    %7 = vector.broadcast %4 : vector<16x1xf32> to vector<16x32xf32>
    %8 = arith.subf %0, %7 : vector<16x32xf32>
    %9 = arith.mulf %6, %8 : vector<16x32xf32>
    %cst_2 = arith.constant dense<0.000000e+00> : vector<16xf32>
    %10 = vector.multi_reduction <add>, %9, %cst_2 [1] : vector<16x32xf32> to vector<16xf32>
    %11 = vector.shape_cast %10 : vector<16xf32> to vector<16x1xf32>
    %cst_3 = arith.constant 3.200000e+01 : f32
    %12 = vector.broadcast %cst_3 : f32 to vector<16x1xf32>
    %13 = arith.divf %11, %12 : vector<16x1xf32>
    %14 = vector.broadcast %4 : vector<16x1xf32> to vector<16x32xf32>
    %15 = arith.subf %0, %14 : vector<16x32xf32>
    %cst_4 = arith.constant 9.99999974E-6 : f32
    %16 = vector.broadcast %cst_4 : f32 to vector<16x1xf32>
    %17 = arith.addf %13, %16 : vector<16x1xf32>
    %18 = math.rsqrt %17 : vector<16x1xf32>
    %19 = vector.broadcast %18 : vector<16x1xf32> to vector<16x32xf32>
    %20 = arith.mulf %15, %19 : vector<16x32xf32>
    %c0_5 = arith.constant 0 : index
    %c0_6 = arith.constant 0 : index
    %21 = vector.load %arg2[%c0_5, %c0_6] : memref<1x32xf32, #tpu.memory_space<vmem>>, vector<1x32xf32>
    %22 = vector.broadcast %21 : vector<1x32xf32> to vector<16x32xf32>
    %23 = arith.mulf %20, %22 : vector<16x32xf32>
    %c0_7 = arith.constant 0 : index
    %c0_8 = arith.constant 0 : index
    %24 = vector.load %arg3[%c0_7, %c0_8] : memref<1x32xf32, #tpu.memory_space<vmem>>, vector<1x32xf32>
    %25 = vector.broadcast %24 : vector<1x32xf32> to vector<16x32xf32>
    %26 = arith.addf %23, %25 : vector<16x32xf32>
    %27 = arith.truncf %26 : vector<16x32xf32> to vector<16x32xbf16>
    %c0_9 = arith.constant 0 : index
    %c0_10 = arith.constant 0 : index
    %28 = vector.load %arg4[%c0_9, %c0_10] : memref<16x32xbf16, #tpu.memory_space<vmem>>, vector<16x32xbf16>
    tpu.vector_store %arg4[%c0_9, %c0_10], %27 {strides = array<i32>} : memref<16x32xbf16, #tpu.memory_space<vmem>>, vector<16x32xbf16>,
    return
  }
  func.func @transform_0(%arg0: i32) -> (i32, i32) {
    %c0_i32 = arith.constant 0 : i32
    %c0_i32_0 = arith.constant 0 : i32
    return %arg0, %c0_i32 : i32, i32
  }
  func.func @transform_1(%arg0: i32) -> (i32, i32) {
    %c0_i32 = arith.constant 0 : i32
    %c0_i32_0 = arith.constant 0 : i32
    %c0_i32_1 = arith.constant 0 : i32
    return %c0_i32, %c0_i32_0 : i32, i32
  }
  func.func @transform_2(%arg0: i32) -> (i32, i32) {
    %c0_i32 = arith.constant 0 : i32
    %c0_i32_0 = arith.constant 0 : i32
    %c0_i32_1 = arith.constant 0 : i32
    return %c0_i32, %c0_i32_0 : i32, i32
  }
  func.func @transform_3(%arg0: i32) -> (i32, i32) {
    %c0_i32 = arith.constant 0 : i32
    %c0_i32_0 = arith.constant 0 : i32
    return %arg0, %c0_i32 : i32, i32
  }
}

module attributes {stable_mosaic.version = 11 : i64} {
  func.func @_linear_kernel(%arg0: i32, %arg1: i32, %arg2: i32, %arg3: memref<16x32xbf16, #tpu.memory_space<vmem>>, %arg4: memref<32x32xbf16, #tpu.memory_space<vmem>>, %arg5: memref<16x32xf32, #tpu.memory_space<vmem>>, %arg6: memref<16x32xf32, #tpu.memory_space<vmem>>) attributes {dimension_semantics = [#tpu.dimension_semantics<parallel>, #tpu.dimension_semantics<parallel>, #tpu.dimension_semantics<arbitrary>], iteration_bounds = array<i64: 1, 1, 1>, scalar_prefetch = 0 : i64, scratch_operands = 1 : i64, tpu.core_type = #tpu.core_type<tc>, window_params = [{transform_indices = @transform_0, window_bounds = array<i64: 16, 32>}, {transform_indices = @transform_1, window_bounds = array<i64: 32, 32>}, {transform_indices = @transform_2, window_bounds = array<i64: 16, 32>}]} {
    %c0_i32 = arith.constant 0 : i32
    %0 = arith.cmpi eq, %arg2, %c0_i32 : i32
    %1 = arith.extui %0 : i1 to i32
    %c0_i32_0 = arith.constant 0 : i32
    %2 = arith.cmpi ne, %1, %c0_i32_0 : i32
    scf.if %2 {
      %cst_10 = arith.constant 0.000000e+00 : f32
      %12 = vector.broadcast %cst_10 : f32 to vector<16x32xf32>
      %c0_11 = arith.constant 0 : index
      %c0_12 = arith.constant 0 : index
      %13 = vector.load %arg6[%c0_11, %c0_12] : memref<16x32xf32, #tpu.memory_space<vmem>>, vector<16x32xf32>
      tpu.vector_store %arg6[%c0_11, %c0_12], %12 {strides = array<i32>} : memref<16x32xf32, #tpu.memory_space<vmem>>, vector<16x32xf32>,
    } else {
    }
    %c0 = arith.constant 0 : index
    %c0_1 = arith.constant 0 : index
    %3 = vector.load %arg6[%c0, %c0_1] : memref<16x32xf32, #tpu.memory_space<vmem>>, vector<16x32xf32>
    %c0_2 = arith.constant 0 : index
    %c0_3 = arith.constant 0 : index
    %4 = vector.load %arg3[%c0_2, %c0_3] : memref<16x32xbf16, #tpu.memory_space<vmem>>, vector<16x32xbf16>
    %c0_4 = arith.constant 0 : index
    %c0_5 = arith.constant 0 : index
    %5 = vector.load %arg4[%c0_4, %c0_5] : memref<32x32xbf16, #tpu.memory_space<vmem>>, vector<32x32xbf16>
    %cst = arith.constant dense<0.000000e+00> : vector<16x32xf32>
    %6 = tpu.matmul %4, %5, %cst {dimension_numbers = #tpu.dot_dimension_numbers<[1], [0], [0], [1], [0, 0, 1, 1], [], []>} : vector<16x32xbf16>, vector<32x32xbf16>, vector<16x32xf32> -> vector<16x32xf32>
    %7 = arith.addf %3, %6 : vector<16x32xf32>
    %c0_6 = arith.constant 0 : index
    %c0_7 = arith.constant 0 : index
    %8 = vector.load %arg6[%c0_6, %c0_7] : memref<16x32xf32, #tpu.memory_space<vmem>>, vector<16x32xf32>
    tpu.vector_store %arg6[%c0_6, %c0_7], %7 {strides = array<i32>} : memref<16x32xf32, #tpu.memory_space<vmem>>, vector<16x32xf32>,
    %c0_i32_8 = arith.constant 0 : i32
    %9 = arith.cmpi eq, %arg2, %c0_i32_8 : i32
    %10 = arith.extui %9 : i1 to i32
    %c0_i32_9 = arith.constant 0 : i32
    %11 = arith.cmpi ne, %10, %c0_i32_9 : i32
    scf.if %11 {
      %c0_10 = arith.constant 0 : index
      %c0_11 = arith.constant 0 : index
      %12 = vector.load %arg6[%c0_10, %c0_11] : memref<16x32xf32, #tpu.memory_space<vmem>>, vector<16x32xf32>
      %c0_12 = arith.constant 0 : index
      %c0_13 = arith.constant 0 : index
      %13 = vector.load %arg5[%c0_12, %c0_13] : memref<16x32xf32, #tpu.memory_space<vmem>>, vector<16x32xf32>
      tpu.vector_store %arg5[%c0_12, %c0_13], %12 {strides = array<i32>} : memref<16x32xf32, #tpu.memory_space<vmem>>, vector<16x32xf32>,
    } else {
    }
    return
  }
  func.func @transform_0(%arg0: i32, %arg1: i32, %arg2: i32) -> (i32, i32) {
    %c0_i32 = arith.constant 0 : i32
    return %arg0, %arg2 : i32, i32
  }
  func.func @transform_1(%arg0: i32, %arg1: i32, %arg2: i32) -> (i32, i32) {
    %c0_i32 = arith.constant 0 : i32
    return %arg2, %arg1 : i32, i32
  }
  func.func @transform_2(%arg0: i32, %arg1: i32, %arg2: i32) -> (i32, i32) {
    %c0_i32 = arith.constant 0 : i32
    return %arg0, %arg1 : i32, i32
  }
}

module attributes {stable_mosaic.version = 11 : i64} {
  func.func @_transformer_kernel(%arg0: i32, %arg1: i32, %arg2: memref<1x8x32xf32, #tpu.memory_space<vmem>>, %arg3: memref<1x32x96xbf16, #tpu.memory_space<vmem>>, %arg4: memref<1x1x96xf32, #tpu.memory_space<vmem>>, %arg5: memref<1x32x32xbf16, #tpu.memory_space<vmem>>, %arg6: memref<1x1x32xf32, #tpu.memory_space<vmem>>, %arg7: memref<1x1x32xf32, #tpu.memory_space<vmem>>, %arg8: memref<1x1x32xf32, #tpu.memory_space<vmem>>, %arg9: memref<1x1x32xf32, #tpu.memory_space<vmem>>, %arg10: memref<1x1x32xf32, #tpu.memory_space<vmem>>, %arg11: memref<1x32x128xbf16, #tpu.memory_space<vmem>>, %arg12: memref<1x1x128xf32, #tpu.memory_space<vmem>>, %arg13: memref<1x128x32xbf16, #tpu.memory_space<vmem>>, %arg14: memref<1x1x32xf32, #tpu.memory_space<vmem>>, %arg15: memref<1x8x32xf32, #tpu.memory_space<vmem>>, %arg16: memref<8x32xf32, #tpu.memory_space<vmem>>, %arg17: memref<8x96xbf16, #tpu.memory_space<vmem>>, %arg18: memref<8x32xbf16, #tpu.memory_space<vmem>>) attributes {dimension_semantics = [#tpu.dimension_semantics<parallel>, #tpu.dimension_semantics<arbitrary>], iteration_bounds = array<i64: 2, 2>, scalar_prefetch = 0 : i64, scratch_operands = 3 : i64, tpu.core_type = #tpu.core_type<tc>, window_params = [{transform_indices = @transform_0, window_bounds = array<i64: 1, 8, 32>}, {transform_indices = @transform_1, window_bounds = array<i64: 1, 32, 96>}, {transform_indices = @transform_2, window_bounds = array<i64: 1, 1, 96>}, {transform_indices = @transform_3, window_bounds = array<i64: 1, 32, 32>}, {transform_indices = @transform_4, window_bounds = array<i64: 1, 1, 32>}, {transform_indices = @transform_5, window_bounds = array<i64: 1, 1, 32>}, {transform_indices = @transform_6, window_bounds = array<i64: 1, 1, 32>}, {transform_indices = @transform_7, window_bounds = array<i64: 1, 1, 32>}, {transform_indices = @transform_8, window_bounds = array<i64: 1, 1, 32>}, {transform_indices = @transform_9, window_bounds = array<i64: 1, 32, 128>}, {transform_indices = @transform_10, window_bounds = array<i64: 1, 1, 128>}, {transform_indices = @transform_11, window_bounds = array<i64: 1, 128, 32>}, {transform_indices = @transform_12, window_bounds = array<i64: 1, 1, 32>}, {transform_indices = @transform_13, window_bounds = array<i64: 1, 8, 32>}]} {
    %c0_i32 = arith.constant 0 : i32
    %0 = arith.cmpi eq, %arg1, %c0_i32 : i32
    %1 = arith.extui %0 : i1 to i32
    %c0_i32_0 = arith.constant 0 : i32
    %2 = arith.cmpi ne, %1, %c0_i32_0 : i32
    scf.if %2 {
      %c0_104 = arith.constant 0 : index
      %c0_105 = arith.constant 0 : index
      %c0_106 = arith.constant 0 : index
      %200 = vector.load %arg2[%c0_104, %c0_105, %c0_106] : memref<1x8x32xf32, #tpu.memory_space<vmem>>, vector<1x8x32xf32>
      %201 = vector.shape_cast %200 : vector<1x8x32xf32> to vector<8x32xf32>
      %c0_107 = arith.constant 0 : index
      %c0_108 = arith.constant 0 : index
      %202 = vector.load %arg16[%c0_107, %c0_108] : memref<8x32xf32, #tpu.memory_space<vmem>>, vector<8x32xf32>
      tpu.vector_store %arg16[%c0_107, %c0_108], %201 {strides = array<i32>} : memref<8x32xf32, #tpu.memory_space<vmem>>, vector<8x32xf32>,
    } else {
    }
    %c0 = arith.constant 0 : index
    %c0_1 = arith.constant 0 : index
    %3 = vector.load %arg16[%c0, %c0_1] : memref<8x32xf32, #tpu.memory_space<vmem>>, vector<8x32xf32>
    %c0_2 = arith.constant 0 : index
    %c0_3 = arith.constant 0 : index
    %c0_4 = arith.constant 0 : index
    %4 = vector.load %arg7[%c0_2, %c0_3, %c0_4] : memref<1x1x32xf32, #tpu.memory_space<vmem>>, vector<1x1x32xf32>
    %5 = vector.shape_cast %4 : vector<1x1x32xf32> to vector<1x32xf32>
    %c0_5 = arith.constant 0 : index
    %c0_6 = arith.constant 0 : index
    %c0_7 = arith.constant 0 : index
    %6 = vector.load %arg8[%c0_5, %c0_6, %c0_7] : memref<1x1x32xf32, #tpu.memory_space<vmem>>, vector<1x1x32xf32>
    %7 = vector.shape_cast %6 : vector<1x1x32xf32> to vector<1x32xf32>
    %cst = arith.constant dense<0.000000e+00> : vector<8xf32>
    %8 = vector.multi_reduction <add>, %3, %cst [1] : vector<8x32xf32> to vector<8xf32>
    %9 = vector.shape_cast %8 : vector<8xf32> to vector<8x1xf32>
    %cst_8 = arith.constant 3.200000e+01 : f32
    %10 = vector.broadcast %cst_8 : f32 to vector<8x1xf32>
    %11 = arith.divf %9, %10 : vector<8x1xf32>
    %12 = vector.broadcast %11 : vector<8x1xf32> to vector<8x32xf32>
    %13 = arith.subf %3, %12 : vector<8x32xf32>
    %14 = vector.broadcast %11 : vector<8x1xf32> to vector<8x32xf32>
    %15 = arith.subf %3, %14 : vector<8x32xf32>
    %16 = arith.mulf %13, %15 : vector<8x32xf32>
    %cst_9 = arith.constant dense<0.000000e+00> : vector<8xf32>
    %17 = vector.multi_reduction <add>, %16, %cst_9 [1] : vector<8x32xf32> to vector<8xf32>
    %18 = vector.shape_cast %17 : vector<8xf32> to vector<8x1xf32>
    %cst_10 = arith.constant 3.200000e+01 : f32
    %19 = vector.broadcast %cst_10 : f32 to vector<8x1xf32>
    %20 = arith.divf %18, %19 : vector<8x1xf32>
    %21 = vector.broadcast %11 : vector<8x1xf32> to vector<8x32xf32>
    %22 = arith.subf %3, %21 : vector<8x32xf32>
    %cst_11 = arith.constant 9.99999974E-6 : f32
    %23 = vector.broadcast %cst_11 : f32 to vector<8x1xf32>
    %24 = arith.addf %20, %23 : vector<8x1xf32>
    %25 = math.rsqrt %24 : vector<8x1xf32>
    %26 = vector.broadcast %25 : vector<8x1xf32> to vector<8x32xf32>
    %27 = arith.mulf %22, %26 : vector<8x32xf32>
    %28 = vector.broadcast %5 : vector<1x32xf32> to vector<8x32xf32>
    %29 = arith.mulf %27, %28 : vector<8x32xf32>
    %30 = vector.broadcast %7 : vector<1x32xf32> to vector<8x32xf32>
    %31 = arith.addf %29, %30 : vector<8x32xf32>
    %32 = arith.truncf %31 : vector<8x32xf32> to vector<8x32xbf16>
    %c0_12 = arith.constant 0 : index
    %c0_13 = arith.constant 0 : index
    %c0_14 = arith.constant 0 : index
    %33 = vector.load %arg3[%c0_12, %c0_13, %c0_14] : memref<1x32x96xbf16, #tpu.memory_space<vmem>>, vector<1x32x96xbf16>
    %34 = vector.shape_cast %33 : vector<1x32x96xbf16> to vector<32x96xbf16>
    %cst_15 = arith.constant dense<0.000000e+00> : vector<8x96xf32>
    %35 = tpu.matmul %32, %34, %cst_15 {dimension_numbers = #tpu.dot_dimension_numbers<[1], [0], [0], [1], [0, 0, 1, 1], [], []>} : vector<8x32xbf16>, vector<32x96xbf16>, vector<8x96xf32> -> vector<8x96xf32>
    %c0_16 = arith.constant 0 : index
    %c0_17 = arith.constant 0 : index
    %c0_18 = arith.constant 0 : index
    %36 = vector.load %arg4[%c0_16, %c0_17, %c0_18] : memref<1x1x96xf32, #tpu.memory_space<vmem>>, vector<1x1x96xf32>
    %37 = vector.shape_cast %36 : vector<1x1x96xf32> to vector<1x96xf32>
    %38 = vector.broadcast %37 : vector<1x96xf32> to vector<8x96xf32>
    %39 = arith.addf %35, %38 : vector<8x96xf32>
    %40 = arith.truncf %39 : vector<8x96xf32> to vector<8x96xbf16>
    %c0_19 = arith.constant 0 : index
    %c0_20 = arith.constant 0 : index
    %41 = vector.load %arg17[%c0_19, %c0_20] : memref<8x96xbf16, #tpu.memory_space<vmem>>, vector<8x96xbf16>
    tpu.vector_store %arg17[%c0_19, %c0_20], %40 {strides = array<i32>} : memref<8x96xbf16, #tpu.memory_space<vmem>>, vector<8x96xbf16>,
    %42 = tpu.iota {dimensions = array<i32: 0>} : vector<8x8xi32>
    %43 = tpu.iota {dimensions = array<i32: 1>} : vector<8x8xi32>
    %44 = arith.cmpi sle, %43, %42 : vector<8x8xi32>
    %cst_21 = arith.constant 0.000000e+00 : f32
    %cst_22 = arith.constant 0xFF800000 : f32
    %45 = vector.broadcast %cst_21 : f32 to vector<8x8xf32>
    %46 = vector.broadcast %cst_22 : f32 to vector<8x8xf32>
    %47 = arith.select %44, %45, %46 : vector<8x8xi1>, vector<8x8xf32>
    %c0_23 = arith.constant 0 : index
    %c0_24 = arith.constant 0 : index
    %48 = vector.load %arg17[%c0_23, %c0_24] : memref<8x96xbf16, #tpu.memory_space<vmem>>, vector<8x8xbf16>
    %c0_25 = arith.constant 0 : index
    %c32 = arith.constant 32 : index
    %49 = vector.load %arg17[%c0_25, %c32] : memref<8x96xbf16, #tpu.memory_space<vmem>>, vector<8x8xbf16>
    %c0_26 = arith.constant 0 : index
    %c64 = arith.constant 64 : index
    %50 = vector.load %arg17[%c0_26, %c64] : memref<8x96xbf16, #tpu.memory_space<vmem>>, vector<8x8xbf16>
    %cst_27 = arith.constant dense<0.000000e+00> : vector<8x8xf32>
    %51 = tpu.matmul %48, %49, %cst_27 {dimension_numbers = #tpu.dot_dimension_numbers<[1], [1], [0], [0], [0, 0, 1, 0], [], []>} : vector<8x8xbf16>, vector<8x8xbf16>, vector<8x8xf32> -> vector<8x8xf32>
    %cst_28 = arith.constant 0.353553385 : f32
    %52 = vector.broadcast %cst_28 : f32 to vector<8x8xf32>
    %53 = arith.mulf %51, %52 : vector<8x8xf32>
    %54 = arith.addf %53, %47 : vector<8x8xf32>
    %cst_29 = arith.constant dense<0xFF800000> : vector<8xf32>
    %55 = vector.multi_reduction <maximumf>, %54, %cst_29 [1] : vector<8x8xf32> to vector<8xf32>
    %56 = vector.shape_cast %55 : vector<8xf32> to vector<8x1xf32>
    %57 = vector.broadcast %56 : vector<8x1xf32> to vector<8x8xf32>
    %58 = arith.subf %54, %57 : vector<8x8xf32>
    %59 = math.exp %58 : vector<8x8xf32>
    %cst_30 = arith.constant dense<0.000000e+00> : vector<8xf32>
    %60 = vector.multi_reduction <add>, %59, %cst_30 [1] : vector<8x8xf32> to vector<8xf32>
    %61 = vector.shape_cast %60 : vector<8xf32> to vector<8x1xf32>
    %62 = tpu.reciprocal %61 {approx = true} : vector<8x1xf32> -> vector<8x1xf32>
    %63 = vector.broadcast %62 : vector<8x1xf32> to vector<8x8xf32>
    %64 = arith.mulf %59, %63 : vector<8x8xf32>
    %65 = arith.truncf %64 : vector<8x8xf32> to vector<8x8xbf16>
    %cst_31 = arith.constant dense<0.000000e+00> : vector<8x8xf32>
    %66 = tpu.matmul %65, %50, %cst_31 {dimension_numbers = #tpu.dot_dimension_numbers<[1], [0], [0], [1], [0, 0, 1, 1], [], []>} : vector<8x8xbf16>, vector<8x8xbf16>, vector<8x8xf32> -> vector<8x8xf32>
    %67 = arith.truncf %66 : vector<8x8xf32> to vector<8x8xbf16>
    %c0_32 = arith.constant 0 : index
    %c0_33 = arith.constant 0 : index
    %68 = vector.load %arg18[%c0_32, %c0_33] : memref<8x32xbf16, #tpu.memory_space<vmem>>, vector<8x8xbf16>
    tpu.vector_store %arg18[%c0_32, %c0_33], %67 {strides = array<i32>} : memref<8x32xbf16, #tpu.memory_space<vmem>>, vector<8x8xbf16>,
    %c0_34 = arith.constant 0 : index
    %c8 = arith.constant 8 : index
    %69 = vector.load %arg17[%c0_34, %c8] : memref<8x96xbf16, #tpu.memory_space<vmem>>, vector<8x8xbf16>
    %c0_35 = arith.constant 0 : index
    %c40 = arith.constant 40 : index
    %70 = vector.load %arg17[%c0_35, %c40] : memref<8x96xbf16, #tpu.memory_space<vmem>>, vector<8x8xbf16>
    %c0_36 = arith.constant 0 : index
    %c72 = arith.constant 72 : index
    %71 = vector.load %arg17[%c0_36, %c72] : memref<8x96xbf16, #tpu.memory_space<vmem>>, vector<8x8xbf16>
    %cst_37 = arith.constant dense<0.000000e+00> : vector<8x8xf32>
    %72 = tpu.matmul %69, %70, %cst_37 {dimension_numbers = #tpu.dot_dimension_numbers<[1], [1], [0], [0], [0, 0, 1, 0], [], []>} : vector<8x8xbf16>, vector<8x8xbf16>, vector<8x8xf32> -> vector<8x8xf32>
    %cst_38 = arith.constant 0.353553385 : f32
    %73 = vector.broadcast %cst_38 : f32 to vector<8x8xf32>
    %74 = arith.mulf %72, %73 : vector<8x8xf32>
    %75 = arith.addf %74, %47 : vector<8x8xf32>
    %cst_39 = arith.constant dense<0xFF800000> : vector<8xf32>
    %76 = vector.multi_reduction <maximumf>, %75, %cst_39 [1] : vector<8x8xf32> to vector<8xf32>
    %77 = vector.shape_cast %76 : vector<8xf32> to vector<8x1xf32>
    %78 = vector.broadcast %77 : vector<8x1xf32> to vector<8x8xf32>
    %79 = arith.subf %75, %78 : vector<8x8xf32>
    %80 = math.exp %79 : vector<8x8xf32>
    %cst_40 = arith.constant dense<0.000000e+00> : vector<8xf32>
    %81 = vector.multi_reduction <add>, %80, %cst_40 [1] : vector<8x8xf32> to vector<8xf32>
    %82 = vector.shape_cast %81 : vector<8xf32> to vector<8x1xf32>
    %83 = tpu.reciprocal %82 {approx = true} : vector<8x1xf32> -> vector<8x1xf32>
    %84 = vector.broadcast %83 : vector<8x1xf32> to vector<8x8xf32>
    %85 = arith.mulf %80, %84 : vector<8x8xf32>
    %86 = arith.truncf %85 : vector<8x8xf32> to vector<8x8xbf16>
    %cst_41 = arith.constant dense<0.000000e+00> : vector<8x8xf32>
    %87 = tpu.matmul %86, %71, %cst_41 {dimension_numbers = #tpu.dot_dimension_numbers<[1], [0], [0], [1], [0, 0, 1, 1], [], []>} : vector<8x8xbf16>, vector<8x8xbf16>, vector<8x8xf32> -> vector<8x8xf32>
    %88 = arith.truncf %87 : vector<8x8xf32> to vector<8x8xbf16>
    %c0_42 = arith.constant 0 : index
    %c8_43 = arith.constant 8 : index
    %89 = vector.load %arg18[%c0_42, %c8_43] : memref<8x32xbf16, #tpu.memory_space<vmem>>, vector<8x8xbf16>
    tpu.vector_store %arg18[%c0_42, %c8_43], %88 {strides = array<i32>} : memref<8x32xbf16, #tpu.memory_space<vmem>>, vector<8x8xbf16>,
    %c0_44 = arith.constant 0 : index
    %c16 = arith.constant 16 : index
    %90 = vector.load %arg17[%c0_44, %c16] : memref<8x96xbf16, #tpu.memory_space<vmem>>, vector<8x8xbf16>
    %c0_45 = arith.constant 0 : index
    %c48 = arith.constant 48 : index
    %91 = vector.load %arg17[%c0_45, %c48] : memref<8x96xbf16, #tpu.memory_space<vmem>>, vector<8x8xbf16>
    %c0_46 = arith.constant 0 : index
    %c80 = arith.constant 80 : index
    %92 = vector.load %arg17[%c0_46, %c80] : memref<8x96xbf16, #tpu.memory_space<vmem>>, vector<8x8xbf16>
    %cst_47 = arith.constant dense<0.000000e+00> : vector<8x8xf32>
    %93 = tpu.matmul %90, %91, %cst_47 {dimension_numbers = #tpu.dot_dimension_numbers<[1], [1], [0], [0], [0, 0, 1, 0], [], []>} : vector<8x8xbf16>, vector<8x8xbf16>, vector<8x8xf32> -> vector<8x8xf32>
    %cst_48 = arith.constant 0.353553385 : f32
    %94 = vector.broadcast %cst_48 : f32 to vector<8x8xf32>
    %95 = arith.mulf %93, %94 : vector<8x8xf32>
    %96 = arith.addf %95, %47 : vector<8x8xf32>
    %cst_49 = arith.constant dense<0xFF800000> : vector<8xf32>
    %97 = vector.multi_reduction <maximumf>, %96, %cst_49 [1] : vector<8x8xf32> to vector<8xf32>
    %98 = vector.shape_cast %97 : vector<8xf32> to vector<8x1xf32>
    %99 = vector.broadcast %98 : vector<8x1xf32> to vector<8x8xf32>
    %100 = arith.subf %96, %99 : vector<8x8xf32>
    %101 = math.exp %100 : vector<8x8xf32>
    %cst_50 = arith.constant dense<0.000000e+00> : vector<8xf32>
    %102 = vector.multi_reduction <add>, %101, %cst_50 [1] : vector<8x8xf32> to vector<8xf32>
    %103 = vector.shape_cast %102 : vector<8xf32> to vector<8x1xf32>
    %104 = tpu.reciprocal %103 {approx = true} : vector<8x1xf32> -> vector<8x1xf32>
    %105 = vector.broadcast %104 : vector<8x1xf32> to vector<8x8xf32>
    %106 = arith.mulf %101, %105 : vector<8x8xf32>
    %107 = arith.truncf %106 : vector<8x8xf32> to vector<8x8xbf16>
    %cst_51 = arith.constant dense<0.000000e+00> : vector<8x8xf32>
    %108 = tpu.matmul %107, %92, %cst_51 {dimension_numbers = #tpu.dot_dimension_numbers<[1], [0], [0], [1], [0, 0, 1, 1], [], []>} : vector<8x8xbf16>, vector<8x8xbf16>, vector<8x8xf32> -> vector<8x8xf32>
    %109 = arith.truncf %108 : vector<8x8xf32> to vector<8x8xbf16>
    %c0_52 = arith.constant 0 : index
    %c16_53 = arith.constant 16 : index
    %110 = vector.load %arg18[%c0_52, %c16_53] : memref<8x32xbf16, #tpu.memory_space<vmem>>, vector<8x8xbf16>
    tpu.vector_store %arg18[%c0_52, %c16_53], %109 {strides = array<i32>} : memref<8x32xbf16, #tpu.memory_space<vmem>>, vector<8x8xbf16>,
    %c0_54 = arith.constant 0 : index
    %c24 = arith.constant 24 : index
    %111 = vector.load %arg17[%c0_54, %c24] : memref<8x96xbf16, #tpu.memory_space<vmem>>, vector<8x8xbf16>
    %c0_55 = arith.constant 0 : index
    %c56 = arith.constant 56 : index
    %112 = vector.load %arg17[%c0_55, %c56] : memref<8x96xbf16, #tpu.memory_space<vmem>>, vector<8x8xbf16>
    %c0_56 = arith.constant 0 : index
    %c88 = arith.constant 88 : index
    %113 = vector.load %arg17[%c0_56, %c88] : memref<8x96xbf16, #tpu.memory_space<vmem>>, vector<8x8xbf16>
    %cst_57 = arith.constant dense<0.000000e+00> : vector<8x8xf32>
    %114 = tpu.matmul %111, %112, %cst_57 {dimension_numbers = #tpu.dot_dimension_numbers<[1], [1], [0], [0], [0, 0, 1, 0], [], []>} : vector<8x8xbf16>, vector<8x8xbf16>, vector<8x8xf32> -> vector<8x8xf32>
    %cst_58 = arith.constant 0.353553385 : f32
    %115 = vector.broadcast %cst_58 : f32 to vector<8x8xf32>
    %116 = arith.mulf %114, %115 : vector<8x8xf32>
    %117 = arith.addf %116, %47 : vector<8x8xf32>
    %cst_59 = arith.constant dense<0xFF800000> : vector<8xf32>
    %118 = vector.multi_reduction <maximumf>, %117, %cst_59 [1] : vector<8x8xf32> to vector<8xf32>
    %119 = vector.shape_cast %118 : vector<8xf32> to vector<8x1xf32>
    %120 = vector.broadcast %119 : vector<8x1xf32> to vector<8x8xf32>
    %121 = arith.subf %117, %120 : vector<8x8xf32>
    %122 = math.exp %121 : vector<8x8xf32>
    %cst_60 = arith.constant dense<0.000000e+00> : vector<8xf32>
    %123 = vector.multi_reduction <add>, %122, %cst_60 [1] : vector<8x8xf32> to vector<8xf32>
    %124 = vector.shape_cast %123 : vector<8xf32> to vector<8x1xf32>
    %125 = tpu.reciprocal %124 {approx = true} : vector<8x1xf32> -> vector<8x1xf32>
    %126 = vector.broadcast %125 : vector<8x1xf32> to vector<8x8xf32>
    %127 = arith.mulf %122, %126 : vector<8x8xf32>
    %128 = arith.truncf %127 : vector<8x8xf32> to vector<8x8xbf16>
    %cst_61 = arith.constant dense<0.000000e+00> : vector<8x8xf32>
    %129 = tpu.matmul %128, %113, %cst_61 {dimension_numbers = #tpu.dot_dimension_numbers<[1], [0], [0], [1], [0, 0, 1, 1], [], []>} : vector<8x8xbf16>, vector<8x8xbf16>, vector<8x8xf32> -> vector<8x8xf32>
    %130 = arith.truncf %129 : vector<8x8xf32> to vector<8x8xbf16>
    %c0_62 = arith.constant 0 : index
    %c24_63 = arith.constant 24 : index
    %131 = vector.load %arg18[%c0_62, %c24_63] : memref<8x32xbf16, #tpu.memory_space<vmem>>, vector<8x8xbf16>
    tpu.vector_store %arg18[%c0_62, %c24_63], %130 {strides = array<i32>} : memref<8x32xbf16, #tpu.memory_space<vmem>>, vector<8x8xbf16>,
    %c0_64 = arith.constant 0 : index
    %c0_65 = arith.constant 0 : index
    %132 = vector.load %arg18[%c0_64, %c0_65] : memref<8x32xbf16, #tpu.memory_space<vmem>>, vector<8x32xbf16>
    %c0_66 = arith.constant 0 : index
    %c0_67 = arith.constant 0 : index
    %c0_68 = arith.constant 0 : index
    %133 = vector.load %arg5[%c0_66, %c0_67, %c0_68] : memref<1x32x32xbf16, #tpu.memory_space<vmem>>, vector<1x32x32xbf16>
    %134 = vector.shape_cast %133 : vector<1x32x32xbf16> to vector<32x32xbf16>
    %cst_69 = arith.constant dense<0.000000e+00> : vector<8x32xf32>
    %135 = tpu.matmul %132, %134, %cst_69 {dimension_numbers = #tpu.dot_dimension_numbers<[1], [0], [0], [1], [0, 0, 1, 1], [], []>} : vector<8x32xbf16>, vector<32x32xbf16>, vector<8x32xf32> -> vector<8x32xf32>
    %c0_70 = arith.constant 0 : index
    %c0_71 = arith.constant 0 : index
    %c0_72 = arith.constant 0 : index
    %136 = vector.load %arg6[%c0_70, %c0_71, %c0_72] : memref<1x1x32xf32, #tpu.memory_space<vmem>>, vector<1x1x32xf32>
    %137 = vector.shape_cast %136 : vector<1x1x32xf32> to vector<1x32xf32>
    %138 = vector.broadcast %137 : vector<1x32xf32> to vector<8x32xf32>
    %139 = arith.addf %135, %138 : vector<8x32xf32>
    %140 = arith.addf %3, %139 : vector<8x32xf32>
    %c0_73 = arith.constant 0 : index
    %c0_74 = arith.constant 0 : index
    %c0_75 = arith.constant 0 : index
    %141 = vector.load %arg9[%c0_73, %c0_74, %c0_75] : memref<1x1x32xf32, #tpu.memory_space<vmem>>, vector<1x1x32xf32>
    %142 = vector.shape_cast %141 : vector<1x1x32xf32> to vector<1x32xf32>
    %c0_76 = arith.constant 0 : index
    %c0_77 = arith.constant 0 : index
    %c0_78 = arith.constant 0 : index
    %143 = vector.load %arg10[%c0_76, %c0_77, %c0_78] : memref<1x1x32xf32, #tpu.memory_space<vmem>>, vector<1x1x32xf32>
    %144 = vector.shape_cast %143 : vector<1x1x32xf32> to vector<1x32xf32>
    %cst_79 = arith.constant dense<0.000000e+00> : vector<8xf32>
    %145 = vector.multi_reduction <add>, %140, %cst_79 [1] : vector<8x32xf32> to vector<8xf32>
    %146 = vector.shape_cast %145 : vector<8xf32> to vector<8x1xf32>
    %cst_80 = arith.constant 3.200000e+01 : f32
    %147 = vector.broadcast %cst_80 : f32 to vector<8x1xf32>
    %148 = arith.divf %146, %147 : vector<8x1xf32>
    %149 = vector.broadcast %148 : vector<8x1xf32> to vector<8x32xf32>
    %150 = arith.subf %140, %149 : vector<8x32xf32>
    %151 = vector.broadcast %148 : vector<8x1xf32> to vector<8x32xf32>
    %152 = arith.subf %140, %151 : vector<8x32xf32>
    %153 = arith.mulf %150, %152 : vector<8x32xf32>
    %cst_81 = arith.constant dense<0.000000e+00> : vector<8xf32>
    %154 = vector.multi_reduction <add>, %153, %cst_81 [1] : vector<8x32xf32> to vector<8xf32>
    %155 = vector.shape_cast %154 : vector<8xf32> to vector<8x1xf32>
    %cst_82 = arith.constant 3.200000e+01 : f32
    %156 = vector.broadcast %cst_82 : f32 to vector<8x1xf32>
    %157 = arith.divf %155, %156 : vector<8x1xf32>
    %158 = vector.broadcast %148 : vector<8x1xf32> to vector<8x32xf32>
    %159 = arith.subf %140, %158 : vector<8x32xf32>
    %cst_83 = arith.constant 9.99999974E-6 : f32
    %160 = vector.broadcast %cst_83 : f32 to vector<8x1xf32>
    %161 = arith.addf %157, %160 : vector<8x1xf32>
    %162 = math.rsqrt %161 : vector<8x1xf32>
    %163 = vector.broadcast %162 : vector<8x1xf32> to vector<8x32xf32>
    %164 = arith.mulf %159, %163 : vector<8x32xf32>
    %165 = vector.broadcast %142 : vector<1x32xf32> to vector<8x32xf32>
    %166 = arith.mulf %164, %165 : vector<8x32xf32>
    %167 = vector.broadcast %144 : vector<1x32xf32> to vector<8x32xf32>
    %168 = arith.addf %166, %167 : vector<8x32xf32>
    %169 = arith.truncf %168 : vector<8x32xf32> to vector<8x32xbf16>
    %cst_84 = arith.constant 0.000000e+00 : f32
    %170 = vector.broadcast %cst_84 : f32 to vector<8x32xf32>
    %c0_85 = arith.constant 0 : index
    %c0_86 = arith.constant 0 : index
    %c0_87 = arith.constant 0 : index
    %171 = vector.load %arg11[%c0_85, %c0_86, %c0_87] : memref<1x32x128xbf16, #tpu.memory_space<vmem>>, vector<1x32x128xbf16>
    %172 = vector.shape_cast %171 : vector<1x32x128xbf16> to vector<32x128xbf16>
    %cst_88 = arith.constant dense<0.000000e+00> : vector<8x128xf32>
    %173 = tpu.matmul %169, %172, %cst_88 {dimension_numbers = #tpu.dot_dimension_numbers<[1], [0], [0], [1], [0, 0, 1, 1], [], []>} : vector<8x32xbf16>, vector<32x128xbf16>, vector<8x128xf32> -> vector<8x128xf32>
    %c0_89 = arith.constant 0 : index
    %c0_90 = arith.constant 0 : index
    %c0_91 = arith.constant 0 : index
    %174 = vector.load %arg12[%c0_89, %c0_90, %c0_91] : memref<1x1x128xf32, #tpu.memory_space<vmem>>, vector<1x1x128xf32>
    %175 = vector.shape_cast %174 : vector<1x1x128xf32> to vector<1x128xf32>
    %176 = vector.broadcast %175 : vector<1x128xf32> to vector<8x128xf32>
    %177 = arith.addf %173, %176 : vector<8x128xf32>
    %cst_92 = arith.constant 1.702000e+00 : f32
    %178 = vector.broadcast %cst_92 : f32 to vector<8x128xf32>
    %179 = arith.mulf %178, %177 : vector<8x128xf32>
    %180 = arith.negf %179 : vector<8x128xf32>
    %181 = math.exp %180 : vector<8x128xf32>
    %cst_93 = arith.constant 1.000000e+00 : f32
    %182 = vector.broadcast %cst_93 : f32 to vector<8x128xf32>
    %183 = arith.addf %182, %181 : vector<8x128xf32>
    %184 = arith.divf %182, %183 : vector<8x128xf32>
    %185 = arith.mulf %177, %184 : vector<8x128xf32>
    %186 = arith.truncf %185 : vector<8x128xf32> to vector<8x128xbf16>
    %c0_94 = arith.constant 0 : index
    %c0_95 = arith.constant 0 : index
    %c0_96 = arith.constant 0 : index
    %187 = vector.load %arg13[%c0_94, %c0_95, %c0_96] : memref<1x128x32xbf16, #tpu.memory_space<vmem>>, vector<1x128x32xbf16>
    %188 = vector.shape_cast %187 : vector<1x128x32xbf16> to vector<128x32xbf16>
    %cst_97 = arith.constant dense<0.000000e+00> : vector<8x32xf32>
    %189 = tpu.matmul %186, %188, %cst_97 {dimension_numbers = #tpu.dot_dimension_numbers<[1], [0], [0], [1], [0, 0, 1, 1], [], []>} : vector<8x128xbf16>, vector<128x32xbf16>, vector<8x32xf32> -> vector<8x32xf32>
    %190 = arith.addf %170, %189 : vector<8x32xf32>
    %191 = arith.addf %140, %190 : vector<8x32xf32>
    %c0_98 = arith.constant 0 : index
    %c0_99 = arith.constant 0 : index
    %c0_100 = arith.constant 0 : index
    %192 = vector.load %arg14[%c0_98, %c0_99, %c0_100] : memref<1x1x32xf32, #tpu.memory_space<vmem>>, vector<1x1x32xf32>
    %193 = vector.shape_cast %192 : vector<1x1x32xf32> to vector<1x32xf32>
    %194 = vector.broadcast %193 : vector<1x32xf32> to vector<8x32xf32>
    %195 = arith.addf %191, %194 : vector<8x32xf32>
    %c0_101 = arith.constant 0 : index
    %c0_102 = arith.constant 0 : index
    %196 = vector.load %arg16[%c0_101, %c0_102] : memref<8x32xf32, #tpu.memory_space<vmem>>, vector<8x32xf32>
    tpu.vector_store %arg16[%c0_101, %c0_102], %195 {strides = array<i32>} : memref<8x32xf32, #tpu.memory_space<vmem>>, vector<8x32xf32>,
    %c1_i32 = arith.constant 1 : i32
    %197 = arith.cmpi eq, %arg1, %c1_i32 : i32
    %198 = arith.extui %197 : i1 to i32
    %c0_i32_103 = arith.constant 0 : i32
    %199 = arith.cmpi ne, %198, %c0_i32_103 : i32
    scf.if %199 {
      %c0_104 = arith.constant 0 : index
      %c0_105 = arith.constant 0 : index
      %c0_106 = arith.constant 0 : index
      %200 = vector.load %arg15[%c0_104, %c0_105, %c0_106] : memref<1x8x32xf32, #tpu.memory_space<vmem>>, vector<1x8x32xf32>
      %201 = vector.shape_cast %200 : vector<1x8x32xf32> to vector<8x32xf32>
      %202 = vector.shape_cast %195 : vector<8x32xf32> to vector<1x8x32xf32>
      tpu.vector_store %arg15[%c0_104, %c0_105, %c0_106], %202 {strides = array<i32>} : memref<1x8x32xf32, #tpu.memory_space<vmem>>, vector<1x8x32xf32>,
    } else {
    }
    return
  }
  func.func @transform_0(%arg0: i32, %arg1: i32) -> (i32, i32, i32) {
    %c0_i32 = arith.constant 0 : i32
    %c0_i32_0 = arith.constant 0 : i32
    %c0_i32_1 = arith.constant 0 : i32
    return %arg0, %c0_i32, %c0_i32_0 : i32, i32, i32
  }
  func.func @transform_1(%arg0: i32, %arg1: i32) -> (i32, i32, i32) {
    %c0_i32 = arith.constant 0 : i32
    %c0_i32_0 = arith.constant 0 : i32
    %c0_i32_1 = arith.constant 0 : i32
    return %arg1, %c0_i32, %c0_i32_0 : i32, i32, i32
  }
  func.func @transform_2(%arg0: i32, %arg1: i32) -> (i32, i32, i32) {
    %c0_i32 = arith.constant 0 : i32
    %c0_i32_0 = arith.constant 0 : i32
    %c0_i32_1 = arith.constant 0 : i32
    return %arg1, %c0_i32, %c0_i32_0 : i32, i32, i32
  }
  func.func @transform_3(%arg0: i32, %arg1: i32) -> (i32, i32, i32) {
    %c0_i32 = arith.constant 0 : i32
    %c0_i32_0 = arith.constant 0 : i32
    %c0_i32_1 = arith.constant 0 : i32
    return %arg1, %c0_i32, %c0_i32_0 : i32, i32, i32
  }
  func.func @transform_4(%arg0: i32, %arg1: i32) -> (i32, i32, i32) {
    %c0_i32 = arith.constant 0 : i32
    %c0_i32_0 = arith.constant 0 : i32
    %c0_i32_1 = arith.constant 0 : i32
    return %arg1, %c0_i32, %c0_i32_0 : i32, i32, i32
  }
  func.func @transform_5(%arg0: i32, %arg1: i32) -> (i32, i32, i32) {
    %c0_i32 = arith.constant 0 : i32
    %c0_i32_0 = arith.constant 0 : i32
    %c0_i32_1 = arith.constant 0 : i32
    return %arg1, %c0_i32, %c0_i32_0 : i32, i32, i32
  }
  func.func @transform_6(%arg0: i32, %arg1: i32) -> (i32, i32, i32) {
    %c0_i32 = arith.constant 0 : i32
    %c0_i32_0 = arith.constant 0 : i32
    %c0_i32_1 = arith.constant 0 : i32
    return %arg1, %c0_i32, %c0_i32_0 : i32, i32, i32
  }
  func.func @transform_7(%arg0: i32, %arg1: i32) -> (i32, i32, i32) {
    %c0_i32 = arith.constant 0 : i32
    %c0_i32_0 = arith.constant 0 : i32
    %c0_i32_1 = arith.constant 0 : i32
    return %arg1, %c0_i32, %c0_i32_0 : i32, i32, i32
  }
  func.func @transform_8(%arg0: i32, %arg1: i32) -> (i32, i32, i32) {
    %c0_i32 = arith.constant 0 : i32
    %c0_i32_0 = arith.constant 0 : i32
    %c0_i32_1 = arith.constant 0 : i32
    return %arg1, %c0_i32, %c0_i32_0 : i32, i32, i32
  }
  func.func @transform_9(%arg0: i32, %arg1: i32) -> (i32, i32, i32) {
    %c0_i32 = arith.constant 0 : i32
    %c0_i32_0 = arith.constant 0 : i32
    %c0_i32_1 = arith.constant 0 : i32
    return %arg1, %c0_i32, %c0_i32_0 : i32, i32, i32
  }
  func.func @transform_10(%arg0: i32, %arg1: i32) -> (i32, i32, i32) {
    %c0_i32 = arith.constant 0 : i32
    %c0_i32_0 = arith.constant 0 : i32
    %c0_i32_1 = arith.constant 0 : i32
    return %arg1, %c0_i32, %c0_i32_0 : i32, i32, i32
  }
  func.func @transform_11(%arg0: i32, %arg1: i32) -> (i32, i32, i32) {
    %c0_i32 = arith.constant 0 : i32
    %c0_i32_0 = arith.constant 0 : i32
    %c0_i32_1 = arith.constant 0 : i32
    return %arg1, %c0_i32, %c0_i32_0 : i32, i32, i32
  }
  func.func @transform_12(%arg0: i32, %arg1: i32) -> (i32, i32, i32) {
    %c0_i32 = arith.constant 0 : i32
    %c0_i32_0 = arith.constant 0 : i32
    %c0_i32_1 = arith.constant 0 : i32
    return %arg1, %c0_i32, %c0_i32_0 : i32, i32, i32
  }
  func.func @transform_13(%arg0: i32, %arg1: i32) -> (i32, i32, i32) {
    %c0_i32 = arith.constant 0 : i32
    %c0_i32_0 = arith.constant 0 : i32
    %c0_i32_1 = arith.constant 0 : i32
    return %arg0, %c0_i32, %c0_i32_0 : i32, i32, i32
  }
}

</mosaic_0001>

<llo_original>
// kernel: mga_forward.14
$region0: #{mga_forward.14}
  #allocation0 [shape = 'u32[]', space=smem, size = 0x4, offset = 0x4, fixed_abs, tag = 'smem constant byte address 0x4 - core index']
  #allocation1 [shape = 'u32[144,128]{1,0:T(1,128)}', space=vmem, size = 0x12000, scoped, tag = 'internal scratch']
  %s0 = inlined_call_operand.vmem [shape: f32[10,64], index: 0, kind: input, shape index: {}]
  %s1 = inlined_call_operand.vmem [shape: f32[1,64], index: 1, kind: input, shape index: {}]
  %s2 = inlined_call_operand.vmem [shape: f32[1,64], index: 2, kind: input, shape index: {}]
  %s3 = inlined_call_operand.vmem [shape: f32[10,64], index: 3, kind: output, shape index: {}]
  %s4 = sld [smem:[#allocation0]]
  $region22: #{mga_forward.14} parent=0
    _
  %s6 = ssub.s32 1, %s4
  %s7 = scalar_select 0, %s6, %s4
  // Predicated region
  $region2: #{mga_forward.14} parent=0 // pred_check
    _
  $region3: #{mga_forward.14} parent=0 // pred_check_branch
    %9 = sbr.rel (0) target = $region5
  $region4: #{mga_forward.14} parent=0 // pred_region
    _
  $region5: #{mga_forward.14} parent=0 // pred_fallthru
    _
  // Predicated region
  $region6: #{mga_forward.14} parent=0 // pred_check
    _
  $region7: #{mga_forward.14} parent=0 // pred_check_branch
    %11 = sbr.rel (0) target = $region9
  $region8: #{mga_forward.14} parent=0 // pred_region
    _
  $region9: #{mga_forward.14} parent=0 // pred_fallthru
    _
  // Predicated region
  $region10: #{mga_forward.14} parent=0 // pred_check
    _
  $region11: #{mga_forward.14} parent=0 // pred_check_branch
    %13 = sbr.rel (0) target = $region13
  $region12: #{mga_forward.14} parent=0 // pred_region
    _
  $region13: #{mga_forward.14} parent=0 // pred_fallthru
    _
  %v14 = vld [vmem:[%s0] sm:$0xff]
  %v15 = vld [vmem:[%s0 + $0x8] sm:$0x3]
  %vm16 = vcmask 523264
  %v17 = vsel %vm16, %v14, 0.0
  %18 = vadd.xlane.f32.xlu0 %v17
  %v19 = vpop.xlane.xlu0 %18
  %vm20 = vcmask 517120
  %v21 = vsel %vm20, %v15, 0.0
  %22 = vadd.xlane.f32.xlu0 %v21
  %v23 = vpop.xlane.xlu0 %22
  %v24 = vrcp.pop 64.0
  %v25 = vmul.f32 %v19, %v24
  %v26 = vmul.f32 %v23, %v24
  %v27 = vsub.f32 %v14, %v25
  %v28 = vsub.f32 %v15, %v26
  %v29 = vmul.f32 %v27, %v27
  %v30 = vmul.f32 %v28, %v28
  %v31 = vsel %vm16, %v29, 0.0
  %32 = vadd.xlane.f32.xlu0 %v31
  %v33 = vpop.xlane.xlu0 %32
  %v34 = vsel %vm20, %v30, 0.0
  %35 = vadd.xlane.f32.xlu0 %v34
  %v36 = vpop.xlane.xlu0 %35
  %v37 = vmul.f32 %v33, %v24
  %v38 = vmul.f32 %v36, %v24
  %v39 = vadd.f32 %v37, 1e-05
  %v40 = vadd.f32 %v38, 1e-05
  %v41 = vrsqrt.pop %v39
  %v42 = vrsqrt.pop %v40
  %v43 = vmul.f32 %v27, %v41
  %v44 = vmul.f32 %v28, %v42
  %v45 = vld [vmem:[%s1] sm:$0x1]
  %v47 = vlaneseq
  %v48 = vshrl.u32 %v47, 7
  %v49 = vsub.s32 0, %v48
  %v50 = vrot.slane %v45, %v49
  %v52 = vmul.f32 %v43, %v50
  %v53 = vmul.f32 %v44, %v50
  %v54 = vld [vmem:[%s2] sm:$0x1]
  %v56 = vlaneseq
  %v57 = vshrl.u32 %v56, 7
  %v58 = vsub.s32 0, %v57
  %v59 = vrot.slane %v54, %v58
  %v61 = vadd.f32 %v52, %v59
  %v62 = vadd.f32 %v53, %v59
  %63 = vst.msk [vmem:[%s3] sm:$0xff] %vm16, %v61
  %64 = vst.msk [vmem:[%s3 + $0x8] sm:$0x3] %vm20, %v62
  // Predicated region
  $region14: #{mga_forward.14} parent=0 // pred_check
    _
  $region15: #{mga_forward.14} parent=0 // pred_check_branch
    %66 = sbr.rel (0) target = $region17
  $region16: #{mga_forward.14} parent=0 // pred_region
    _
  $region17: #{mga_forward.14} parent=0 // pred_fallthru
    _
  // Predicated region
  $region18: #{mga_forward.14} parent=0 // pred_check
    _
  $region19: #{mga_forward.14} parent=0 // pred_check_branch
    %68 = sbr.rel (0) target = $region21
  $region20: #{mga_forward.14} parent=0 // pred_region
    _
  $region21: #{mga_forward.14} parent=0 // pred_fallthru
    _

// kernel: mga_forward.13
$region0: #{mga_forward.13}
  #allocation0 [shape = 'u32[]', space=smem, size = 0x4, offset = 0x4, fixed_abs, tag = 'smem constant byte address 0x4 - core index']
  #allocation1 [shape = 'u32[144,128]{1,0:T(1,128)}', space=vmem, size = 0x12000, scoped, tag = 'internal scratch']
  #allocation2 [shape = 'f32[8,64]{1,0:T(8,128)}', space=vmem, size = 0x1000, scoped, tag = 'scratch operand']
  %s0 = inlined_call_operand.vmem [shape: f32[8,192], index: 0, kind: input, shape index: {}]
  %s1 = inlined_call_operand.vmem [shape: bf16[192,64], index: 1, kind: input, shape index: {}]
  %s2 = inlined_call_operand.vmem [shape: f32[8,64], index: 2, kind: output, shape index: {}]
  %s3 = sld [smem:[#allocation0]]
  $region26: #{mga_forward.13} parent=0
    _
  %s5 = ssub.s32 1, %s3
  %s6 = scalar_select 0, %s5, %s3
  // Predicated region
  $region2: #{mga_forward.13} parent=0 // pred_check
    _
  $region3: #{mga_forward.13} parent=0 // pred_check_branch
    %8 = sbr.rel (0) target = $region5
  $region4: #{mga_forward.13} parent=0 // pred_region
    _
  $region5: #{mga_forward.13} parent=0 // pred_fallthru
    _
  // Predicated region
  $region6: #{mga_forward.13} parent=0 // pred_check
    _
  $region7: #{mga_forward.13} parent=0 // pred_check_branch
    %10 = sbr.rel (0) target = $region9
  $region8: #{mga_forward.13} parent=0 // pred_region
    _
  $region9: #{mga_forward.13} parent=0 // pred_fallthru
    _
  %p12 = scmp.eq.s32.totalorder 0, 0
  // Predicated region
  $region10: #{mga_forward.13} parent=0 // pred_check
    %p13 = pneg %p12
  $region11: #{mga_forward.13} parent=0 // pred_check_branch
    %15 = sbr.rel (%p13) target = $region13
  $region12: #{mga_forward.13} parent=0 // pred_region
    %vm16 = vcmask 523264
    %17 = vst.msk [vmem:[#allocation2] sm:$0xff] %vm16, 0.0
  $region13: #{mga_forward.13} parent=0 // pred_fallthru
    _
  %v18 = vld [vmem:[#allocation2] sm:$0xff]
  %v19 = vld [vmem:[%s0] sm:$0xff]
  %v20 = vld [vmem:[%s0 + $0x8] sm:$0xff]
  %v21 = vpack.c.bf16 %v19, %v19
  %v22 = vpack.c.bf16 %v20, %v20
  %v23 = vld [vmem:[%s1] sm:$0xf]
  %v24 = vld [vmem:[%s1 + $0x4] sm:$0xf]
  %v25 = vld [vmem:[%s1 + $0x8] sm:$0xf]
  %v26 = vld [vmem:[%s1 + $0xc] sm:$0xf]
  %v27 = vld [vmem:[%s1 + $0x10] sm:$0xf]
  %v28 = vld [vmem:[%s1 + $0x14] sm:$0xf]
  %v29 = vld [vmem:[%s1 + $0x18] sm:$0xf]
  %v30 = vld [vmem:[%s1 + $0x1c] sm:$0xf]
  %v31 = vld [vmem:[%s1 + $0x20] sm:$0xf]
  %v32 = vld [vmem:[%s1 + $0x24] sm:$0xf]
  %v33 = vld [vmem:[%s1 + $0x28] sm:$0xf]
  %v34 = vld [vmem:[%s1 + $0x2c] sm:$0xf]
  %v35 = vld [vmem:[%s1 + $0x30] sm:$0xf]
  %v36 = vld [vmem:[%s1 + $0x34] sm:$0xf]
  %v37 = vld [vmem:[%s1 + $0x38] sm:$0xf]
  %v38 = vld [vmem:[%s1 + $0x3c] sm:$0xf]
  %v39 = vld [vmem:[%s1 + $0x40] sm:$0xf]
  %v40 = vld [vmem:[%s1 + $0x44] sm:$0xf]
  %v41 = vld [vmem:[%s1 + $0x48] sm:$0xf]
  %v42 = vld [vmem:[%s1 + $0x4c] sm:$0xf]
  %v43 = vld [vmem:[%s1 + $0x50] sm:$0xf]
  %v44 = vld [vmem:[%s1 + $0x54] sm:$0xf]
  %v45 = vld [vmem:[%s1 + $0x58] sm:$0xf]
  %v46 = vld [vmem:[%s1 + $0x5c] sm:$0xf]
  %v71 = vunpack.c.l.b16 %v23
  %v72 = vunpack.c.l.b16 %v24
  %v73 = vunpack.c.l.b16 %v25
  %v74 = vunpack.c.l.b16 %v26
  %v75 = vunpack.c.l.b16 %v27
  %v76 = vunpack.c.l.b16 %v28
  %v77 = vunpack.c.l.b16 %v29
  %v78 = vunpack.c.l.b16 %v30
  %v79 = vunpack.c.l.b16 %v31
  %v80 = vunpack.c.l.b16 %v32
  %v81 = vunpack.c.l.b16 %v33
  %v82 = vunpack.c.l.b16 %v34
  %v83 = vunpack.c.l.b16 %v35
  %v84 = vunpack.c.l.b16 %v36
  %v85 = vunpack.c.l.b16 %v37
  %v86 = vunpack.c.l.b16 %v38
  %v87 = vunpack.c.l.b16 %v39
  %v88 = vunpack.c.l.b16 %v40
  %v89 = vunpack.c.l.b16 %v41
  %v90 = vunpack.c.l.b16 %v42
  %v91 = vunpack.c.l.b16 %v43
  %v92 = vunpack.c.l.b16 %v44
  %v93 = vunpack.c.l.b16 %v45
  %v94 = vunpack.c.l.b16 %v46
  %v95 = vpack.c.b16 %v72, %v71
  %v96 = vpack.c.b16 %v74, %v73
  %v97 = vpack.c.b16 %v76, %v75
  %v98 = vpack.c.b16 %v78, %v77
  %v99 = vpack.c.b16 %v80, %v79
  %v100 = vpack.c.b16 %v82, %v81
  %v101 = vpack.c.b16 %v84, %v83
  %v102 = vpack.c.b16 %v86, %v85
  %v103 = vpack.c.b16 %v88, %v87
  %v104 = vpack.c.b16 %v90, %v89
  %v105 = vpack.c.b16 %v92, %v91
  %v106 = vpack.c.b16 %v94, %v93
  %vm119 = vcmask 523264
  %v121 = vsel %vm119, %v22, 0
  %123 = vmatprep.subr.bf16.mxu0 0
  %124 = vmatpush1.bf16.msra.mxu0 %v95
  %125 = vmatprep.subr.bf16.mxu0 0
  %126 = vmatpush1.bf16.msra.mxu0 %v96
  %127 = vmatprep.subr.bf16.mxu0 0
  %128 = vmatpush1.bf16.msra.mxu0 %v97
  %129 = vmatprep.subr.bf16.mxu0 0
  %130 = vmatpush1.bf16.msra.mxu0 %v98
  %131 = vmatprep.subr.bf16.mxu0 0
  %132 = vmatpush1.bf16.msra.mxu0 %v99
  %133 = vmatprep.subr.bf16.mxu0 0
  %134 = vmatpush1.bf16.msra.mxu0 %v100
  %135 = vmatprep.subr.bf16.mxu0 0
  %136 = vmatpush1.bf16.msra.mxu0 %v101
  %137 = vmatprep.subr.bf16.mxu0 0
  %138 = vmatpush1.bf16.msra.mxu0 %v102
  %139 = vmatprep.subr.bf16.mxu0 0
  %140 = vmatpush1.bf16.msra.mxu0 %v103
  %141 = vmatprep.subr.bf16.mxu0 0
  %142 = vmatpush1.bf16.msra.mxu0 %v104
  %143 = vmatprep.subr.bf16.mxu0 0
  %144 = vmatpush1.bf16.msra.mxu0 %v105
  %145 = vmatprep.subr.bf16.mxu0 0
  %146 = vmatpush1.bf16.msra.mxu0 %v106
  %147 = vmatprep.subr.bf16.mxu0 0
  %148 = vmatpush1.bf16.msra.mxu0 0
  %149 = vmatprep.subr.bf16.mxu0 0
  %150 = vmatpush1.bf16.msra.mxu0 0
  %151 = vmatprep.subr.bf16.mxu0 0
  %152 = vmatpush1.bf16.msra.mxu0 0
  %153 = vmatprep.subr.bf16.mxu0 0
  %154 = vmatpush1.bf16.msra.mxu0 0
  %155 = vmatprep.mubr.bf16.mxu0 %v121
  %156 = vmatmul.mubr.bf16.gmra.mrb[0].mxu0 %v21
  %v157 = vpop.f32.mrb[0].mxu0
  %v158 = vadd.f32 0.0, %v157
  %v159 = vpop.f32.mrb[0].mxu0
  %v160 = vpop.f32.mrb[0].mxu0
  %v161 = vpop.f32.mrb[0].mxu0
  %162 = vdwg.mxu0
  %v163 = vadd.f32 %v18, %v158
  %164 = vst.msk [vmem:[#allocation2] sm:$0xff] %vm119, %v163
  // Predicated region
  $region14: #{mga_forward.13} parent=0 // pred_check
    %p165 = pneg %p12
  $region15: #{mga_forward.13} parent=0 // pred_check_branch
    %167 = sbr.rel (%p165) target = $region17
  $region16: #{mga_forward.13} parent=0 // pred_region
    %v168 = vld [vmem:[#allocation2] sm:$0xff]
    %169 = vst.msk [vmem:[%s2] sm:$0xff] %vm119, %v168
  $region17: #{mga_forward.13} parent=0 // pred_fallthru
    _
  // Predicated region
  $region18: #{mga_forward.13} parent=0 // pred_check
    _
  $region19: #{mga_forward.13} parent=0 // pred_check_branch
    %171 = sbr.rel (0) target = $region21
  $region20: #{mga_forward.13} parent=0 // pred_region
    _
  $region21: #{mga_forward.13} parent=0 // pred_fallthru
    _
  // Predicated region
  $region22: #{mga_forward.13} parent=0 // pred_check
    _
  $region23: #{mga_forward.13} parent=0 // pred_check_branch
    %173 = sbr.rel (0) target = $region25
  $region24: #{mga_forward.13} parent=0 // pred_region
    _
  $region25: #{mga_forward.13} parent=0 // pred_fallthru
    _

// kernel: mga_forward.16
$region0: #{mga_forward.16}
  #allocation0 [shape = 'u32[]', space=smem, size = 0x4, offset = 0x4, fixed_abs, tag = 'smem constant byte address 0x4 - core index']
  #allocation1 [shape = 'u32[144,128]{1,0:T(1,128)}', space=vmem, size = 0x12000, scoped, tag = 'internal scratch']
  %s0 = inlined_call_operand.vmem [shape: f32[10,64], index: 0, kind: input, shape index: {}]
  %s1 = inlined_call_operand.vmem [shape: f32[1,64], index: 1, kind: input, shape index: {}]
  %s2 = inlined_call_operand.vmem [shape: f32[1,64], index: 2, kind: input, shape index: {}]
  %s3 = inlined_call_operand.vmem [shape: bf16[10,64], index: 3, kind: output, shape index: {}]
  %s4 = sld [smem:[#allocation0]]
  $region22: #{mga_forward.16} parent=0
    _
  %s6 = ssub.s32 1, %s4
  %s7 = scalar_select 0, %s6, %s4
  // Predicated region
  $region2: #{mga_forward.16} parent=0 // pred_check
    _
  $region3: #{mga_forward.16} parent=0 // pred_check_branch
    %9 = sbr.rel (0) target = $region5
  $region4: #{mga_forward.16} parent=0 // pred_region
    _
  $region5: #{mga_forward.16} parent=0 // pred_fallthru
    _
  // Predicated region
  $region6: #{mga_forward.16} parent=0 // pred_check
    _
  $region7: #{mga_forward.16} parent=0 // pred_check_branch
    %11 = sbr.rel (0) target = $region9
  $region8: #{mga_forward.16} parent=0 // pred_region
    _
  $region9: #{mga_forward.16} parent=0 // pred_fallthru
    _
  // Predicated region
  $region10: #{mga_forward.16} parent=0 // pred_check
    _
  $region11: #{mga_forward.16} parent=0 // pred_check_branch
    %13 = sbr.rel (0) target = $region13
  $region12: #{mga_forward.16} parent=0 // pred_region
    _
  $region13: #{mga_forward.16} parent=0 // pred_fallthru
    _
  %v14 = vld [vmem:[%s0] sm:$0xff]
  %v15 = vld [vmem:[%s0 + $0x8] sm:$0x3]
  %vm16 = vcmask 523264
  %v17 = vsel %vm16, %v14, 0.0
  %18 = vadd.xlane.f32.xlu0 %v17
  %v19 = vpop.xlane.xlu0 %18
  %vm20 = vcmask 517120
  %v21 = vsel %vm20, %v15, 0.0
  %22 = vadd.xlane.f32.xlu0 %v21
  %v23 = vpop.xlane.xlu0 %22
  %v24 = vrcp.pop 64.0
  %v25 = vmul.f32 %v19, %v24
  %v26 = vmul.f32 %v23, %v24
  %v27 = vsub.f32 %v14, %v25
  %v28 = vsub.f32 %v15, %v26
  %v29 = vmul.f32 %v27, %v27
  %v30 = vmul.f32 %v28, %v28
  %v31 = vsel %vm16, %v29, 0.0
  %32 = vadd.xlane.f32.xlu0 %v31
  %v33 = vpop.xlane.xlu0 %32
  %v34 = vsel %vm20, %v30, 0.0
  %35 = vadd.xlane.f32.xlu0 %v34
  %v36 = vpop.xlane.xlu0 %35
  %v37 = vmul.f32 %v33, %v24
  %v38 = vmul.f32 %v36, %v24
  %v39 = vadd.f32 %v37, 1e-05
  %v40 = vadd.f32 %v38, 1e-05
  %v41 = vrsqrt.pop %v39
  %v42 = vrsqrt.pop %v40
  %v43 = vmul.f32 %v27, %v41
  %v44 = vmul.f32 %v28, %v42
  %v45 = vld [vmem:[%s1] sm:$0x1]
  %v47 = vlaneseq
  %v48 = vshrl.u32 %v47, 7
  %v49 = vsub.s32 0, %v48
  %v50 = vrot.slane %v45, %v49
  %v52 = vmul.f32 %v43, %v50
  %v53 = vmul.f32 %v44, %v50
  %v54 = vld [vmem:[%s2] sm:$0x1]
  %v56 = vlaneseq
  %v57 = vshrl.u32 %v56, 7
  %v58 = vsub.s32 0, %v57
  %v59 = vrot.slane %v54, %v58
  %v61 = vadd.f32 %v52, %v59
  %v62 = vadd.f32 %v53, %v59
  %v63 = vpack.c.bf16 %v62, %v61
  %v65 = vunpack.c.l.b16 %v63
  %v66 = vunpack.c.h.b16 %v63
  %v67 = vpack.c.b16 %v65, %v65
  %v68 = vpack.c.b16 %v66, %v66
  %vm71 = vcmask 519168
  %72 = vst.msk [vmem:[%s3] sm:$0xf] %vm71, %v67
  %vm73 = vcmask 516096
  %74 = vst.msk [vmem:[%s3 + $0x4] sm:$0x1] %vm73, %v68
  // Predicated region
  $region14: #{mga_forward.16} parent=0 // pred_check
    _
  $region15: #{mga_forward.16} parent=0 // pred_check_branch
    %76 = sbr.rel (0) target = $region17
  $region16: #{mga_forward.16} parent=0 // pred_region
    _
  $region17: #{mga_forward.16} parent=0 // pred_fallthru
    _
  // Predicated region
  $region18: #{mga_forward.16} parent=0 // pred_check
    _
  $region19: #{mga_forward.16} parent=0 // pred_check_branch
    %78 = sbr.rel (0) target = $region21
  $region20: #{mga_forward.16} parent=0 // pred_region
    _
  $region21: #{mga_forward.16} parent=0 // pred_fallthru
    _

// kernel: mga_forward.15
$region0: #{mga_forward.15}
  #allocation0 [shape = 'u32[]', space=smem, size = 0x4, offset = 0x4, fixed_abs, tag = 'smem constant byte address 0x4 - core index']
  #allocation1 [shape = 'u32[144,128]{1,0:T(1,128)}', space=vmem, size = 0x12000, scoped, tag = 'internal scratch']
  #allocation2 [shape = 'f32[5,64]{1,0:T(8,128)}', space=vmem, size = 0x1000, scoped, tag = 'scratch operand']
  #allocation3 [shape = 'bf16[5,192]{1,0:T(8,128)(2,1)}', space=vmem, size = 0x1000, scoped, tag = 'scratch operand']
  #allocation4 [shape = 'bf16[5,64]{1,0:T(8,128)(2,1)}', space=vmem, size = 0x800, scoped, tag = 'scratch operand']
  %s0 = inlined_call_operand.vmem [shape: f32[2,5,64], index: 0, kind: input, shape index: {}]
  %s1 = inlined_call_operand.vmem [shape: bf16[2,64,192], index: 1, kind: input, shape index: {}]
  %s2 = inlined_call_operand.vmem [shape: f32[2,1,192], index: 2, kind: input, shape index: {}]
  %s3 = inlined_call_operand.vmem [shape: bf16[2,64,64], index: 3, kind: input, shape index: {}]
  %s4 = inlined_call_operand.vmem [shape: f32[2,1,64], index: 4, kind: input, shape index: {}]
  %s5 = inlined_call_operand.vmem [shape: f32[2,1,64], index: 5, kind: input, shape index: {}]
  %s6 = inlined_call_operand.vmem [shape: f32[2,1,64], index: 6, kind: input, shape index: {}]
  %s7 = inlined_call_operand.vmem [shape: f32[2,1,64], index: 7, kind: input, shape index: {}]
  %s8 = inlined_call_operand.vmem [shape: f32[2,1,64], index: 8, kind: input, shape index: {}]
  %s9 = inlined_call_operand.vmem [shape: bf16[2,64,256], index: 9, kind: input, shape index: {}]
  %s10 = inlined_call_operand.vmem [shape: f32[2,1,256], index: 10, kind: input, shape index: {}]
  %s11 = inlined_call_operand.vmem [shape: bf16[2,256,64], index: 11, kind: input, shape index: {}]
  %s12 = inlined_call_operand.vmem [shape: f32[2,1,64], index: 12, kind: input, shape index: {}]
  %s13 = inlined_call_operand.vmem [shape: f32[2,5,64], index: 13, kind: output, shape index: {}]
  %s14 = sld [smem:[#allocation0]]
  $region93: #{mga_forward.15} parent=0
    _
  %s16 = ssub.s32 1, %s14
  %s17 = scalar_select 0, %s16, %s14
  loop: start=0, step=1, limit=6
  $region2: #{mga_forward.15} parent=0 // loop_pre_header
    _
  $region3: #{mga_forward.15} parent=0 // loop_header
    %s19 = sphi 0, %s23
    %p20 = scmp.ge.s32.totalorder %s19, 6
    %s26 = sphi 0, %s38
    %s27 = sphi 0, %s34
    %s28 = sphi 0, %s26
    %s29 = sphi 0, %s27
    %s30 = sphi 0, %s28
    %s31 = sphi 0, %s29
    %s41 = sphi 0, %s43
    %s44 = sphi 0, %s41
    %s45 = sphi 0, %s44
    %s61 = sphi 0, %s45
    %s67 = sphi 0, %s69
    %s70 = sphi 0, %s67
    %s71 = sphi 0, %s70
    %s87 = sphi 0, %s71
    %s93 = sphi 0, %s95
    %s96 = sphi 0, %s93
    %s97 = sphi 0, %s96
    %s113 = sphi 0, %s97
    %s119 = sphi 0, %s121
    %s122 = sphi 0, %s119
    %s123 = sphi 0, %s122
    %s139 = sphi 0, %s123
    %s145 = sphi 0, %s147
    %s148 = sphi 0, %s145
    %s149 = sphi 0, %s148
    %s165 = sphi 0, %s149
    %s171 = sphi 0, %s173
    %s174 = sphi 0, %s171
    %s175 = sphi 0, %s174
    %s191 = sphi 0, %s175
    %s197 = sphi 0, %s199
    %s200 = sphi 0, %s197
    %s201 = sphi 0, %s200
    %s217 = sphi 0, %s201
    %s223 = sphi 0, %s225
    %s226 = sphi 0, %s223
    %s227 = sphi 0, %s226
    %s243 = sphi 0, %s227
    %s249 = sphi 0, %s251
    %s252 = sphi 0, %s249
    %s253 = sphi 0, %s252
    %s269 = sphi 0, %s253
    %s275 = sphi 0, %s277
    %s278 = sphi 0, %s275
    %s279 = sphi 0, %s278
    %s295 = sphi 0, %s279
    %s301 = sphi 0, %s303
    %s304 = sphi 0, %s301
    %s305 = sphi 0, %s304
    %s321 = sphi 0, %s305
    %s327 = sphi 0, %s329
    %s330 = sphi 0, %s327
    %s331 = sphi 0, %s330
    %s347 = sphi 0, %s331
    %s353 = sphi 0, %s355
    %s356 = sphi 0, %s353
    %s357 = sphi 0, %s356
    %s373 = sphi 0, %s357
    %s379 = sphi 0, %s381
    %s382 = sphi 0, %s379
    %s383 = sphi 0, %s382
    %s399 = sphi 0, %s383
  $region4: #{mga_forward.15} parent=0 // loop_header_branch
    %22 = sbr.rel (%p20) target = $region8
  $region5: #{mga_forward.15} parent=0 // loop_body
    %s24 = ssub.s32 %s19, 1
    %s25 = ssub.s32 %s19, 2
    %s32 = sadd.s32 1, %s27
    %p33 = scmp.ge.s32.totalorder %s32, 2
    %s34 = scalar_select %p33, 0, %s32
    %s35 = sadd.s32 1, %s26
    %s36 = scalar_select %p33, %s35, %s26
    %p37 = scmp.ge.s32.totalorder %s36, 2
    %s38 = scalar_select %p37, 0, %s36
    %s39 = ssub.s32 %s26, %s38
    %p40 = scmp.eq.s32.totalorder %s39, 0
    %s42 = sadd.s32 %s41, 1
    %s43 = scalar_select %p40, %s41, %s42
    %p46 = pneg %p40
    %p47 = scmp.eq.s32.totalorder %s19, 3
    %p48 = por %p46, %p47
    %p49 = scmp.ne.s32.totalorder %s41, %s44
    %p50 = scmp.eq.s32.totalorder %s19, 0
    %p51 = por %p49, %p50
    %p52 = scmp.ne.s32.totalorder %s41, %s44
    %p53 = scmp.eq.s32.totalorder %s24, 3
    %p54 = por %p52, %p53
    %p55 = scmp.ne.s32.totalorder %s44, %s45
    %p56 = scmp.eq.s32.totalorder %s24, 0
    %p57 = por %p55, %p56
    %p58 = scmp.ne.s32.totalorder %s44, %s45
    %p59 = scmp.eq.s32.totalorder %s25, 3
    %p60 = por %p58, %p59
    %p62 = scmp.ne.s32.totalorder %s45, %s61
    %p63 = scmp.eq.s32.totalorder %s25, 0
    %p64 = por %p62, %p63
    %s65 = ssub.s32 %s27, %s34
    %p66 = scmp.eq.s32.totalorder %s65, 0
    %s68 = sadd.s32 %s67, 1
    %s69 = scalar_select %p66, %s67, %s68
    %p72 = pneg %p66
    %p73 = scmp.eq.s32.totalorder %s19, 3
    %p74 = por %p72, %p73
    %p75 = scmp.ne.s32.totalorder %s67, %s70
    %p76 = scmp.eq.s32.totalorder %s19, 0
    %p77 = por %p75, %p76
    %p78 = scmp.ne.s32.totalorder %s67, %s70
    %p79 = scmp.eq.s32.totalorder %s24, 3
    %p80 = por %p78, %p79
    %p81 = scmp.ne.s32.totalorder %s70, %s71
    %p82 = scmp.eq.s32.totalorder %s24, 0
    %p83 = por %p81, %p82
    %p84 = scmp.ne.s32.totalorder %s70, %s71
    %p85 = scmp.eq.s32.totalorder %s25, 3
    %p86 = por %p84, %p85
    %p88 = scmp.ne.s32.totalorder %s71, %s87
    %p89 = scmp.eq.s32.totalorder %s25, 0
    %p90 = por %p88, %p89
    %s91 = ssub.s32 %s27, %s34
    %p92 = scmp.eq.s32.totalorder %s91, 0
    %s94 = sadd.s32 %s93, 1
    %s95 = scalar_select %p92, %s93, %s94
    %p98 = pneg %p92
    %p99 = scmp.eq.s32.totalorder %s19, 3
    %p100 = por %p98, %p99
    %p101 = scmp.ne.s32.totalorder %s93, %s96
    %p102 = scmp.eq.s32.totalorder %s19, 0
    %p103 = por %p101, %p102
    %p104 = scmp.ne.s32.totalorder %s93, %s96
    %p105 = scmp.eq.s32.totalorder %s24, 3
    %p106 = por %p104, %p105
    %p107 = scmp.ne.s32.totalorder %s96, %s97
    %p108 = scmp.eq.s32.totalorder %s24, 0
    %p109 = por %p107, %p108
    %p110 = scmp.ne.s32.totalorder %s96, %s97
    %p111 = scmp.eq.s32.totalorder %s25, 3
    %p112 = por %p110, %p111
    %p114 = scmp.ne.s32.totalorder %s97, %s113
    %p115 = scmp.eq.s32.totalorder %s25, 0
    %p116 = por %p114, %p115
    %s117 = ssub.s32 %s27, %s34
    %p118 = scmp.eq.s32.totalorder %s117, 0
    %s120 = sadd.s32 %s119, 1
    %s121 = scalar_select %p118, %s119, %s120
    %p124 = pneg %p118
    %p125 = scmp.eq.s32.totalorder %s19, 3
    %p126 = por %p124, %p125
    %p127 = scmp.ne.s32.totalorder %s119, %s122
    %p128 = scmp.eq.s32.totalorder %s19, 0
    %p129 = por %p127, %p128
    %p130 = scmp.ne.s32.totalorder %s119, %s122
    %p131 = scmp.eq.s32.totalorder %s24, 3
    %p132 = por %p130, %p131
    %p133 = scmp.ne.s32.totalorder %s122, %s123
    %p134 = scmp.eq.s32.totalorder %s24, 0
    %p135 = por %p133, %p134
    %p136 = scmp.ne.s32.totalorder %s122, %s123
    %p137 = scmp.eq.s32.totalorder %s25, 3
    %p138 = por %p136, %p137
    %p140 = scmp.ne.s32.totalorder %s123, %s139
    %p141 = scmp.eq.s32.totalorder %s25, 0
    %p142 = por %p140, %p141
    %s143 = ssub.s32 %s27, %s34
    %p144 = scmp.eq.s32.totalorder %s143, 0
    %s146 = sadd.s32 %s145, 1
    %s147 = scalar_select %p144, %s145, %s146
    %p150 = pneg %p144
    %p151 = scmp.eq.s32.totalorder %s19, 3
    %p152 = por %p150, %p151
    %p153 = scmp.ne.s32.totalorder %s145, %s148
    %p154 = scmp.eq.s32.totalorder %s19, 0
    %p155 = por %p153, %p154
    %p156 = scmp.ne.s32.totalorder %s145, %s148
    %p157 = scmp.eq.s32.totalorder %s24, 3
    %p158 = por %p156, %p157
    %p159 = scmp.ne.s32.totalorder %s148, %s149
    %p160 = scmp.eq.s32.totalorder %s24, 0
    %p161 = por %p159, %p160
    %p162 = scmp.ne.s32.totalorder %s148, %s149
    %p163 = scmp.eq.s32.totalorder %s25, 3
    %p164 = por %p162, %p163
    %p166 = scmp.ne.s32.totalorder %s149, %s165
    %p167 = scmp.eq.s32.totalorder %s25, 0
    %p168 = por %p166, %p167
    %s169 = ssub.s32 %s27, %s34
    %p170 = scmp.eq.s32.totalorder %s169, 0
    %s172 = sadd.s32 %s171, 1
    %s173 = scalar_select %p170, %s171, %s172
    %p176 = pneg %p170
    %p177 = scmp.eq.s32.totalorder %s19, 3
    %p178 = por %p176, %p177
    %p179 = scmp.ne.s32.totalorder %s171, %s174
    %p180 = scmp.eq.s32.totalorder %s19, 0
    %p181 = por %p179, %p180
    %p182 = scmp.ne.s32.totalorder %s171, %s174
    %p183 = scmp.eq.s32.totalorder %s24, 3
    %p184 = por %p182, %p183
    %p185 = scmp.ne.s32.totalorder %s174, %s175
    %p186 = scmp.eq.s32.totalorder %s24, 0
    %p187 = por %p185, %p186
    %p188 = scmp.ne.s32.totalorder %s174, %s175
    %p189 = scmp.eq.s32.totalorder %s25, 3
    %p190 = por %p188, %p189
    %p192 = scmp.ne.s32.totalorder %s175, %s191
    %p193 = scmp.eq.s32.totalorder %s25, 0
    %p194 = por %p192, %p193
    %s195 = ssub.s32 %s27, %s34
    %p196 = scmp.eq.s32.totalorder %s195, 0
    %s198 = sadd.s32 %s197, 1
    %s199 = scalar_select %p196, %s197, %s198
    %p202 = pneg %p196
    %p203 = scmp.eq.s32.totalorder %s19, 3
    %p204 = por %p202, %p203
    %p205 = scmp.ne.s32.totalorder %s197, %s200
    %p206 = scmp.eq.s32.totalorder %s19, 0
    %p207 = por %p205, %p206
    %p208 = scmp.ne.s32.totalorder %s197, %s200
    %p209 = scmp.eq.s32.totalorder %s24, 3
    %p210 = por %p208, %p209
    %p211 = scmp.ne.s32.totalorder %s200, %s201
    %p212 = scmp.eq.s32.totalorder %s24, 0
    %p213 = por %p211, %p212
    %p214 = scmp.ne.s32.totalorder %s200, %s201
    %p215 = scmp.eq.s32.totalorder %s25, 3
    %p216 = por %p214, %p215
    %p218 = scmp.ne.s32.totalorder %s201, %s217
    %p219 = scmp.eq.s32.totalorder %s25, 0
    %p220 = por %p218, %p219
    %s221 = ssub.s32 %s27, %s34
    %p222 = scmp.eq.s32.totalorder %s221, 0
    %s224 = sadd.s32 %s223, 1
    %s225 = scalar_select %p222, %s223, %s224
    %p228 = pneg %p222
    %p229 = scmp.eq.s32.totalorder %s19, 3
    %p230 = por %p228, %p229
    %p231 = scmp.ne.s32.totalorder %s223, %s226
    %p232 = scmp.eq.s32.totalorder %s19, 0
    %p233 = por %p231, %p232
    %p234 = scmp.ne.s32.totalorder %s223, %s226
    %p235 = scmp.eq.s32.totalorder %s24, 3
    %p236 = por %p234, %p235
    %p237 = scmp.ne.s32.totalorder %s226, %s227
    %p238 = scmp.eq.s32.totalorder %s24, 0
    %p239 = por %p237, %p238
    %p240 = scmp.ne.s32.totalorder %s226, %s227
    %p241 = scmp.eq.s32.totalorder %s25, 3
    %p242 = por %p240, %p241
    %p244 = scmp.ne.s32.totalorder %s227, %s243
    %p245 = scmp.eq.s32.totalorder %s25, 0
    %p246 = por %p244, %p245
    %s247 = ssub.s32 %s27, %s34
    %p248 = scmp.eq.s32.totalorder %s247, 0
    %s250 = sadd.s32 %s249, 1
    %s251 = scalar_select %p248, %s249, %s250
    %p254 = pneg %p248
    %p255 = scmp.eq.s32.totalorder %s19, 3
    %p256 = por %p254, %p255
    %p257 = scmp.ne.s32.totalorder %s249, %s252
    %p258 = scmp.eq.s32.totalorder %s19, 0
    %p259 = por %p257, %p258
    %p260 = scmp.ne.s32.totalorder %s249, %s252
    %p261 = scmp.eq.s32.totalorder %s24, 3
    %p262 = por %p260, %p261
    %p263 = scmp.ne.s32.totalorder %s252, %s253
    %p264 = scmp.eq.s32.totalorder %s24, 0
    %p265 = por %p263, %p264
    %p266 = scmp.ne.s32.totalorder %s252, %s253
    %p267 = scmp.eq.s32.totalorder %s25, 3
    %p268 = por %p266, %p267
    %p270 = scmp.ne.s32.totalorder %s253, %s269
    %p271 = scmp.eq.s32.totalorder %s25, 0
    %p272 = por %p270, %p271
    %s273 = ssub.s32 %s27, %s34
    %p274 = scmp.eq.s32.totalorder %s273, 0
    %s276 = sadd.s32 %s275, 1
    %s277 = scalar_select %p274, %s275, %s276
    %p280 = pneg %p274
    %p281 = scmp.eq.s32.totalorder %s19, 3
    %p282 = por %p280, %p281
    %p283 = scmp.ne.s32.totalorder %s275, %s278
    %p284 = scmp.eq.s32.totalorder %s19, 0
    %p285 = por %p283, %p284
    %p286 = scmp.ne.s32.totalorder %s275, %s278
    %p287 = scmp.eq.s32.totalorder %s24, 3
    %p288 = por %p286, %p287
    %p289 = scmp.ne.s32.totalorder %s278, %s279
    %p290 = scmp.eq.s32.totalorder %s24, 0
    %p291 = por %p289, %p290
    %p292 = scmp.ne.s32.totalorder %s278, %s279
    %p293 = scmp.eq.s32.totalorder %s25, 3
    %p294 = por %p292, %p293
    %p296 = scmp.ne.s32.totalorder %s279, %s295
    %p297 = scmp.eq.s32.totalorder %s25, 0
    %p298 = por %p296, %p297
    %s299 = ssub.s32 %s27, %s34
    %p300 = scmp.eq.s32.totalorder %s299, 0
    %s302 = sadd.s32 %s301, 1
    %s303 = scalar_select %p300, %s301, %s302
    %p306 = pneg %p300
    %p307 = scmp.eq.s32.totalorder %s19, 3
    %p308 = por %p306, %p307
    %p309 = scmp.ne.s32.totalorder %s301, %s304
    %p310 = scmp.eq.s32.totalorder %s19, 0
    %p311 = por %p309, %p310
    %p312 = scmp.ne.s32.totalorder %s301, %s304
    %p313 = scmp.eq.s32.totalorder %s24, 3
    %p314 = por %p312, %p313
    %p315 = scmp.ne.s32.totalorder %s304, %s305
    %p316 = scmp.eq.s32.totalorder %s24, 0
    %p317 = por %p315, %p316
    %p318 = scmp.ne.s32.totalorder %s304, %s305
    %p319 = scmp.eq.s32.totalorder %s25, 3
    %p320 = por %p318, %p319
    %p322 = scmp.ne.s32.totalorder %s305, %s321
    %p323 = scmp.eq.s32.totalorder %s25, 0
    %p324 = por %p322, %p323
    %s325 = ssub.s32 %s27, %s34
    %p326 = scmp.eq.s32.totalorder %s325, 0
    %s328 = sadd.s32 %s327, 1
    %s329 = scalar_select %p326, %s327, %s328
    %p332 = pneg %p326
    %p333 = scmp.eq.s32.totalorder %s19, 3
    %p334 = por %p332, %p333
    %p335 = scmp.ne.s32.totalorder %s327, %s330
    %p336 = scmp.eq.s32.totalorder %s19, 0
    %p337 = por %p335, %p336
    %p338 = scmp.ne.s32.totalorder %s327, %s330
    %p339 = scmp.eq.s32.totalorder %s24, 3
    %p340 = por %p338, %p339
    %p341 = scmp.ne.s32.totalorder %s330, %s331
    %p342 = scmp.eq.s32.totalorder %s24, 0
    %p343 = por %p341, %p342
    %p344 = scmp.ne.s32.totalorder %s330, %s331
    %p345 = scmp.eq.s32.totalorder %s25, 3
    %p346 = por %p344, %p345
    %p348 = scmp.ne.s32.totalorder %s331, %s347
    %p349 = scmp.eq.s32.totalorder %s25, 0
    %p350 = por %p348, %p349
    %s351 = ssub.s32 %s27, %s34
    %p352 = scmp.eq.s32.totalorder %s351, 0
    %s354 = sadd.s32 %s353, 1
    %s355 = scalar_select %p352, %s353, %s354
    %p358 = pneg %p352
    %p359 = scmp.eq.s32.totalorder %s19, 3
    %p360 = por %p358, %p359
    %p361 = scmp.ne.s32.totalorder %s353, %s356
    %p362 = scmp.eq.s32.totalorder %s19, 0
    %p363 = por %p361, %p362
    %p364 = scmp.ne.s32.totalorder %s353, %s356
    %p365 = scmp.eq.s32.totalorder %s24, 3
    %p366 = por %p364, %p365
    %p367 = scmp.ne.s32.totalorder %s356, %s357
    %p368 = scmp.eq.s32.totalorder %s24, 0
    %p369 = por %p367, %p368
    %p370 = scmp.ne.s32.totalorder %s356, %s357
    %p371 = scmp.eq.s32.totalorder %s25, 3
    %p372 = por %p370, %p371
    %p374 = scmp.ne.s32.totalorder %s357, %s373
    %p375 = scmp.eq.s32.totalorder %s25, 0
    %p376 = por %p374, %p375
    %s377 = ssub.s32 %s26, %s38
    %p378 = scmp.eq.s32.totalorder %s377, 0
    %s380 = sadd.s32 %s379, 1
    %s381 = scalar_select %p378, %s379, %s380
    %p384 = pneg %p378
    %p385 = scmp.eq.s32.totalorder %s19, 3
    %p386 = por %p384, %p385
    %p387 = scmp.ne.s32.totalorder %s379, %s382
    %p388 = scmp.eq.s32.totalorder %s19, 0
    %p389 = por %p387, %p388
    %p390 = scmp.ne.s32.totalorder %s379, %s382
    %p391 = scmp.eq.s32.totalorder %s24, 3
    %p392 = por %p390, %p391
    %p393 = scmp.ne.s32.totalorder %s382, %s383
    %p394 = scmp.eq.s32.totalorder %s24, 0
    %p395 = por %p393, %p394
    %p396 = scmp.ne.s32.totalorder %s382, %s383
    %p397 = scmp.eq.s32.totalorder %s25, 3
    %p398 = por %p396, %p397
    %p400 = scmp.ne.s32.totalorder %s383, %s399
    %p401 = scmp.eq.s32.totalorder %s25, 0
    %p402 = por %p400, %p401
    %p403 = scmp.le.s32.totalorder 1, %s19
    %p404 = scmp.lt.s32.totalorder %s19, 5
    %p405 = pnand %p403, %p404
    %p406 = pneg %p405
    // Predicated region
    $region9: #{mga_forward.15} parent=5 // pred_check
      _
    $region10: #{mga_forward.15} parent=5 // pred_check_branch
      %408 = sbr.rel (%p405) target = $region12
    $region11: #{mga_forward.15} parent=5 // pred_region
      %s409 = ssub.s32 %s19, 1
    $region12: #{mga_forward.15} parent=5 // pred_fallthru
      _
    %p410 = scmp.lt.s32.totalorder %s19, 4
    // Predicated region
    $region13: #{mga_forward.15} parent=5 // pred_check
      %p411 = pneg %p410
    $region14: #{mga_forward.15} parent=5 // pred_check_branch
      %413 = sbr.rel (%p411) target = $region16
    $region15: #{mga_forward.15} parent=5 // pred_region
      // Predicated region
      $region17: #{mga_forward.15} parent=15 // pred_check
        %p414 = pneg %p51
      $region18: #{mga_forward.15} parent=15 // pred_check_branch
        %416 = sbr.rel (%p414) target = $region20
      $region19: #{mga_forward.15} parent=15 // pred_region
        %p417 = scmp.lt.s32.totalorder %s26, 1
        %s418 = scalar_select %p417, %s26, 1
        %s419 = smul.addr %s418, 8
        %s420 = scalar_lea.vmem %s0, %s419
      $region20: #{mga_forward.15} parent=15 // pred_fallthru
        _
      // Predicated region
      $region21: #{mga_forward.15} parent=15 // pred_check
        %p421 = pneg %p77
      $region22: #{mga_forward.15} parent=15 // pred_check_branch
        %423 = sbr.rel (%p421) target = $region24
      $region23: #{mga_forward.15} parent=15 // pred_region
        %p424 = scmp.lt.s32.totalorder %s27, 1
        %s425 = scalar_select %p424, %s27, 1
        %s426 = smul.addr %s425, 16
        %s427 = smul.addr %s426, 4
        %s428 = scalar_lea.vmem %s1, %s427
      $region24: #{mga_forward.15} parent=15 // pred_fallthru
        _
      // Predicated region
      $region25: #{mga_forward.15} parent=15 // pred_check
        %p429 = pneg %p103
      $region26: #{mga_forward.15} parent=15 // pred_check_branch
        %431 = sbr.rel (%p429) target = $region28
      $region27: #{mga_forward.15} parent=15 // pred_region
        %p432 = scmp.lt.s32.totalorder %s27, 1
        %s433 = scalar_select %p432, %s27, 1
        %s434 = smul.addr %s433, 2
        %s435 = scalar_lea.vmem %s2, %s434
      $region28: #{mga_forward.15} parent=15 // pred_fallthru
        _
      // Predicated region
      $region29: #{mga_forward.15} parent=15 // pred_check
        %p436 = pneg %p129
      $region30: #{mga_forward.15} parent=15 // pred_check_branch
        %438 = sbr.rel (%p436) target = $region32
      $region31: #{mga_forward.15} parent=15 // pred_region
        %p439 = scmp.lt.s32.totalorder %s27, 1
        %s440 = scalar_select %p439, %s27, 1
        %s441 = smul.addr %s440, 8
        %s442 = smul.addr %s441, 4
        %s443 = scalar_lea.vmem %s3, %s442
      $region32: #{mga_forward.15} parent=15 // pred_fallthru
        _
      // Predicated region
      $region33: #{mga_forward.15} parent=15 // pred_check
        %p444 = pneg %p155
      $region34: #{mga_forward.15} parent=15 // pred_check_branch
        %446 = sbr.rel (%p444) target = $region36
      $region35: #{mga_forward.15} parent=15 // pred_region
        %p447 = scmp.lt.s32.totalorder %s27, 1
        %s448 = scalar_select %p447, %s27, 1
        %s449 = scalar_lea.vmem %s4, %s448
      $region36: #{mga_forward.15} parent=15 // pred_fallthru
        _
      // Predicated region
      $region37: #{mga_forward.15} parent=15 // pred_check
        %p450 = pneg %p181
      $region38: #{mga_forward.15} parent=15 // pred_check_branch
        %452 = sbr.rel (%p450) target = $region40
      $region39: #{mga_forward.15} parent=15 // pred_region
        %p453 = scmp.lt.s32.totalorder %s27, 1
        %s454 = scalar_select %p453, %s27, 1
        %s455 = scalar_lea.vmem %s5, %s454
      $region40: #{mga_forward.15} parent=15 // pred_fallthru
        _
      // Predicated region
      $region41: #{mga_forward.15} parent=15 // pred_check
        %p456 = pneg %p207
      $region42: #{mga_forward.15} parent=15 // pred_check_branch
        %458 = sbr.rel (%p456) target = $region44
      $region43: #{mga_forward.15} parent=15 // pred_region
        %p459 = scmp.lt.s32.totalorder %s27, 1
        %s460 = scalar_select %p459, %s27, 1
        %s461 = scalar_lea.vmem %s6, %s460
      $region44: #{mga_forward.15} parent=15 // pred_fallthru
        _
      // Predicated region
      $region45: #{mga_forward.15} parent=15 // pred_check
        %p462 = pneg %p233
      $region46: #{mga_forward.15} parent=15 // pred_check_branch
        %464 = sbr.rel (%p462) target = $region48
      $region47: #{mga_forward.15} parent=15 // pred_region
        %p465 = scmp.lt.s32.totalorder %s27, 1
        %s466 = scalar_select %p465, %s27, 1
        %s467 = scalar_lea.vmem %s7, %s466
      $region48: #{mga_forward.15} parent=15 // pred_fallthru
        _
      // Predicated region
      $region49: #{mga_forward.15} parent=15 // pred_check
        %p468 = pneg %p259
      $region50: #{mga_forward.15} parent=15 // pred_check_branch
        %470 = sbr.rel (%p468) target = $region52
      $region51: #{mga_forward.15} parent=15 // pred_region
        %p471 = scmp.lt.s32.totalorder %s27, 1
        %s472 = scalar_select %p471, %s27, 1
        %s473 = scalar_lea.vmem %s8, %s472
      $region52: #{mga_forward.15} parent=15 // pred_fallthru
        _
      // Predicated region
      $region53: #{mga_forward.15} parent=15 // pred_check
        %p474 = pneg %p285
      $region54: #{mga_forward.15} parent=15 // pred_check_branch
        %476 = sbr.rel (%p474) target = $region56
      $region55: #{mga_forward.15} parent=15 // pred_region
        %p477 = scmp.lt.s32.totalorder %s27, 1
        %s478 = scalar_select %p477, %s27, 1
        %s479 = smul.addr %s478, 16
        %s480 = smul.addr %s479, 4
        %s481 = scalar_lea.vmem %s9, %s480
      $region56: #{mga_forward.15} parent=15 // pred_fallthru
        _
      // Predicated region
      $region57: #{mga_forward.15} parent=15 // pred_check
        %p482 = pneg %p311
      $region58: #{mga_forward.15} parent=15 // pred_check_branch
        %484 = sbr.rel (%p482) target = $region60
      $region59: #{mga_forward.15} parent=15 // pred_region
        %p485 = scmp.lt.s32.totalorder %s27, 1
        %s486 = scalar_select %p485, %s27, 1
        %s487 = smul.addr %s486, 2
        %s488 = scalar_lea.vmem %s10, %s487
      $region60: #{mga_forward.15} parent=15 // pred_fallthru
        _
      // Predicated region
      $region61: #{mga_forward.15} parent=15 // pred_check
        %p489 = pneg %p337
      $region62: #{mga_forward.15} parent=15 // pred_check_branch
        %491 = sbr.rel (%p489) target = $region64
      $region63: #{mga_forward.15} parent=15 // pred_region
        %p492 = scmp.lt.s32.totalorder %s27, 1
        %s493 = scalar_select %p492, %s27, 1
        %s494 = smul.addr %s493, 32
        %s495 = smul.addr %s494, 4
        %s496 = scalar_lea.vmem %s11, %s495
      $region64: #{mga_forward.15} parent=15 // pred_fallthru
        _
      // Predicated region
      $region65: #{mga_forward.15} parent=15 // pred_check
        %p497 = pneg %p363
      $region66: #{mga_forward.15} parent=15 // pred_check_branch
        %499 = sbr.rel (%p497) target = $region68
      $region67: #{mga_forward.15} parent=15 // pred_region
        %p500 = scmp.lt.s32.totalorder %s27, 1
        %s501 = scalar_select %p500, %s27, 1
        %s502 = scalar_lea.vmem %s12, %s501
      $region68: #{mga_forward.15} parent=15 // pred_fallthru
        _
    $region16: #{mga_forward.15} parent=5 // pred_fallthru
      _
    %p503 = scmp.le.s32.totalorder 1, %s19
    %p504 = scmp.lt.s32.totalorder %s19, 5
    %p505 = pnand %p503, %p504
    %p506 = pneg %p505
    // Predicated region
    $region69: #{mga_forward.15} parent=5 // pred_check
      _
    $region70: #{mga_forward.15} parent=5 // pred_check_branch
      %508 = sbr.rel (%p505) target = $region72
    $region71: #{mga_forward.15} parent=5 // pred_region
      %s509 = ssub.s32 %s19, 1
      %p510 = scmp.lt.s32.totalorder %s28, 1
      %s511 = scalar_select %p510, %s28, 1
      %s512 = smul.addr %s511, 8
      %s513 = scalar_lea.vmem %s0, %s512
      %p514 = pneg %p57
      %p515 = pneg %p54
      %p516 = scmp.lt.s32.totalorder %s29, 1
      %s517 = scalar_select %p516, %s29, 1
      %s518 = smul.addr %s517, 16
      %s519 = smul.addr %s518, 4
      %s520 = scalar_lea.vmem %s1, %s519
      %p521 = pneg %p83
      %p522 = pneg %p80
      %p523 = scmp.lt.s32.totalorder %s29, 1
      %s524 = scalar_select %p523, %s29, 1
      %s525 = smul.addr %s524, 2
      %s526 = scalar_lea.vmem %s2, %s525
      %p527 = pneg %p109
      %p528 = pneg %p106
      %p529 = scmp.lt.s32.totalorder %s29, 1
      %s530 = scalar_select %p529, %s29, 1
      %s531 = smul.addr %s530, 8
      %s532 = smul.addr %s531, 4
      %s533 = scalar_lea.vmem %s3, %s532
      %p534 = pneg %p135
      %p535 = pneg %p132
      %p536 = scmp.lt.s32.totalorder %s29, 1
      %s537 = scalar_select %p536, %s29, 1
      %s538 = scalar_lea.vmem %s4, %s537
      %p539 = pneg %p161
      %p540 = pneg %p158
      %p541 = scmp.lt.s32.totalorder %s29, 1
      %s542 = scalar_select %p541, %s29, 1
      %s543 = scalar_lea.vmem %s5, %s542
      %p544 = pneg %p187
      %p545 = pneg %p184
      %p546 = scmp.lt.s32.totalorder %s29, 1
      %s547 = scalar_select %p546, %s29, 1
      %s548 = scalar_lea.vmem %s6, %s547
      %p549 = pneg %p213
      %p550 = pneg %p210
      %p551 = scmp.lt.s32.totalorder %s29, 1
      %s552 = scalar_select %p551, %s29, 1
      %s553 = scalar_lea.vmem %s7, %s552
      %p554 = pneg %p239
      %p555 = pneg %p236
      %p556 = scmp.lt.s32.totalorder %s29, 1
      %s557 = scalar_select %p556, %s29, 1
      %s558 = scalar_lea.vmem %s8, %s557
      %p559 = pneg %p265
      %p560 = pneg %p262
      %p561 = scmp.lt.s32.totalorder %s29, 1
      %s562 = scalar_select %p561, %s29, 1
      %s563 = smul.addr %s562, 16
      %s564 = smul.addr %s563, 4
      %s565 = scalar_lea.vmem %s9, %s564
      %p566 = pneg %p291
      %p567 = pneg %p288
      %p568 = scmp.lt.s32.totalorder %s29, 1
      %s569 = scalar_select %p568, %s29, 1
      %s570 = smul.addr %s569, 2
      %s571 = scalar_lea.vmem %s10, %s570
      %p572 = pneg %p317
      %p573 = pneg %p314
      %p574 = scmp.lt.s32.totalorder %s29, 1
      %s575 = scalar_select %p574, %s29, 1
      %s576 = smul.addr %s575, 32
      %s577 = smul.addr %s576, 4
      %s578 = scalar_lea.vmem %s11, %s577
      %p579 = pneg %p343
      %p580 = pneg %p340
      %p581 = scmp.lt.s32.totalorder %s29, 1
      %s582 = scalar_select %p581, %s29, 1
      %s583 = scalar_lea.vmem %s12, %s582
      %p584 = pneg %p369
      %p585 = pneg %p366
      %p586 = pneg %p395
      %p587 = pneg %p392
      %p588 = scmp.lt.s32.totalorder %s28, 1
      %s589 = scalar_select %p588, %s28, 1
      %s590 = smul.addr %s589, 8
      %s591 = scalar_lea.vmem %s13, %s590
      %p592 = scmp.lt.s32.totalorder %s28, 1
      %s593 = scalar_select %p592, %s28, 1
      %s594 = smul.addr %s593, 8
      %s595 = scalar_lea.vmem %s0, %s594
      %p596 = scmp.lt.s32.totalorder %s29, 1
      %s597 = scalar_select %p596, %s29, 1
      %s598 = smul.addr %s597, 16
      %s599 = smul.addr %s598, 4
      %s600 = scalar_lea.vmem %s1, %s599
      %p601 = scmp.lt.s32.totalorder %s29, 1
      %s602 = scalar_select %p601, %s29, 1
      %s603 = smul.addr %s602, 2
      %s604 = scalar_lea.vmem %s2, %s603
      %p605 = scmp.lt.s32.totalorder %s29, 1
      %s606 = scalar_select %p605, %s29, 1
      %s607 = smul.addr %s606, 8
      %s608 = smul.addr %s607, 4
      %s609 = scalar_lea.vmem %s3, %s608
      %p610 = scmp.lt.s32.totalorder %s29, 1
      %s611 = scalar_select %p610, %s29, 1
      %s612 = scalar_lea.vmem %s4, %s611
      %p613 = scmp.lt.s32.totalorder %s29, 1
      %s614 = scalar_select %p613, %s29, 1
      %s615 = scalar_lea.vmem %s5, %s614
      %p616 = scmp.lt.s32.totalorder %s29, 1
      %s617 = scalar_select %p616, %s29, 1
      %s618 = scalar_lea.vmem %s6, %s617
      %p619 = scmp.lt.s32.totalorder %s29, 1
      %s620 = scalar_select %p619, %s29, 1
      %s621 = scalar_lea.vmem %s7, %s620
      %p622 = scmp.lt.s32.totalorder %s29, 1
      %s623 = scalar_select %p622, %s29, 1
      %s624 = scalar_lea.vmem %s8, %s623
      %p625 = scmp.lt.s32.totalorder %s29, 1
      %s626 = scalar_select %p625, %s29, 1
      %s627 = smul.addr %s626, 16
      %s628 = smul.addr %s627, 4
      %s629 = scalar_lea.vmem %s9, %s628
      %p630 = scmp.lt.s32.totalorder %s29, 1
      %s631 = scalar_select %p630, %s29, 1
      %s632 = smul.addr %s631, 2
      %s633 = scalar_lea.vmem %s10, %s632
      %p634 = scmp.lt.s32.totalorder %s29, 1
      %s635 = scalar_select %p634, %s29, 1
      %s636 = smul.addr %s635, 32
      %s637 = smul.addr %s636, 4
      %s638 = scalar_lea.vmem %s11, %s637
      %p639 = scmp.lt.s32.totalorder %s29, 1
      %s640 = scalar_select %p639, %s29, 1
      %s641 = scalar_lea.vmem %s12, %s640
      %p642 = scmp.lt.s32.totalorder %s28, 1
      %s643 = scalar_select %p642, %s28, 1
      %s644 = smul.addr %s643, 8
      %s645 = scalar_lea.vmem %s13, %s644
      %p647 = scmp.eq.s32.totalorder %s29, 0
      // Predicated region
      $region73: #{mga_forward.15} parent=71 // pred_check
        %p648 = pneg %p647
      $region74: #{mga_forward.15} parent=71 // pred_check_branch
        %650 = sbr.rel (%p648) target = $region76
      $region75: #{mga_forward.15} parent=71 // pred_region
        %v651 = vld [vmem:[%s595] sm:$0x1f]
        %vm652 = vcmask 520192
        %653 = vst.msk [vmem:[#allocation2] sm:$0x1f] %vm652, %v651
      $region76: #{mga_forward.15} parent=71 // pred_fallthru
        _
      %v654 = vld [vmem:[#allocation2] sm:$0x1f]
      %v655 = vld [vmem:[%s615] sm:$0x1]
      %v656 = vld [vmem:[%s618] sm:$0x1]
      %vm657 = vcmask 520192
      %v658 = vsel %vm657, %v654, 0.0
      %659 = vadd.xlane.f32.xlu0 %v658
      %v660 = vpop.xlane.xlu0 %659
      %v661 = vrcp.pop 64.0
      %v662 = vmul.f32 %v660, %v661
      %v663 = vsub.f32 %v654, %v662
      %v664 = vmul.f32 %v663, %v663
      %v665 = vsel %vm657, %v664, 0.0
      %666 = vadd.xlane.f32.xlu0 %v665
      %v667 = vpop.xlane.xlu0 %666
      %v668 = vmul.f32 %v667, %v661
      %v669 = vadd.f32 %v668, 1e-05
      %v670 = vrsqrt.pop %v669
      %v671 = vmul.f32 %v663, %v670
      %v673 = vlaneseq
      %v674 = vshrl.u32 %v673, 7
      %v675 = vsub.s32 0, %v674
      %v676 = vrot.slane %v655, %v675
      %v678 = vmul.f32 %v671, %v676
      %v680 = vlaneseq
      %v681 = vshrl.u32 %v680, 7
      %v682 = vsub.s32 0, %v681
      %v683 = vrot.slane %v656, %v682
      %v685 = vadd.f32 %v678, %v683
      %v686 = vpack.c.bf16 %v685, %v685
      %v687 = vld [vmem:[%s600] sm:$0xff]
      %v688 = vld [vmem:[%s600 + $0x8] sm:$0xff]
      %v689 = vld [vmem:[%s600 + $0x10] sm:$0xff]
      %v690 = vld [vmem:[%s600 + $0x18] sm:$0xff]
      %v691 = vld [vmem:[%s600 + $0x20] sm:$0xff]
      %v692 = vld [vmem:[%s600 + $0x28] sm:$0xff]
      %v693 = vld [vmem:[%s600 + $0x30] sm:$0xff]
      %v694 = vld [vmem:[%s600 + $0x38] sm:$0xff]
      %v695 = vld [vmem:[%s604] sm:$0x3]
      %v697 = vlaneseq
      %v698 = vshrl.u32 %v697, 7
      %v699 = vsub.s32 0, %v698
      %v700 = vrot.slane %v695, %v699
      %v701 = vlaneseq
      %v702 = vshrl.u32 %v701, 7
      %v703 = vsub.s32 1, %v702
      %v704 = vrot.slane %v695, %v703
      %v715 = vunpack.c.l.b16 %v687
      %v716 = vunpack.c.h.b16 %v687
      %v717 = vunpack.c.l.b16 %v688
      %v718 = vunpack.c.h.b16 %v688
      %v719 = vunpack.c.l.b16 %v689
      %v720 = vunpack.c.h.b16 %v689
      %v721 = vunpack.c.l.b16 %v690
      %v722 = vunpack.c.h.b16 %v690
      %v723 = vunpack.c.l.b16 %v691
      %v724 = vunpack.c.h.b16 %v691
      %v725 = vunpack.c.l.b16 %v692
      %v726 = vunpack.c.h.b16 %v692
      %v727 = vunpack.c.l.b16 %v693
      %v728 = vunpack.c.h.b16 %v693
      %v729 = vunpack.c.l.b16 %v694
      %v730 = vunpack.c.h.b16 %v694
      %v731 = vpack.c.b16 %v717, %v715
      %v732 = vpack.c.b16 %v718, %v716
      %v733 = vpack.c.b16 %v721, %v719
      %v734 = vpack.c.b16 %v722, %v720
      %v735 = vpack.c.b16 %v725, %v723
      %v736 = vpack.c.b16 %v726, %v724
      %v737 = vpack.c.b16 %v729, %v727
      %v738 = vpack.c.b16 %v730, %v728
      %vm747 = vcmask 523264
      %v749 = vsel %vm747, %v686, 0
      %751 = vmatprep.subr.bf16.mxu0 %v732
      %752 = vmatpush1.bf16.msra.mxu0 %v731
      %753 = vmatprep.subr.bf16.mxu0 %v734
      %754 = vmatpush1.bf16.msra.mxu0 %v733
      %755 = vmatprep.subr.bf16.mxu0 %v736
      %756 = vmatpush1.bf16.msra.mxu0 %v735
      %757 = vmatprep.subr.bf16.mxu0 %v738
      %758 = vmatpush1.bf16.msra.mxu0 %v737
      %759 = vmatprep.subr.bf16.mxu0 0
      %760 = vmatpush1.bf16.msra.mxu0 0
      %761 = vmatprep.subr.bf16.mxu0 0
      %762 = vmatpush1.bf16.msra.mxu0 0
      %763 = vmatprep.subr.bf16.mxu0 0
      %764 = vmatpush1.bf16.msra.mxu0 0
      %765 = vmatprep.subr.bf16.mxu0 0
      %766 = vmatpush1.bf16.msra.mxu0 0
      %767 = vmatprep.subr.bf16.mxu0 0
      %768 = vmatpush1.bf16.msra.mxu0 0
      %769 = vmatprep.subr.bf16.mxu0 0
      %770 = vmatpush1.bf16.msra.mxu0 0
      %771 = vmatprep.subr.bf16.mxu0 0
      %772 = vmatpush1.bf16.msra.mxu0 0
      %773 = vmatprep.subr.bf16.mxu0 0
      %774 = vmatpush1.bf16.msra.mxu0 0
      %775 = vmatprep.subr.bf16.mxu0 0
      %776 = vmatpush1.bf16.msra.mxu0 0
      %777 = vmatprep.subr.bf16.mxu0 0
      %778 = vmatpush1.bf16.msra.mxu0 0
      %779 = vmatprep.subr.bf16.mxu0 0
      %780 = vmatpush1.bf16.msra.mxu0 0
      %781 = vmatprep.subr.bf16.mxu0 0
      %782 = vmatpush1.bf16.msra.mxu0 0
      %783 = vmatprep.mubr.bf16.mxu0 0
      %784 = vmatmul.mubr.bf16.gmra.mrb[0].mxu0 %v749
      %v785 = vpop.f32.mrb[0].mxu0
      %v786 = vadd.f32 %v700, %v785
      %v787 = vpop.f32.mrb[0].mxu0
      %v788 = vadd.f32 %v704, %v787
      %v789 = vpop.f32.mrb[0].mxu0
      %v790 = vpop.f32.mrb[0].mxu0
      %791 = vdwg.mxu0
      %v792 = vpack.c.bf16 %v786, %v786
      %v793 = vpack.c.bf16 %v788, %v788
      %v796 = vunpack.c.l.b16 %v792
      %v797 = vunpack.c.l.b16 %v793
      %v798 = vpack.c.b16 %v797, %v796
      %vm800 = vcmask 1042432
      %vm801 = vsmask.f32 2304
      %vm802 = vmand %vm800, %vm801
      %vm803 = vcmask 522244
      %vm804 = vsmask.f32 6400
      %vm805 = vmand %vm803, %vm804
      %vm806 = vmor %vm805, %vm802
      %v807 = vld [vmem:[#allocation3] sm:$0x77]
      %v808 = vsel %vm806, %v798, %v807
      %809 = vst [vmem:[#allocation3] sm:$0x77] %v808
      %v810 = vld [vmem:[#allocation3] sm:$0x7]
      %v811 = vld [vmem:[#allocation3 + $0x4] sm:$0x7]
      %v813 = vunpack.c.l.b16 %v810
      %v814 = vpack.c.b16 %v813, %v813
      %815 = vrot.lane.b32.xlu0 %v814, 64
      %v816 = vpop.permute.xlu0 %815
      %v818 = vsel %vm747, %v810, 0
      %v821 = vsel %vm747, %v816, 0
      %823 = vmatprep.subr.bf16.mxu0 0
      %824 = vmatpush1.bf16.xpose.msra.mxu0 %v821
      %825 = vmatprep.subr.bf16.mxu0 0
      %826 = vmatpush1.bf16.xpose.msra.mxu0 0
      %827 = vmatprep.subr.bf16.mxu0 0
      %828 = vmatpush1.bf16.xpose.msra.mxu0 0
      %829 = vmatprep.subr.bf16.mxu0 0
      %830 = vmatpush1.bf16.xpose.msra.mxu0 0
      %831 = vmatprep.subr.bf16.mxu0 0
      %832 = vmatpush1.bf16.xpose.msra.mxu0 0
      %833 = vmatprep.subr.bf16.mxu0 0
      %834 = vmatpush1.bf16.xpose.msra.mxu0 0
      %835 = vmatprep.subr.bf16.mxu0 0
      %836 = vmatpush1.bf16.xpose.msra.mxu0 0
      %837 = vmatprep.subr.bf16.mxu0 0
      %838 = vmatpush1.bf16.xpose.msra.mxu0 0
      %839 = vmatprep.subr.bf16.mxu0 0
      %840 = vmatpush1.bf16.xpose.msra.mxu0 0
      %841 = vmatprep.subr.bf16.mxu0 0
      %842 = vmatpush1.bf16.xpose.msra.mxu0 0
      %843 = vmatprep.subr.bf16.mxu0 0
      %844 = vmatpush1.bf16.xpose.msra.mxu0 0
      %845 = vmatprep.subr.bf16.mxu0 0
      %846 = vmatpush1.bf16.xpose.msra.mxu0 0
      %847 = vmatprep.subr.bf16.mxu0 0
      %848 = vmatpush1.bf16.xpose.msra.mxu0 0
      %849 = vmatprep.subr.bf16.mxu0 0
      %850 = vmatpush1.bf16.xpose.msra.mxu0 0
      %851 = vmatprep.subr.bf16.mxu0 0
      %852 = vmatpush1.bf16.xpose.msra.mxu0 0
      %853 = vmatprep.subr.bf16.mxu0 0
      %854 = vmatpush1.bf16.xpose.msra.mxu0 0
      %855 = vmatprep.mubr.bf16.mxu0 0
      %856 = vmatmul.mubr.bf16.gmra.mrb[0].mxu0 %v818
      %v857 = vpop.f32.mrb[0].mxu0
      %v858 = vadd.f32 0.0, %v857
      %v859 = vpop.f32.mrb[0].mxu0
      %v860 = vpop.f32.mrb[0].mxu0
      %v861 = vpop.f32.mrb[0].mxu0
      %862 = vdwg.mxu0
      %v863 = vmul.f32 %v858, 0.125
      %vm864 = vcmask 36864
      %v865 = vsel %vm864, %v863, -inf
      %866 = vmax.xlane.f32.xlu0 %v865
      %v867 = vpop.xlane.xlu0 %866
      %v868 = vsub.f32 %v863, %v867
      %v869 = vmul.f32 %v868, 1.442695
      %v870 = vpow.pop %v869
      %v871 = vsel %vm864, %v870, 0.0
      %872 = vadd.xlane.f32.xlu0 %v871
      %v873 = vpop.xlane.xlu0 %872
      %v874 = vrcp.pop %v873
      %v875 = vmul.f32 %v870, %v874
      %v876 = vpack.c.bf16 %v875, %v875
      %vm877 = vcmask 39936
      %v879 = vsel %vm877, %v876, 0
      %vm881 = vcmask 1041408
      %vm882 = vcmask 1042432
      %v883 = vsel %vm881, 4294967295, 65535
      %v884 = vsel %vm882, %v883, 0
      %v886 = vand.u32 %v811, %v884
      %888 = vmatprep.subr.bf16.mxu0 0
      %889 = vmatpush1.bf16.msra.mxu0 %v886
      %890 = vmatprep.subr.bf16.mxu0 0
      %891 = vmatpush1.bf16.msra.mxu0 0
      %892 = vmatprep.subr.bf16.mxu0 0
      %893 = vmatpush1.bf16.msra.mxu0 0
      %894 = vmatprep.subr.bf16.mxu0 0
      %895 = vmatpush1.bf16.msra.mxu0 0
      %896 = vmatprep.subr.bf16.mxu0 0
      %897 = vmatpush1.bf16.msra.mxu0 0
      %898 = vmatprep.subr.bf16.mxu0 0
      %899 = vmatpush1.bf16.msra.mxu0 0
      %900 = vmatprep.subr.bf16.mxu0 0
      %901 = vmatpush1.bf16.msra.mxu0 0
      %902 = vmatprep.subr.bf16.mxu0 0
      %903 = vmatpush1.bf16.msra.mxu0 0
      %904 = vmatprep.subr.bf16.mxu0 0
      %905 = vmatpush1.bf16.msra.mxu0 0
      %906 = vmatprep.subr.bf16.mxu0 0
      %907 = vmatpush1.bf16.msra.mxu0 0
      %908 = vmatprep.subr.bf16.mxu0 0
      %909 = vmatpush1.bf16.msra.mxu0 0
      %910 = vmatprep.subr.bf16.mxu0 0
      %911 = vmatpush1.bf16.msra.mxu0 0
      %912 = vmatprep.subr.bf16.mxu0 0
      %913 = vmatpush1.bf16.msra.mxu0 0
      %914 = vmatprep.subr.bf16.mxu0 0
      %915 = vmatpush1.bf16.msra.mxu0 0
      %916 = vmatprep.subr.bf16.mxu0 0
      %917 = vmatpush1.bf16.msra.mxu0 0
      %918 = vmatprep.subr.bf16.mxu0 0
      %919 = vmatpush1.bf16.msra.mxu0 0
      %920 = vmatprep.mubr.bf16.mxu0 0
      %921 = vmatmul.mubr.bf16.gmra.mrb[0].mxu0 %v879
      %v922 = vpop.f32.mrb[0].mxu0
      %v923 = vadd.f32 0.0, %v922
      %v924 = vpop.f32.mrb[0].mxu0
      %v925 = vpop.f32.mrb[0].mxu0
      %v926 = vpop.f32.mrb[0].mxu0
      %927 = vdwg.mxu0
      %v928 = vpack.c.bf16 %v923, %v923
      %vm929 = vcmask 518144
      %vm930 = vmand %vm929, %vm801
      %v931 = vld [vmem:[#allocation4] sm:$0x7]
      %v932 = vsel %vm930, %v928, %v931
      %933 = vst [vmem:[#allocation4] sm:$0x7] %v932
      %v934 = vld [vmem:[#allocation4] sm:$0x7]
      %v935 = vld [vmem:[%s609] sm:$0xf]
      %v936 = vld [vmem:[%s609 + $0x4] sm:$0xf]
      %v937 = vld [vmem:[%s609 + $0x8] sm:$0xf]
      %v938 = vld [vmem:[%s609 + $0xc] sm:$0xf]
      %v939 = vld [vmem:[%s609 + $0x10] sm:$0xf]
      %v940 = vld [vmem:[%s609 + $0x14] sm:$0xf]
      %v941 = vld [vmem:[%s609 + $0x18] sm:$0xf]
      %v942 = vld [vmem:[%s609 + $0x1c] sm:$0xf]
      %v943 = vld [vmem:[%s612] sm:$0x1]
      %v945 = vlaneseq
      %v946 = vshrl.u32 %v945, 7
      %v947 = vsub.s32 0, %v946
      %v948 = vrot.slane %v943, %v947
      %v958 = vunpack.c.l.b16 %v935
      %v959 = vunpack.c.l.b16 %v936
      %v960 = vunpack.c.l.b16 %v937
      %v961 = vunpack.c.l.b16 %v938
      %v962 = vunpack.c.l.b16 %v939
      %v963 = vunpack.c.l.b16 %v940
      %v964 = vunpack.c.l.b16 %v941
      %v965 = vunpack.c.l.b16 %v942
      %v966 = vpack.c.b16 %v959, %v958
      %v967 = vpack.c.b16 %v961, %v960
      %v968 = vpack.c.b16 %v963, %v962
      %v969 = vpack.c.b16 %v965, %v964
      %v975 = vsel %vm747, %v934, 0
      %977 = vmatprep.subr.bf16.mxu0 0
      %978 = vmatpush1.bf16.msra.mxu0 %v966
      %979 = vmatprep.subr.bf16.mxu0 0
      %980 = vmatpush1.bf16.msra.mxu0 %v967
      %981 = vmatprep.subr.bf16.mxu0 0
      %982 = vmatpush1.bf16.msra.mxu0 %v968
      %983 = vmatprep.subr.bf16.mxu0 0
      %984 = vmatpush1.bf16.msra.mxu0 %v969
      %985 = vmatprep.subr.bf16.mxu0 0
      %986 = vmatpush1.bf16.msra.mxu0 0
      %987 = vmatprep.subr.bf16.mxu0 0
      %988 = vmatpush1.bf16.msra.mxu0 0
      %989 = vmatprep.subr.bf16.mxu0 0
      %990 = vmatpush1.bf16.msra.mxu0 0
      %991 = vmatprep.subr.bf16.mxu0 0
      %992 = vmatpush1.bf16.msra.mxu0 0
      %993 = vmatprep.subr.bf16.mxu0 0
      %994 = vmatpush1.bf16.msra.mxu0 0
      %995 = vmatprep.subr.bf16.mxu0 0
      %996 = vmatpush1.bf16.msra.mxu0 0
      %997 = vmatprep.subr.bf16.mxu0 0
      %998 = vmatpush1.bf16.msra.mxu0 0
      %999 = vmatprep.subr.bf16.mxu0 0
      %1000 = vmatpush1.bf16.msra.mxu0 0
      %1001 = vmatprep.subr.bf16.mxu0 0
      %1002 = vmatpush1.bf16.msra.mxu0 0
      %1003 = vmatprep.subr.bf16.mxu0 0
      %1004 = vmatpush1.bf16.msra.mxu0 0
      %1005 = vmatprep.subr.bf16.mxu0 0
      %1006 = vmatpush1.bf16.msra.mxu0 0
      %1007 = vmatprep.subr.bf16.mxu0 0
      %1008 = vmatpush1.bf16.msra.mxu0 0
      %1009 = vmatprep.mubr.bf16.mxu0 0
      %1010 = vmatmul.mubr.bf16.gmra.mrb[0].mxu0 %v975
      %v1011 = vpop.f32.mrb[0].mxu0
      %v1012 = vadd.f32 %v948, %v1011
      %v1013 = vpop.f32.mrb[0].mxu0
      %v1014 = vpop.f32.mrb[0].mxu0
      %v1015 = vpop.f32.mrb[0].mxu0
      %1016 = vdwg.mxu0
      %v1017 = vadd.f32 %v654, %v1012
      %v1018 = vld [vmem:[%s621] sm:$0x1]
      %v1019 = vld [vmem:[%s624] sm:$0x1]
      %v1020 = vsel %vm657, %v1017, 0.0
      %1021 = vadd.xlane.f32.xlu0 %v1020
      %v1022 = vpop.xlane.xlu0 %1021
      %v1023 = vmul.f32 %v1022, %v661
      %v1024 = vsub.f32 %v1017, %v1023
      %v1025 = vmul.f32 %v1024, %v1024
      %v1026 = vsel %vm657, %v1025, 0.0
      %1027 = vadd.xlane.f32.xlu0 %v1026
      %v1028 = vpop.xlane.xlu0 %1027
      %v1029 = vmul.f32 %v1028, %v661
      %v1030 = vadd.f32 %v1029, 1e-05
      %v1031 = vrsqrt.pop %v1030
      %v1032 = vmul.f32 %v1024, %v1031
      %v1034 = vlaneseq
      %v1035 = vshrl.u32 %v1034, 7
      %v1036 = vsub.s32 0, %v1035
      %v1037 = vrot.slane %v1018, %v1036
      %v1039 = vmul.f32 %v1032, %v1037
      %v1041 = vlaneseq
      %v1042 = vshrl.u32 %v1041, 7
      %v1043 = vsub.s32 0, %v1042
      %v1044 = vrot.slane %v1019, %v1043
      %v1046 = vadd.f32 %v1039, %v1044
      %v1047 = vpack.c.bf16 %v1046, %v1046
      %v1048 = vld [vmem:[%s629] sm:$0xff]
      %v1049 = vld [vmem:[%s629 + $0x8] sm:$0xff]
      %v1050 = vld [vmem:[%s629 + $0x10] sm:$0xff]
      %v1051 = vld [vmem:[%s629 + $0x18] sm:$0xff]
      %v1052 = vld [vmem:[%s629 + $0x20] sm:$0xff]
      %v1053 = vld [vmem:[%s629 + $0x28] sm:$0xff]
      %v1054 = vld [vmem:[%s629 + $0x30] sm:$0xff]
      %v1055 = vld [vmem:[%s629 + $0x38] sm:$0xff]
      %v1056 = vld [vmem:[%s633] sm:$0x3]
      %v1058 = vlaneseq
      %v1059 = vshrl.u32 %v1058, 7
      %v1060 = vsub.s32 0, %v1059
      %v1061 = vrot.slane %v1056, %v1060
      %v1062 = vlaneseq
      %v1063 = vshrl.u32 %v1062, 7
      %v1064 = vsub.s32 1, %v1063
      %v1065 = vrot.slane %v1056, %v1064
      %v1076 = vunpack.c.l.b16 %v1048
      %v1077 = vunpack.c.h.b16 %v1048
      %v1078 = vunpack.c.l.b16 %v1049
      %v1079 = vunpack.c.h.b16 %v1049
      %v1080 = vunpack.c.l.b16 %v1050
      %v1081 = vunpack.c.h.b16 %v1050
      %v1082 = vunpack.c.l.b16 %v1051
      %v1083 = vunpack.c.h.b16 %v1051
      %v1084 = vunpack.c.l.b16 %v1052
      %v1085 = vunpack.c.h.b16 %v1052
      %v1086 = vunpack.c.l.b16 %v1053
      %v1087 = vunpack.c.h.b16 %v1053
      %v1088 = vunpack.c.l.b16 %v1054
      %v1089 = vunpack.c.h.b16 %v1054
      %v1090 = vunpack.c.l.b16 %v1055
      %v1091 = vunpack.c.h.b16 %v1055
      %v1092 = vpack.c.b16 %v1078, %v1076
      %v1093 = vpack.c.b16 %v1079, %v1077
      %v1094 = vpack.c.b16 %v1082, %v1080
      %v1095 = vpack.c.b16 %v1083, %v1081
      %v1096 = vpack.c.b16 %v1086, %v1084
      %v1097 = vpack.c.b16 %v1087, %v1085
      %v1098 = vpack.c.b16 %v1090, %v1088
      %v1099 = vpack.c.b16 %v1091, %v1089
      %v1109 = vsel %vm747, %v1047, 0
      %1111 = vmatprep.subr.bf16.mxu0 %v1093
      %1112 = vmatpush1.bf16.msra.mxu0 %v1092
      %1113 = vmatprep.subr.bf16.mxu0 %v1095
      %1114 = vmatpush1.bf16.msra.mxu0 %v1094
      %1115 = vmatprep.subr.bf16.mxu0 %v1097
      %1116 = vmatpush1.bf16.msra.mxu0 %v1096
      %1117 = vmatprep.subr.bf16.mxu0 %v1099
      %1118 = vmatpush1.bf16.msra.mxu0 %v1098
      %1119 = vmatprep.subr.bf16.mxu0 0
      %1120 = vmatpush1.bf16.msra.mxu0 0
      %1121 = vmatprep.subr.bf16.mxu0 0
      %1122 = vmatpush1.bf16.msra.mxu0 0
      %1123 = vmatprep.subr.bf16.mxu0 0
      %1124 = vmatpush1.bf16.msra.mxu0 0
      %1125 = vmatprep.subr.bf16.mxu0 0
      %1126 = vmatpush1.bf16.msra.mxu0 0
      %1127 = vmatprep.subr.bf16.mxu0 0
      %1128 = vmatpush1.bf16.msra.mxu0 0
      %1129 = vmatprep.subr.bf16.mxu0 0
      %1130 = vmatpush1.bf16.msra.mxu0 0
      %1131 = vmatprep.subr.bf16.mxu0 0
      %1132 = vmatpush1.bf16.msra.mxu0 0
      %1133 = vmatprep.subr.bf16.mxu0 0
      %1134 = vmatpush1.bf16.msra.mxu0 0
      %1135 = vmatprep.subr.bf16.mxu0 0
      %1136 = vmatpush1.bf16.msra.mxu0 0
      %1137 = vmatprep.subr.bf16.mxu0 0
      %1138 = vmatpush1.bf16.msra.mxu0 0
      %1139 = vmatprep.subr.bf16.mxu0 0
      %1140 = vmatpush1.bf16.msra.mxu0 0
      %1141 = vmatprep.subr.bf16.mxu0 0
      %1142 = vmatpush1.bf16.msra.mxu0 0
      %1143 = vmatprep.mubr.bf16.mxu0 0
      %1144 = vmatmul.mubr.bf16.gmra.mrb[0].mxu0 %v1109
      %v1145 = vpop.f32.mrb[0].mxu0
      %v1146 = vadd.f32 %v1061, %v1145
      %v1147 = vpop.f32.mrb[0].mxu0
      %v1148 = vadd.f32 %v1065, %v1147
      %v1149 = vpop.f32.mrb[0].mxu0
      %v1150 = vpop.f32.mrb[0].mxu0
      %1151 = vdwg.mxu0
      %v1152 = vmul.f32 %v1146, 1.702
      %v1153 = vmul.f32 %v1148, 1.702
      %v1154 = vxor.u32 %v1152, 2147483648
      %v1155 = vxor.u32 %v1153, 2147483648
      %v1156 = vmul.f32 %v1154, 1.442695
      %v1157 = vpow.pop %v1156
      %v1158 = vmul.f32 %v1155, 1.442695
      %v1159 = vpow.pop %v1158
      %v1160 = vadd.f32 %v1157, 1.0
      %v1161 = vadd.f32 %v1159, 1.0
      %v1162 = vrcp.pop %v1160
      %v1163 = vmul.f32 1.0, %v1162
      %v1164 = vrcp.pop %v1161
      %v1165 = vmul.f32 1.0, %v1164
      %v1166 = vmul.f32 %v1146, %v1163
      %v1167 = vmul.f32 %v1148, %v1165
      %v1168 = vpack.c.bf16 %v1166, %v1166
      %v1169 = vpack.c.bf16 %v1167, %v1167
      %v1170 = vld [vmem:[%s638] sm:$0xf]
      %v1171 = vld [vmem:[%s638 + $0x4] sm:$0xf]
      %v1172 = vld [vmem:[%s638 + $0x8] sm:$0xf]
      %v1173 = vld [vmem:[%s638 + $0xc] sm:$0xf]
      %v1174 = vld [vmem:[%s638 + $0x10] sm:$0xf]
      %v1175 = vld [vmem:[%s638 + $0x14] sm:$0xf]
      %v1176 = vld [vmem:[%s638 + $0x18] sm:$0xf]
      %v1177 = vld [vmem:[%s638 + $0x1c] sm:$0xf]
      %v1178 = vld [vmem:[%s638 + $0x20] sm:$0xf]
      %v1179 = vld [vmem:[%s638 + $0x24] sm:$0xf]
      %v1180 = vld [vmem:[%s638 + $0x28] sm:$0xf]
      %v1181 = vld [vmem:[%s638 + $0x2c] sm:$0xf]
      %v1182 = vld [vmem:[%s638 + $0x30] sm:$0xf]
      %v1183 = vld [vmem:[%s638 + $0x34] sm:$0xf]
      %v1184 = vld [vmem:[%s638 + $0x38] sm:$0xf]
      %v1185 = vld [vmem:[%s638 + $0x3c] sm:$0xf]
      %v1186 = vld [vmem:[%s638 + $0x40] sm:$0xf]
      %v1187 = vld [vmem:[%s638 + $0x44] sm:$0xf]
      %v1188 = vld [vmem:[%s638 + $0x48] sm:$0xf]
      %v1189 = vld [vmem:[%s638 + $0x4c] sm:$0xf]
      %v1190 = vld [vmem:[%s638 + $0x50] sm:$0xf]
      %v1191 = vld [vmem:[%s638 + $0x54] sm:$0xf]
      %v1192 = vld [vmem:[%s638 + $0x58] sm:$0xf]
      %v1193 = vld [vmem:[%s638 + $0x5c] sm:$0xf]
      %v1194 = vld [vmem:[%s638 + $0x60] sm:$0xf]
      %v1195 = vld [vmem:[%s638 + $0x64] sm:$0xf]
      %v1196 = vld [vmem:[%s638 + $0x68] sm:$0xf]
      %v1197 = vld [vmem:[%s638 + $0x6c] sm:$0xf]
      %v1198 = vld [vmem:[%s638 + $0x70] sm:$0xf]
      %v1199 = vld [vmem:[%s638 + $0x74] sm:$0xf]
      %v1200 = vld [vmem:[%s638 + $0x78] sm:$0xf]
      %v1201 = vld [vmem:[%s638 + $0x7c] sm:$0xf]
      %v1234 = vunpack.c.l.b16 %v1170
      %v1235 = vunpack.c.l.b16 %v1171
      %v1236 = vunpack.c.l.b16 %v1172
      %v1237 = vunpack.c.l.b16 %v1173
      %v1238 = vunpack.c.l.b16 %v1174
      %v1239 = vunpack.c.l.b16 %v1175
      %v1240 = vunpack.c.l.b16 %v1176
      %v1241 = vunpack.c.l.b16 %v1177
      %v1242 = vunpack.c.l.b16 %v1178
      %v1243 = vunpack.c.l.b16 %v1179
      %v1244 = vunpack.c.l.b16 %v1180
      %v1245 = vunpack.c.l.b16 %v1181
      %v1246 = vunpack.c.l.b16 %v1182
      %v1247 = vunpack.c.l.b16 %v1183
      %v1248 = vunpack.c.l.b16 %v1184
      %v1249 = vunpack.c.l.b16 %v1185
      %v1250 = vunpack.c.l.b16 %v1186
      %v1251 = vunpack.c.l.b16 %v1187
      %v1252 = vunpack.c.l.b16 %v1188
      %v1253 = vunpack.c.l.b16 %v1189
      %v1254 = vunpack.c.l.b16 %v1190
      %v1255 = vunpack.c.l.b16 %v1191
      %v1256 = vunpack.c.l.b16 %v1192
      %v1257 = vunpack.c.l.b16 %v1193
      %v1258 = vunpack.c.l.b16 %v1194
      %v1259 = vunpack.c.l.b16 %v1195
      %v1260 = vunpack.c.l.b16 %v1196
      %v1261 = vunpack.c.l.b16 %v1197
      %v1262 = vunpack.c.l.b16 %v1198
      %v1263 = vunpack.c.l.b16 %v1199
      %v1264 = vunpack.c.l.b16 %v1200
      %v1265 = vunpack.c.l.b16 %v1201
      %v1266 = vpack.c.b16 %v1235, %v1234
      %v1267 = vpack.c.b16 %v1237, %v1236
      %v1268 = vpack.c.b16 %v1239, %v1238
      %v1269 = vpack.c.b16 %v1241, %v1240
      %v1270 = vpack.c.b16 %v1243, %v1242
      %v1271 = vpack.c.b16 %v1245, %v1244
      %v1272 = vpack.c.b16 %v1247, %v1246
      %v1273 = vpack.c.b16 %v1249, %v1248
      %v1274 = vpack.c.b16 %v1251, %v1250
      %v1275 = vpack.c.b16 %v1253, %v1252
      %v1276 = vpack.c.b16 %v1255, %v1254
      %v1277 = vpack.c.b16 %v1257, %v1256
      %v1278 = vpack.c.b16 %v1259, %v1258
      %v1279 = vpack.c.b16 %v1261, %v1260
      %v1280 = vpack.c.b16 %v1263, %v1262
      %v1281 = vpack.c.b16 %v1265, %v1264
      %1298 = vmatprep.subr.bf16.mxu0 0
      %1299 = vmatpush1.bf16.msra.mxu0 %v1266
      %1300 = vmatprep.subr.bf16.mxu0 0
      %1301 = vmatpush1.bf16.msra.mxu0 %v1267
      %1302 = vmatprep.subr.bf16.mxu0 0
      %1303 = vmatpush1.bf16.msra.mxu0 %v1268
      %1304 = vmatprep.subr.bf16.mxu0 0
      %1305 = vmatpush1.bf16.msra.mxu0 %v1269
      %1306 = vmatprep.subr.bf16.mxu0 0
      %1307 = vmatpush1.bf16.msra.mxu0 %v1270
      %1308 = vmatprep.subr.bf16.mxu0 0
      %1309 = vmatpush1.bf16.msra.mxu0 %v1271
      %1310 = vmatprep.subr.bf16.mxu0 0
      %1311 = vmatpush1.bf16.msra.mxu0 %v1272
      %1312 = vmatprep.subr.bf16.mxu0 0
      %1313 = vmatpush1.bf16.msra.mxu0 %v1273
      %1314 = vmatprep.subr.bf16.mxu0 0
      %1315 = vmatpush1.bf16.msra.mxu0 %v1274
      %1316 = vmatprep.subr.bf16.mxu0 0
      %1317 = vmatpush1.bf16.msra.mxu0 %v1275
      %1318 = vmatprep.subr.bf16.mxu0 0
      %1319 = vmatpush1.bf16.msra.mxu0 %v1276
      %1320 = vmatprep.subr.bf16.mxu0 0
      %1321 = vmatpush1.bf16.msra.mxu0 %v1277
      %1322 = vmatprep.subr.bf16.mxu0 0
      %1323 = vmatpush1.bf16.msra.mxu0 %v1278
      %1324 = vmatprep.subr.bf16.mxu0 0
      %1325 = vmatpush1.bf16.msra.mxu0 %v1279
      %1326 = vmatprep.subr.bf16.mxu0 0
      %1327 = vmatpush1.bf16.msra.mxu0 %v1280
      %1328 = vmatprep.subr.bf16.mxu0 0
      %1329 = vmatpush1.bf16.msra.mxu0 %v1281
      %1330 = vmatprep.mubr.bf16.mxu0 %v1169
      %1331 = vmatmul.mubr.bf16.gmra.mrb[0].mxu0 %v1168
      %v1332 = vpop.f32.mrb[0].mxu0
      %v1333 = vadd.f32 0.0, %v1332
      %v1334 = vpop.f32.mrb[0].mxu0
      %v1335 = vpop.f32.mrb[0].mxu0
      %v1336 = vpop.f32.mrb[0].mxu0
      %1337 = vdwg.mxu0
      %v1338 = vadd.f32 %v1017, %v1333
      %v1339 = vld [vmem:[%s641] sm:$0x1]
      %v1341 = vlaneseq
      %v1342 = vshrl.u32 %v1341, 7
      %v1343 = vsub.s32 0, %v1342
      %v1344 = vrot.slane %v1339, %v1343
      %v1346 = vadd.f32 %v1338, %v1344
      %1347 = vst.msk [vmem:[#allocation2] sm:$0x1f] %vm657, %v1346
      %p1348 = scmp.eq.s32.totalorder %s29, 1
      // Predicated region
      $region77: #{mga_forward.15} parent=71 // pred_check
        %p1349 = pneg %p1348
      $region78: #{mga_forward.15} parent=71 // pred_check_branch
        %1351 = sbr.rel (%p1349) target = $region80
      $region79: #{mga_forward.15} parent=71 // pred_region
        %1352 = vst.msk [vmem:[%s645] sm:$0x1f] %vm657, %v1346
      $region80: #{mga_forward.15} parent=71 // pred_fallthru
        _
      %p1353 = scmp.lt.s32.totalorder %s28, 1
      %s1354 = scalar_select %p1353, %s28, 1
      %s1355 = smul.addr %s1354, 8
      %s1356 = scalar_lea.vmem %s13, %s1355
      // Predicated region
      $region81: #{mga_forward.15} parent=71 // pred_check
        %p1357 = pneg %p392
      $region82: #{mga_forward.15} parent=71 // pred_check_branch
        %1359 = sbr.rel (%p1357) target = $region84
      $region83: #{mga_forward.15} parent=71 // pred_region
        _
      $region84: #{mga_forward.15} parent=71 // pred_fallthru
        _
    $region72: #{mga_forward.15} parent=5 // pred_fallthru
      _
    %p1360 = scmp.le.s32.totalorder 2, %s19
    // Predicated region
    $region85: #{mga_forward.15} parent=5 // pred_check
      %p1361 = pneg %p1360
    $region86: #{mga_forward.15} parent=5 // pred_check_branch
      %1363 = sbr.rel (%p1361) target = $region88
    $region87: #{mga_forward.15} parent=5 // pred_region
      %s1364 = ssub.s32 %s19, 2
      // Predicated region
      $region89: #{mga_forward.15} parent=87 // pred_check
        %p1365 = pneg %p398
      $region90: #{mga_forward.15} parent=87 // pred_check_branch
        %1367 = sbr.rel (%p1365) target = $region92
      $region91: #{mga_forward.15} parent=87 // pred_region
        %p1368 = scmp.lt.s32.totalorder %s30, 1
        %s1369 = scalar_select %p1368, %s30, 1
        %s1370 = smul.addr %s1369, 8
        %s1371 = scalar_lea.vmem %s13, %s1370
      $region92: #{mga_forward.15} parent=87 // pred_fallthru
        _
    $region88: #{mga_forward.15} parent=5 // pred_fallthru
      _
  $region6: #{mga_forward.15} parent=0 // loop_footer
    %s23 = sadd.s32 1, %s19
  $region7: #{mga_forward.15} parent=0 // loop_footer_branch
    %18 = sbr.rel target = $region3
  $region8: #{mga_forward.15} parent=0 // loop_exit
    _

// kernel: mga_forward.17
$region0: #{mga_forward.17}
  #allocation0 [shape = 'u32[]', space=smem, size = 0x4, offset = 0x4, fixed_abs, tag = 'smem constant byte address 0x4 - core index']
  #allocation1 [shape = 'u32[144,128]{1,0:T(1,128)}', space=vmem, size = 0x12000, scoped, tag = 'internal scratch']
  #allocation2 [shape = 'f32[10,32]{1,0:T(8,128)}', space=vmem, size = 0x2000, scoped, tag = 'scratch operand']
  %s0 = inlined_call_operand.vmem [shape: bf16[10,64], index: 0, kind: input, shape index: {}]
  %s1 = inlined_call_operand.vmem [shape: bf16[64,32], index: 1, kind: input, shape index: {}]
  %s2 = inlined_call_operand.vmem [shape: f32[10,32], index: 2, kind: output, shape index: {}]
  %s3 = sld [smem:[#allocation0]]
  $region26: #{mga_forward.17} parent=0
    _
  %s5 = ssub.s32 1, %s3
  %s6 = scalar_select 0, %s5, %s3
  // Predicated region
  $region2: #{mga_forward.17} parent=0 // pred_check
    _
  $region3: #{mga_forward.17} parent=0 // pred_check_branch
    %8 = sbr.rel (0) target = $region5
  $region4: #{mga_forward.17} parent=0 // pred_region
    _
  $region5: #{mga_forward.17} parent=0 // pred_fallthru
    _
  // Predicated region
  $region6: #{mga_forward.17} parent=0 // pred_check
    _
  $region7: #{mga_forward.17} parent=0 // pred_check_branch
    %10 = sbr.rel (0) target = $region9
  $region8: #{mga_forward.17} parent=0 // pred_region
    _
  $region9: #{mga_forward.17} parent=0 // pred_fallthru
    _
  %p12 = scmp.eq.s32.totalorder 0, 0
  // Predicated region
  $region10: #{mga_forward.17} parent=0 // pred_check
    %p13 = pneg %p12
  $region11: #{mga_forward.17} parent=0 // pred_check_branch
    %15 = sbr.rel (%p13) target = $region13
  $region12: #{mga_forward.17} parent=0 // pred_region
    %vm16 = vcmask 261120
    %17 = vst.msk [vmem:[#allocation2] sm:$0xff] %vm16, 0.0
    %vm18 = vcmask 254976
    %19 = vst.msk [vmem:[#allocation2 + $0x8] sm:$0x3] %vm18, 0.0
  $region13: #{mga_forward.17} parent=0 // pred_fallthru
    _
  %v20 = vld [vmem:[#allocation2] sm:$0xff]
  %v21 = vld [vmem:[#allocation2 + $0x8] sm:$0x3]
  %v22 = vld [vmem:[%s0] sm:$0xf]
  %v23 = vld [vmem:[%s0 + $0x4] sm:$0x1]
  %v24 = vld [vmem:[%s1] sm:$0xf]
  %v25 = vld [vmem:[%s1 + $0x4] sm:$0xf]
  %v26 = vld [vmem:[%s1 + $0x8] sm:$0xf]
  %v27 = vld [vmem:[%s1 + $0xc] sm:$0xf]
  %v28 = vld [vmem:[%s1 + $0x10] sm:$0xf]
  %v29 = vld [vmem:[%s1 + $0x14] sm:$0xf]
  %v30 = vld [vmem:[%s1 + $0x18] sm:$0xf]
  %v31 = vld [vmem:[%s1 + $0x1c] sm:$0xf]
  %v34 = vunpack.c.l.b16 %v22
  %v35 = vunpack.c.l.b16 %v23
  %v36 = vpack.c.b16 %v35, %v34
  %v45 = vunpack.c.l.b16 %v24
  %v46 = vunpack.c.l.b16 %v25
  %v47 = vunpack.c.l.b16 %v26
  %v48 = vunpack.c.l.b16 %v27
  %v49 = vunpack.c.l.b16 %v28
  %v50 = vunpack.c.l.b16 %v29
  %v51 = vunpack.c.l.b16 %v30
  %v52 = vunpack.c.l.b16 %v31
  %v53 = vpack.c.b16 %v46, %v45
  %v54 = vpack.c.b16 %v48, %v47
  %v55 = vpack.c.b16 %v50, %v49
  %v56 = vpack.c.b16 %v52, %v51
  %vm61 = vcmask 523264
  %v63 = vsel %vm61, %v36, 0
  %65 = vmatprep.subr.bf16.mxu0 0
  %66 = vmatpush1.bf16.msra.mxu0 %v53
  %67 = vmatprep.subr.bf16.mxu0 0
  %68 = vmatpush1.bf16.msra.mxu0 %v54
  %69 = vmatprep.subr.bf16.mxu0 0
  %70 = vmatpush1.bf16.msra.mxu0 %v55
  %71 = vmatprep.subr.bf16.mxu0 0
  %72 = vmatpush1.bf16.msra.mxu0 %v56
  %73 = vmatprep.subr.bf16.mxu0 0
  %74 = vmatpush1.bf16.msra.mxu0 0
  %75 = vmatprep.subr.bf16.mxu0 0
  %76 = vmatpush1.bf16.msra.mxu0 0
  %77 = vmatprep.subr.bf16.mxu0 0
  %78 = vmatpush1.bf16.msra.mxu0 0
  %79 = vmatprep.subr.bf16.mxu0 0
  %80 = vmatpush1.bf16.msra.mxu0 0
  %81 = vmatprep.subr.bf16.mxu0 0
  %82 = vmatpush1.bf16.msra.mxu0 0
  %83 = vmatprep.subr.bf16.mxu0 0
  %84 = vmatpush1.bf16.msra.mxu0 0
  %85 = vmatprep.subr.bf16.mxu0 0
  %86 = vmatpush1.bf16.msra.mxu0 0
  %87 = vmatprep.subr.bf16.mxu0 0
  %88 = vmatpush1.bf16.msra.mxu0 0
  %89 = vmatprep.subr.bf16.mxu0 0
  %90 = vmatpush1.bf16.msra.mxu0 0
  %91 = vmatprep.subr.bf16.mxu0 0
  %92 = vmatpush1.bf16.msra.mxu0 0
  %93 = vmatprep.subr.bf16.mxu0 0
  %94 = vmatpush1.bf16.msra.mxu0 0
  %95 = vmatprep.subr.bf16.mxu0 0
  %96 = vmatpush1.bf16.msra.mxu0 0
  %97 = vmatprep.mubr.bf16.mxu0 0
  %98 = vmatmul.mubr.bf16.gmra.mrb[0].mxu0 %v63
  %v99 = vpop.f32.mrb[0].mxu0
  %v100 = vadd.f32 0.0, %v99
  %v101 = vpop.f32.mrb[0].mxu0
  %v102 = vpop.f32.mrb[0].mxu0
  %v103 = vadd.f32 0.0, %v102
  %v104 = vpop.f32.mrb[0].mxu0
  %105 = vdwg.mxu0
  %v106 = vadd.f32 %v20, %v100
  %v107 = vadd.f32 %v21, %v103
  %vm108 = vcmask 261120
  %109 = vst.msk [vmem:[#allocation2] sm:$0xff] %vm108, %v106
  %vm110 = vcmask 254976
  %111 = vst.msk [vmem:[#allocation2 + $0x8] sm:$0x3] %vm110, %v107
  // Predicated region
  $region14: #{mga_forward.17} parent=0 // pred_check
    %p112 = pneg %p12
  $region15: #{mga_forward.17} parent=0 // pred_check_branch
    %114 = sbr.rel (%p112) target = $region17
  $region16: #{mga_forward.17} parent=0 // pred_region
    %v115 = vld [vmem:[#allocation2] sm:$0xff]
    %v116 = vld [vmem:[#allocation2 + $0x8] sm:$0x3]
    %117 = vst.msk [vmem:[%s2] sm:$0xff] %vm108, %v115
    %118 = vst.msk [vmem:[%s2 + $0x8] sm:$0x3] %vm110, %v116
  $region17: #{mga_forward.17} parent=0 // pred_fallthru
    _
  // Predicated region
  $region18: #{mga_forward.17} parent=0 // pred_check
    _
  $region19: #{mga_forward.17} parent=0 // pred_check_branch
    %120 = sbr.rel (0) target = $region21
  $region20: #{mga_forward.17} parent=0 // pred_region
    _
  $region21: #{mga_forward.17} parent=0 // pred_fallthru
    _
  // Predicated region
  $region22: #{mga_forward.17} parent=0 // pred_check
    _
  $region23: #{mga_forward.17} parent=0 // pred_check_branch
    %122 = sbr.rel (0) target = $region25
  $region24: #{mga_forward.17} parent=0 // pred_region
    _
  $region25: #{mga_forward.17} parent=0 // pred_fallthru
    _

// kernel: mga_forward.24
$region0: #{mga_forward.24}
  #allocation0 [shape = 'u32[]', space=smem, size = 0x4, offset = 0x4, fixed_abs, tag = 'smem constant byte address 0x4 - core index']
  #allocation1 [shape = 'u32[144,128]{1,0:T(1,128)}', space=vmem, size = 0x12000, scoped, tag = 'internal scratch']
  %s0 = inlined_call_operand.vmem [shape: f32[16,32], index: 0, kind: input, shape index: {}]
  %s1 = inlined_call_operand.vmem [shape: f32[1,32], index: 1, kind: input, shape index: {}]
  %s2 = inlined_call_operand.vmem [shape: f32[1,32], index: 2, kind: input, shape index: {}]
  %s3 = inlined_call_operand.vmem [shape: bf16[16,32], index: 3, kind: output, shape index: {}]
  %s4 = sld [smem:[#allocation0]]
  $region22: #{mga_forward.24} parent=0
    _
  %s6 = ssub.s32 1, %s4
  %s7 = scalar_select 0, %s6, %s4
  // Predicated region
  $region2: #{mga_forward.24} parent=0 // pred_check
    _
  $region3: #{mga_forward.24} parent=0 // pred_check_branch
    %9 = sbr.rel (0) target = $region5
  $region4: #{mga_forward.24} parent=0 // pred_region
    _
  $region5: #{mga_forward.24} parent=0 // pred_fallthru
    _
  // Predicated region
  $region6: #{mga_forward.24} parent=0 // pred_check
    _
  $region7: #{mga_forward.24} parent=0 // pred_check_branch
    %11 = sbr.rel (0) target = $region9
  $region8: #{mga_forward.24} parent=0 // pred_region
    _
  $region9: #{mga_forward.24} parent=0 // pred_fallthru
    _
  // Predicated region
  $region10: #{mga_forward.24} parent=0 // pred_check
    _
  $region11: #{mga_forward.24} parent=0 // pred_check_branch
    %13 = sbr.rel (0) target = $region13
  $region12: #{mga_forward.24} parent=0 // pred_region
    _
  $region13: #{mga_forward.24} parent=0 // pred_fallthru
    _
  %v14 = vld [vmem:[%s0] sm:$0xff]
  %v15 = vld [vmem:[%s0 + $0x8] sm:$0xff]
  %vm16 = vcmask 261120
  %v17 = vsel %vm16, %v14, 0.0
  %18 = vadd.xlane.f32.xlu0 %v17
  %v19 = vpop.xlane.xlu0 %18
  %v20 = vsel %vm16, %v15, 0.0
  %21 = vadd.xlane.f32.xlu0 %v20
  %v22 = vpop.xlane.xlu0 %21
  %v23 = vrcp.pop 32.0
  %v24 = vmul.f32 %v19, %v23
  %v25 = vmul.f32 %v22, %v23
  %v26 = vsub.f32 %v14, %v24
  %v27 = vsub.f32 %v15, %v25
  %v28 = vmul.f32 %v26, %v26
  %v29 = vmul.f32 %v27, %v27
  %v30 = vsel %vm16, %v28, 0.0
  %31 = vadd.xlane.f32.xlu0 %v30
  %v32 = vpop.xlane.xlu0 %31
  %v33 = vsel %vm16, %v29, 0.0
  %34 = vadd.xlane.f32.xlu0 %v33
  %v35 = vpop.xlane.xlu0 %34
  %v36 = vmul.f32 %v32, %v23
  %v37 = vmul.f32 %v35, %v23
  %v38 = vadd.f32 %v36, 1e-05
  %v39 = vadd.f32 %v37, 1e-05
  %v40 = vrsqrt.pop %v38
  %v41 = vrsqrt.pop %v39
  %v42 = vmul.f32 %v26, %v40
  %v43 = vmul.f32 %v27, %v41
  %v44 = vld [vmem:[%s1] sm:$0x1]
  %v46 = vlaneseq
  %v47 = vshrl.u32 %v46, 7
  %v48 = vsub.s32 0, %v47
  %v49 = vrot.slane %v44, %v48
  %v51 = vmul.f32 %v42, %v49
  %v52 = vmul.f32 %v43, %v49
  %v53 = vld [vmem:[%s2] sm:$0x1]
  %v55 = vlaneseq
  %v56 = vshrl.u32 %v55, 7
  %v57 = vsub.s32 0, %v56
  %v58 = vrot.slane %v53, %v57
  %v60 = vadd.f32 %v51, %v58
  %v61 = vadd.f32 %v52, %v58
  %v62 = vpack.c.bf16 %v61, %v60
  %v64 = vunpack.c.l.b16 %v62
  %v65 = vunpack.c.h.b16 %v62
  %v66 = vpack.c.b16 %v64, %v64
  %v67 = vpack.c.b16 %v65, %v65
  %vm70 = vcmask 257024
  %71 = vst.msk [vmem:[%s3] sm:$0xf] %vm70, %v66
  %72 = vst.msk [vmem:[%s3 + $0x4] sm:$0xf] %vm70, %v67
  // Predicated region
  $region14: #{mga_forward.24} parent=0 // pred_check
    _
  $region15: #{mga_forward.24} parent=0 // pred_check_branch
    %74 = sbr.rel (0) target = $region17
  $region16: #{mga_forward.24} parent=0 // pred_region
    _
  $region17: #{mga_forward.24} parent=0 // pred_fallthru
    _
  // Predicated region
  $region18: #{mga_forward.24} parent=0 // pred_check
    _
  $region19: #{mga_forward.24} parent=0 // pred_check_branch
    %76 = sbr.rel (0) target = $region21
  $region20: #{mga_forward.24} parent=0 // pred_region
    _
  $region21: #{mga_forward.24} parent=0 // pred_fallthru
    _

// kernel: mga_forward.25
$region0: #{mga_forward.25}
  #allocation0 [shape = 'u32[]', space=smem, size = 0x4, offset = 0x4, fixed_abs, tag = 'smem constant byte address 0x4 - core index']
  #allocation1 [shape = 'u32[144,128]{1,0:T(1,128)}', space=vmem, size = 0x12000, scoped, tag = 'internal scratch']
  #allocation2 [shape = 'f32[16,32]{1,0:T(8,128)}', space=vmem, size = 0x2000, scoped, tag = 'scratch operand']
  %s0 = inlined_call_operand.vmem [shape: bf16[16,32], index: 0, kind: input, shape index: {}]
  %s1 = inlined_call_operand.vmem [shape: bf16[32,32], index: 1, kind: input, shape index: {}]
  %s2 = inlined_call_operand.vmem [shape: f32[16,32], index: 2, kind: output, shape index: {}]
  %s3 = sld [smem:[#allocation0]]
  $region26: #{mga_forward.25} parent=0
    _
  %s5 = ssub.s32 1, %s3
  %s6 = scalar_select 0, %s5, %s3
  // Predicated region
  $region2: #{mga_forward.25} parent=0 // pred_check
    _
  $region3: #{mga_forward.25} parent=0 // pred_check_branch
    %8 = sbr.rel (0) target = $region5
  $region4: #{mga_forward.25} parent=0 // pred_region
    _
  $region5: #{mga_forward.25} parent=0 // pred_fallthru
    _
  // Predicated region
  $region6: #{mga_forward.25} parent=0 // pred_check
    _
  $region7: #{mga_forward.25} parent=0 // pred_check_branch
    %10 = sbr.rel (0) target = $region9
  $region8: #{mga_forward.25} parent=0 // pred_region
    _
  $region9: #{mga_forward.25} parent=0 // pred_fallthru
    _
  %p12 = scmp.eq.s32.totalorder 0, 0
  // Predicated region
  $region10: #{mga_forward.25} parent=0 // pred_check
    %p13 = pneg %p12
  $region11: #{mga_forward.25} parent=0 // pred_check_branch
    %15 = sbr.rel (%p13) target = $region13
  $region12: #{mga_forward.25} parent=0 // pred_region
    %vm16 = vcmask 261120
    %17 = vst.msk [vmem:[#allocation2] sm:$0xff] %vm16, 0.0
    %18 = vst.msk [vmem:[#allocation2 + $0x8] sm:$0xff] %vm16, 0.0
  $region13: #{mga_forward.25} parent=0 // pred_fallthru
    _
  %v19 = vld [vmem:[#allocation2] sm:$0xff]
  %v20 = vld [vmem:[#allocation2 + $0x8] sm:$0xff]
  %v21 = vld [vmem:[%s0] sm:$0xf]
  %v22 = vld [vmem:[%s0 + $0x4] sm:$0xf]
  %v23 = vld [vmem:[%s1] sm:$0xf]
  %v24 = vld [vmem:[%s1 + $0x4] sm:$0xf]
  %v25 = vld [vmem:[%s1 + $0x8] sm:$0xf]
  %v26 = vld [vmem:[%s1 + $0xc] sm:$0xf]
  %v29 = vunpack.c.l.b16 %v21
  %v30 = vunpack.c.l.b16 %v22
  %v31 = vpack.c.b16 %v30, %v29
  %v36 = vunpack.c.l.b16 %v23
  %v37 = vunpack.c.l.b16 %v24
  %v38 = vunpack.c.l.b16 %v25
  %v39 = vunpack.c.l.b16 %v26
  %v40 = vpack.c.b16 %v37, %v36
  %v41 = vpack.c.b16 %v39, %v38
  %vm44 = vcmask 261120
  %v46 = vsel %vm44, %v31, 0
  %48 = vmatprep.subr.bf16.mxu0 0
  %49 = vmatpush1.bf16.msra.mxu0 %v40
  %50 = vmatprep.subr.bf16.mxu0 0
  %51 = vmatpush1.bf16.msra.mxu0 %v41
  %52 = vmatprep.subr.bf16.mxu0 0
  %53 = vmatpush1.bf16.msra.mxu0 0
  %54 = vmatprep.subr.bf16.mxu0 0
  %55 = vmatpush1.bf16.msra.mxu0 0
  %56 = vmatprep.subr.bf16.mxu0 0
  %57 = vmatpush1.bf16.msra.mxu0 0
  %58 = vmatprep.subr.bf16.mxu0 0
  %59 = vmatpush1.bf16.msra.mxu0 0
  %60 = vmatprep.subr.bf16.mxu0 0
  %61 = vmatpush1.bf16.msra.mxu0 0
  %62 = vmatprep.subr.bf16.mxu0 0
  %63 = vmatpush1.bf16.msra.mxu0 0
  %64 = vmatprep.subr.bf16.mxu0 0
  %65 = vmatpush1.bf16.msra.mxu0 0
  %66 = vmatprep.subr.bf16.mxu0 0
  %67 = vmatpush1.bf16.msra.mxu0 0
  %68 = vmatprep.subr.bf16.mxu0 0
  %69 = vmatpush1.bf16.msra.mxu0 0
  %70 = vmatprep.subr.bf16.mxu0 0
  %71 = vmatpush1.bf16.msra.mxu0 0
  %72 = vmatprep.subr.bf16.mxu0 0
  %73 = vmatpush1.bf16.msra.mxu0 0
  %74 = vmatprep.subr.bf16.mxu0 0
  %75 = vmatpush1.bf16.msra.mxu0 0
  %76 = vmatprep.subr.bf16.mxu0 0
  %77 = vmatpush1.bf16.msra.mxu0 0
  %78 = vmatprep.subr.bf16.mxu0 0
  %79 = vmatpush1.bf16.msra.mxu0 0
  %80 = vmatprep.mubr.bf16.mxu0 0
  %81 = vmatmul.mubr.bf16.gmra.mrb[0].mxu0 %v46
  %v82 = vpop.f32.mrb[0].mxu0
  %v83 = vadd.f32 0.0, %v82
  %v84 = vpop.f32.mrb[0].mxu0
  %v85 = vpop.f32.mrb[0].mxu0
  %v86 = vadd.f32 0.0, %v85
  %v87 = vpop.f32.mrb[0].mxu0
  %88 = vdwg.mxu0
  %v89 = vadd.f32 %v19, %v83
  %v90 = vadd.f32 %v20, %v86
  %91 = vst.msk [vmem:[#allocation2] sm:$0xff] %vm44, %v89
  %92 = vst.msk [vmem:[#allocation2 + $0x8] sm:$0xff] %vm44, %v90
  // Predicated region
  $region14: #{mga_forward.25} parent=0 // pred_check
    %p93 = pneg %p12
  $region15: #{mga_forward.25} parent=0 // pred_check_branch
    %95 = sbr.rel (%p93) target = $region17
  $region16: #{mga_forward.25} parent=0 // pred_region
    %v96 = vld [vmem:[#allocation2] sm:$0xff]
    %v97 = vld [vmem:[#allocation2 + $0x8] sm:$0xff]
    %98 = vst.msk [vmem:[%s2] sm:$0xff] %vm44, %v96
    %99 = vst.msk [vmem:[%s2 + $0x8] sm:$0xff] %vm44, %v97
  $region17: #{mga_forward.25} parent=0 // pred_fallthru
    _
  // Predicated region
  $region18: #{mga_forward.25} parent=0 // pred_check
    _
  $region19: #{mga_forward.25} parent=0 // pred_check_branch
    %101 = sbr.rel (0) target = $region21
  $region20: #{mga_forward.25} parent=0 // pred_region
    _
  $region21: #{mga_forward.25} parent=0 // pred_fallthru
    _
  // Predicated region
  $region22: #{mga_forward.25} parent=0 // pred_check
    _
  $region23: #{mga_forward.25} parent=0 // pred_check_branch
    %103 = sbr.rel (0) target = $region25
  $region24: #{mga_forward.25} parent=0 // pred_region
    _
  $region25: #{mga_forward.25} parent=0 // pred_fallthru
    _

// kernel: mga_forward.23
$region0: #{mga_forward.23}
  #allocation0 [shape = 'u32[]', space=smem, size = 0x4, offset = 0x4, fixed_abs, tag = 'smem constant byte address 0x4 - core index']
  #allocation1 [shape = 'u32[144,128]{1,0:T(1,128)}', space=vmem, size = 0x12000, scoped, tag = 'internal scratch']
  #allocation2 [shape = 'f32[8,32]{1,0:T(8,128)}', space=vmem, size = 0x1000, scoped, tag = 'scratch operand']
  #allocation3 [shape = 'bf16[8,96]{1,0:T(8,128)(2,1)}', space=vmem, size = 0x800, scoped, tag = 'scratch operand']
  #allocation4 [shape = 'bf16[8,32]{1,0:T(8,128)(2,1)}', space=vmem, size = 0x800, scoped, tag = 'scratch operand']
  %s0 = inlined_call_operand.vmem [shape: f32[2,8,32], index: 0, kind: input, shape index: {}]
  %s1 = inlined_call_operand.vmem [shape: bf16[2,32,96], index: 1, kind: input, shape index: {}]
  %s2 = inlined_call_operand.vmem [shape: f32[2,1,96], index: 2, kind: input, shape index: {}]
  %s3 = inlined_call_operand.vmem [shape: bf16[2,32,32], index: 3, kind: input, shape index: {}]
  %s4 = inlined_call_operand.vmem [shape: f32[2,1,32], index: 4, kind: input, shape index: {}]
  %s5 = inlined_call_operand.vmem [shape: f32[2,1,32], index: 5, kind: input, shape index: {}]
  %s6 = inlined_call_operand.vmem [shape: f32[2,1,32], index: 6, kind: input, shape index: {}]
  %s7 = inlined_call_operand.vmem [shape: f32[2,1,32], index: 7, kind: input, shape index: {}]
  %s8 = inlined_call_operand.vmem [shape: f32[2,1,32], index: 8, kind: input, shape index: {}]
  %s9 = inlined_call_operand.vmem [shape: bf16[2,32,128], index: 9, kind: input, shape index: {}]
  %s10 = inlined_call_operand.vmem [shape: f32[2,1,128], index: 10, kind: input, shape index: {}]
  %s11 = inlined_call_operand.vmem [shape: bf16[2,128,32], index: 11, kind: input, shape index: {}]
  %s12 = inlined_call_operand.vmem [shape: f32[2,1,32], index: 12, kind: input, shape index: {}]
  %s13 = inlined_call_operand.vmem [shape: f32[2,8,32], index: 13, kind: output, shape index: {}]
  %s14 = sld [smem:[#allocation0]]
  $region93: #{mga_forward.23} parent=0
    _
  %s16 = ssub.s32 1, %s14
  %s17 = scalar_select 0, %s16, %s14
  loop: start=0, step=1, limit=6
  $region2: #{mga_forward.23} parent=0 // loop_pre_header
    _
  $region3: #{mga_forward.23} parent=0 // loop_header
    %s19 = sphi 0, %s23
    %p20 = scmp.ge.s32.totalorder %s19, 6
    %s26 = sphi 0, %s38
    %s27 = sphi 0, %s34
    %s28 = sphi 0, %s26
    %s29 = sphi 0, %s27
    %s30 = sphi 0, %s28
    %s31 = sphi 0, %s29
    %s41 = sphi 0, %s43
    %s44 = sphi 0, %s41
    %s45 = sphi 0, %s44
    %s61 = sphi 0, %s45
    %s67 = sphi 0, %s69
    %s70 = sphi 0, %s67
    %s71 = sphi 0, %s70
    %s87 = sphi 0, %s71
    %s93 = sphi 0, %s95
    %s96 = sphi 0, %s93
    %s97 = sphi 0, %s96
    %s113 = sphi 0, %s97
    %s119 = sphi 0, %s121
    %s122 = sphi 0, %s119
    %s123 = sphi 0, %s122
    %s139 = sphi 0, %s123
    %s145 = sphi 0, %s147
    %s148 = sphi 0, %s145
    %s149 = sphi 0, %s148
    %s165 = sphi 0, %s149
    %s171 = sphi 0, %s173
    %s174 = sphi 0, %s171
    %s175 = sphi 0, %s174
    %s191 = sphi 0, %s175
    %s197 = sphi 0, %s199
    %s200 = sphi 0, %s197
    %s201 = sphi 0, %s200
    %s217 = sphi 0, %s201
    %s223 = sphi 0, %s225
    %s226 = sphi 0, %s223
    %s227 = sphi 0, %s226
    %s243 = sphi 0, %s227
    %s249 = sphi 0, %s251
    %s252 = sphi 0, %s249
    %s253 = sphi 0, %s252
    %s269 = sphi 0, %s253
    %s275 = sphi 0, %s277
    %s278 = sphi 0, %s275
    %s279 = sphi 0, %s278
    %s295 = sphi 0, %s279
    %s301 = sphi 0, %s303
    %s304 = sphi 0, %s301
    %s305 = sphi 0, %s304
    %s321 = sphi 0, %s305
    %s327 = sphi 0, %s329
    %s330 = sphi 0, %s327
    %s331 = sphi 0, %s330
    %s347 = sphi 0, %s331
    %s353 = sphi 0, %s355
    %s356 = sphi 0, %s353
    %s357 = sphi 0, %s356
    %s373 = sphi 0, %s357
    %s379 = sphi 0, %s381
    %s382 = sphi 0, %s379
    %s383 = sphi 0, %s382
    %s399 = sphi 0, %s383
  $region4: #{mga_forward.23} parent=0 // loop_header_branch
    %22 = sbr.rel (%p20) target = $region8
  $region5: #{mga_forward.23} parent=0 // loop_body
    %s24 = ssub.s32 %s19, 1
    %s25 = ssub.s32 %s19, 2
    %s32 = sadd.s32 1, %s27
    %p33 = scmp.ge.s32.totalorder %s32, 2
    %s34 = scalar_select %p33, 0, %s32
    %s35 = sadd.s32 1, %s26
    %s36 = scalar_select %p33, %s35, %s26
    %p37 = scmp.ge.s32.totalorder %s36, 2
    %s38 = scalar_select %p37, 0, %s36
    %s39 = ssub.s32 %s26, %s38
    %p40 = scmp.eq.s32.totalorder %s39, 0
    %s42 = sadd.s32 %s41, 1
    %s43 = scalar_select %p40, %s41, %s42
    %p46 = pneg %p40
    %p47 = scmp.eq.s32.totalorder %s19, 3
    %p48 = por %p46, %p47
    %p49 = scmp.ne.s32.totalorder %s41, %s44
    %p50 = scmp.eq.s32.totalorder %s19, 0
    %p51 = por %p49, %p50
    %p52 = scmp.ne.s32.totalorder %s41, %s44
    %p53 = scmp.eq.s32.totalorder %s24, 3
    %p54 = por %p52, %p53
    %p55 = scmp.ne.s32.totalorder %s44, %s45
    %p56 = scmp.eq.s32.totalorder %s24, 0
    %p57 = por %p55, %p56
    %p58 = scmp.ne.s32.totalorder %s44, %s45
    %p59 = scmp.eq.s32.totalorder %s25, 3
    %p60 = por %p58, %p59
    %p62 = scmp.ne.s32.totalorder %s45, %s61
    %p63 = scmp.eq.s32.totalorder %s25, 0
    %p64 = por %p62, %p63
    %s65 = ssub.s32 %s27, %s34
    %p66 = scmp.eq.s32.totalorder %s65, 0
    %s68 = sadd.s32 %s67, 1
    %s69 = scalar_select %p66, %s67, %s68
    %p72 = pneg %p66
    %p73 = scmp.eq.s32.totalorder %s19, 3
    %p74 = por %p72, %p73
    %p75 = scmp.ne.s32.totalorder %s67, %s70
    %p76 = scmp.eq.s32.totalorder %s19, 0
    %p77 = por %p75, %p76
    %p78 = scmp.ne.s32.totalorder %s67, %s70
    %p79 = scmp.eq.s32.totalorder %s24, 3
    %p80 = por %p78, %p79
    %p81 = scmp.ne.s32.totalorder %s70, %s71
    %p82 = scmp.eq.s32.totalorder %s24, 0
    %p83 = por %p81, %p82
    %p84 = scmp.ne.s32.totalorder %s70, %s71
    %p85 = scmp.eq.s32.totalorder %s25, 3
    %p86 = por %p84, %p85
    %p88 = scmp.ne.s32.totalorder %s71, %s87
    %p89 = scmp.eq.s32.totalorder %s25, 0
    %p90 = por %p88, %p89
    %s91 = ssub.s32 %s27, %s34
    %p92 = scmp.eq.s32.totalorder %s91, 0
    %s94 = sadd.s32 %s93, 1
    %s95 = scalar_select %p92, %s93, %s94
    %p98 = pneg %p92
    %p99 = scmp.eq.s32.totalorder %s19, 3
    %p100 = por %p98, %p99
    %p101 = scmp.ne.s32.totalorder %s93, %s96
    %p102 = scmp.eq.s32.totalorder %s19, 0
    %p103 = por %p101, %p102
    %p104 = scmp.ne.s32.totalorder %s93, %s96
    %p105 = scmp.eq.s32.totalorder %s24, 3
    %p106 = por %p104, %p105
    %p107 = scmp.ne.s32.totalorder %s96, %s97
    %p108 = scmp.eq.s32.totalorder %s24, 0
    %p109 = por %p107, %p108
    %p110 = scmp.ne.s32.totalorder %s96, %s97
    %p111 = scmp.eq.s32.totalorder %s25, 3
    %p112 = por %p110, %p111
    %p114 = scmp.ne.s32.totalorder %s97, %s113
    %p115 = scmp.eq.s32.totalorder %s25, 0
    %p116 = por %p114, %p115
    %s117 = ssub.s32 %s27, %s34
    %p118 = scmp.eq.s32.totalorder %s117, 0
    %s120 = sadd.s32 %s119, 1
    %s121 = scalar_select %p118, %s119, %s120
    %p124 = pneg %p118
    %p125 = scmp.eq.s32.totalorder %s19, 3
    %p126 = por %p124, %p125
    %p127 = scmp.ne.s32.totalorder %s119, %s122
    %p128 = scmp.eq.s32.totalorder %s19, 0
    %p129 = por %p127, %p128
    %p130 = scmp.ne.s32.totalorder %s119, %s122
    %p131 = scmp.eq.s32.totalorder %s24, 3
    %p132 = por %p130, %p131
    %p133 = scmp.ne.s32.totalorder %s122, %s123
    %p134 = scmp.eq.s32.totalorder %s24, 0
    %p135 = por %p133, %p134
    %p136 = scmp.ne.s32.totalorder %s122, %s123
    %p137 = scmp.eq.s32.totalorder %s25, 3
    %p138 = por %p136, %p137
    %p140 = scmp.ne.s32.totalorder %s123, %s139
    %p141 = scmp.eq.s32.totalorder %s25, 0
    %p142 = por %p140, %p141
    %s143 = ssub.s32 %s27, %s34
    %p144 = scmp.eq.s32.totalorder %s143, 0
    %s146 = sadd.s32 %s145, 1
    %s147 = scalar_select %p144, %s145, %s146
    %p150 = pneg %p144
    %p151 = scmp.eq.s32.totalorder %s19, 3
    %p152 = por %p150, %p151
    %p153 = scmp.ne.s32.totalorder %s145, %s148
    %p154 = scmp.eq.s32.totalorder %s19, 0
    %p155 = por %p153, %p154
    %p156 = scmp.ne.s32.totalorder %s145, %s148
    %p157 = scmp.eq.s32.totalorder %s24, 3
    %p158 = por %p156, %p157
    %p159 = scmp.ne.s32.totalorder %s148, %s149
    %p160 = scmp.eq.s32.totalorder %s24, 0
    %p161 = por %p159, %p160
    %p162 = scmp.ne.s32.totalorder %s148, %s149
    %p163 = scmp.eq.s32.totalorder %s25, 3
    %p164 = por %p162, %p163
    %p166 = scmp.ne.s32.totalorder %s149, %s165
    %p167 = scmp.eq.s32.totalorder %s25, 0
    %p168 = por %p166, %p167
    %s169 = ssub.s32 %s27, %s34
    %p170 = scmp.eq.s32.totalorder %s169, 0
    %s172 = sadd.s32 %s171, 1
    %s173 = scalar_select %p170, %s171, %s172
    %p176 = pneg %p170
    %p177 = scmp.eq.s32.totalorder %s19, 3
    %p178 = por %p176, %p177
    %p179 = scmp.ne.s32.totalorder %s171, %s174
    %p180 = scmp.eq.s32.totalorder %s19, 0
    %p181 = por %p179, %p180
    %p182 = scmp.ne.s32.totalorder %s171, %s174
    %p183 = scmp.eq.s32.totalorder %s24, 3
    %p184 = por %p182, %p183
    %p185 = scmp.ne.s32.totalorder %s174, %s175
    %p186 = scmp.eq.s32.totalorder %s24, 0
    %p187 = por %p185, %p186
    %p188 = scmp.ne.s32.totalorder %s174, %s175
    %p189 = scmp.eq.s32.totalorder %s25, 3
    %p190 = por %p188, %p189
    %p192 = scmp.ne.s32.totalorder %s175, %s191
    %p193 = scmp.eq.s32.totalorder %s25, 0
    %p194 = por %p192, %p193
    %s195 = ssub.s32 %s27, %s34
    %p196 = scmp.eq.s32.totalorder %s195, 0
    %s198 = sadd.s32 %s197, 1
    %s199 = scalar_select %p196, %s197, %s198
    %p202 = pneg %p196
    %p203 = scmp.eq.s32.totalorder %s19, 3
    %p204 = por %p202, %p203
    %p205 = scmp.ne.s32.totalorder %s197, %s200
    %p206 = scmp.eq.s32.totalorder %s19, 0
    %p207 = por %p205, %p206
    %p208 = scmp.ne.s32.totalorder %s197, %s200
    %p209 = scmp.eq.s32.totalorder %s24, 3
    %p210 = por %p208, %p209
    %p211 = scmp.ne.s32.totalorder %s200, %s201
    %p212 = scmp.eq.s32.totalorder %s24, 0
    %p213 = por %p211, %p212
    %p214 = scmp.ne.s32.totalorder %s200, %s201
    %p215 = scmp.eq.s32.totalorder %s25, 3
    %p216 = por %p214, %p215
    %p218 = scmp.ne.s32.totalorder %s201, %s217
    %p219 = scmp.eq.s32.totalorder %s25, 0
    %p220 = por %p218, %p219
    %s221 = ssub.s32 %s27, %s34
    %p222 = scmp.eq.s32.totalorder %s221, 0
    %s224 = sadd.s32 %s223, 1
    %s225 = scalar_select %p222, %s223, %s224
    %p228 = pneg %p222
    %p229 = scmp.eq.s32.totalorder %s19, 3
    %p230 = por %p228, %p229
    %p231 = scmp.ne.s32.totalorder %s223, %s226
    %p232 = scmp.eq.s32.totalorder %s19, 0
    %p233 = por %p231, %p232
    %p234 = scmp.ne.s32.totalorder %s223, %s226
    %p235 = scmp.eq.s32.totalorder %s24, 3
    %p236 = por %p234, %p235
    %p237 = scmp.ne.s32.totalorder %s226, %s227
    %p238 = scmp.eq.s32.totalorder %s24, 0
    %p239 = por %p237, %p238
    %p240 = scmp.ne.s32.totalorder %s226, %s227
    %p241 = scmp.eq.s32.totalorder %s25, 3
    %p242 = por %p240, %p241
    %p244 = scmp.ne.s32.totalorder %s227, %s243
    %p245 = scmp.eq.s32.totalorder %s25, 0
    %p246 = por %p244, %p245
    %s247 = ssub.s32 %s27, %s34
    %p248 = scmp.eq.s32.totalorder %s247, 0
    %s250 = sadd.s32 %s249, 1
    %s251 = scalar_select %p248, %s249, %s250
    %p254 = pneg %p248
    %p255 = scmp.eq.s32.totalorder %s19, 3
    %p256 = por %p254, %p255
    %p257 = scmp.ne.s32.totalorder %s249, %s252
    %p258 = scmp.eq.s32.totalorder %s19, 0
    %p259 = por %p257, %p258
    %p260 = scmp.ne.s32.totalorder %s249, %s252
    %p261 = scmp.eq.s32.totalorder %s24, 3
    %p262 = por %p260, %p261
    %p263 = scmp.ne.s32.totalorder %s252, %s253
    %p264 = scmp.eq.s32.totalorder %s24, 0
    %p265 = por %p263, %p264
    %p266 = scmp.ne.s32.totalorder %s252, %s253
    %p267 = scmp.eq.s32.totalorder %s25, 3
    %p268 = por %p266, %p267
    %p270 = scmp.ne.s32.totalorder %s253, %s269
    %p271 = scmp.eq.s32.totalorder %s25, 0
    %p272 = por %p270, %p271
    %s273 = ssub.s32 %s27, %s34
    %p274 = scmp.eq.s32.totalorder %s273, 0
    %s276 = sadd.s32 %s275, 1
    %s277 = scalar_select %p274, %s275, %s276
    %p280 = pneg %p274
    %p281 = scmp.eq.s32.totalorder %s19, 3
    %p282 = por %p280, %p281
    %p283 = scmp.ne.s32.totalorder %s275, %s278
    %p284 = scmp.eq.s32.totalorder %s19, 0
    %p285 = por %p283, %p284
    %p286 = scmp.ne.s32.totalorder %s275, %s278
    %p287 = scmp.eq.s32.totalorder %s24, 3
    %p288 = por %p286, %p287
    %p289 = scmp.ne.s32.totalorder %s278, %s279
    %p290 = scmp.eq.s32.totalorder %s24, 0
    %p291 = por %p289, %p290
    %p292 = scmp.ne.s32.totalorder %s278, %s279
    %p293 = scmp.eq.s32.totalorder %s25, 3
    %p294 = por %p292, %p293
    %p296 = scmp.ne.s32.totalorder %s279, %s295
    %p297 = scmp.eq.s32.totalorder %s25, 0
    %p298 = por %p296, %p297
    %s299 = ssub.s32 %s27, %s34
    %p300 = scmp.eq.s32.totalorder %s299, 0
    %s302 = sadd.s32 %s301, 1
    %s303 = scalar_select %p300, %s301, %s302
    %p306 = pneg %p300
    %p307 = scmp.eq.s32.totalorder %s19, 3
    %p308 = por %p306, %p307
    %p309 = scmp.ne.s32.totalorder %s301, %s304
    %p310 = scmp.eq.s32.totalorder %s19, 0
    %p311 = por %p309, %p310
    %p312 = scmp.ne.s32.totalorder %s301, %s304
    %p313 = scmp.eq.s32.totalorder %s24, 3
    %p314 = por %p312, %p313
    %p315 = scmp.ne.s32.totalorder %s304, %s305
    %p316 = scmp.eq.s32.totalorder %s24, 0
    %p317 = por %p315, %p316
    %p318 = scmp.ne.s32.totalorder %s304, %s305
    %p319 = scmp.eq.s32.totalorder %s25, 3
    %p320 = por %p318, %p319
    %p322 = scmp.ne.s32.totalorder %s305, %s321
    %p323 = scmp.eq.s32.totalorder %s25, 0
    %p324 = por %p322, %p323
    %s325 = ssub.s32 %s27, %s34
    %p326 = scmp.eq.s32.totalorder %s325, 0
    %s328 = sadd.s32 %s327, 1
    %s329 = scalar_select %p326, %s327, %s328
    %p332 = pneg %p326
    %p333 = scmp.eq.s32.totalorder %s19, 3
    %p334 = por %p332, %p333
    %p335 = scmp.ne.s32.totalorder %s327, %s330
    %p336 = scmp.eq.s32.totalorder %s19, 0
    %p337 = por %p335, %p336
    %p338 = scmp.ne.s32.totalorder %s327, %s330
    %p339 = scmp.eq.s32.totalorder %s24, 3
    %p340 = por %p338, %p339
    %p341 = scmp.ne.s32.totalorder %s330, %s331
    %p342 = scmp.eq.s32.totalorder %s24, 0
    %p343 = por %p341, %p342
    %p344 = scmp.ne.s32.totalorder %s330, %s331
    %p345 = scmp.eq.s32.totalorder %s25, 3
    %p346 = por %p344, %p345
    %p348 = scmp.ne.s32.totalorder %s331, %s347
    %p349 = scmp.eq.s32.totalorder %s25, 0
    %p350 = por %p348, %p349
    %s351 = ssub.s32 %s27, %s34
    %p352 = scmp.eq.s32.totalorder %s351, 0
    %s354 = sadd.s32 %s353, 1
    %s355 = scalar_select %p352, %s353, %s354
    %p358 = pneg %p352
    %p359 = scmp.eq.s32.totalorder %s19, 3
    %p360 = por %p358, %p359
    %p361 = scmp.ne.s32.totalorder %s353, %s356
    %p362 = scmp.eq.s32.totalorder %s19, 0
    %p363 = por %p361, %p362
    %p364 = scmp.ne.s32.totalorder %s353, %s356
    %p365 = scmp.eq.s32.totalorder %s24, 3
    %p366 = por %p364, %p365
    %p367 = scmp.ne.s32.totalorder %s356, %s357
    %p368 = scmp.eq.s32.totalorder %s24, 0
    %p369 = por %p367, %p368
    %p370 = scmp.ne.s32.totalorder %s356, %s357
    %p371 = scmp.eq.s32.totalorder %s25, 3
    %p372 = por %p370, %p371
    %p374 = scmp.ne.s32.totalorder %s357, %s373
    %p375 = scmp.eq.s32.totalorder %s25, 0
    %p376 = por %p374, %p375
    %s377 = ssub.s32 %s26, %s38
    %p378 = scmp.eq.s32.totalorder %s377, 0
    %s380 = sadd.s32 %s379, 1
    %s381 = scalar_select %p378, %s379, %s380
    %p384 = pneg %p378
    %p385 = scmp.eq.s32.totalorder %s19, 3
    %p386 = por %p384, %p385
    %p387 = scmp.ne.s32.totalorder %s379, %s382
    %p388 = scmp.eq.s32.totalorder %s19, 0
    %p389 = por %p387, %p388
    %p390 = scmp.ne.s32.totalorder %s379, %s382
    %p391 = scmp.eq.s32.totalorder %s24, 3
    %p392 = por %p390, %p391
    %p393 = scmp.ne.s32.totalorder %s382, %s383
    %p394 = scmp.eq.s32.totalorder %s24, 0
    %p395 = por %p393, %p394
    %p396 = scmp.ne.s32.totalorder %s382, %s383
    %p397 = scmp.eq.s32.totalorder %s25, 3
    %p398 = por %p396, %p397
    %p400 = scmp.ne.s32.totalorder %s383, %s399
    %p401 = scmp.eq.s32.totalorder %s25, 0
    %p402 = por %p400, %p401
    %p403 = scmp.le.s32.totalorder 1, %s19
    %p404 = scmp.lt.s32.totalorder %s19, 5
    %p405 = pnand %p403, %p404
    %p406 = pneg %p405
    // Predicated region
    $region9: #{mga_forward.23} parent=5 // pred_check
      _
    $region10: #{mga_forward.23} parent=5 // pred_check_branch
      %408 = sbr.rel (%p405) target = $region12
    $region11: #{mga_forward.23} parent=5 // pred_region
      %s409 = ssub.s32 %s19, 1
    $region12: #{mga_forward.23} parent=5 // pred_fallthru
      _
    %p410 = scmp.lt.s32.totalorder %s19, 4
    // Predicated region
    $region13: #{mga_forward.23} parent=5 // pred_check
      %p411 = pneg %p410
    $region14: #{mga_forward.23} parent=5 // pred_check_branch
      %413 = sbr.rel (%p411) target = $region16
    $region15: #{mga_forward.23} parent=5 // pred_region
      // Predicated region
      $region17: #{mga_forward.23} parent=15 // pred_check
        %p414 = pneg %p51
      $region18: #{mga_forward.23} parent=15 // pred_check_branch
        %416 = sbr.rel (%p414) target = $region20
      $region19: #{mga_forward.23} parent=15 // pred_region
        %p417 = scmp.lt.s32.totalorder %s26, 1
        %s418 = scalar_select %p417, %s26, 1
        %s419 = smul.addr %s418, 8
        %s420 = scalar_lea.vmem %s0, %s419
      $region20: #{mga_forward.23} parent=15 // pred_fallthru
        _
      // Predicated region
      $region21: #{mga_forward.23} parent=15 // pred_check
        %p421 = pneg %p77
      $region22: #{mga_forward.23} parent=15 // pred_check_branch
        %423 = sbr.rel (%p421) target = $region24
      $region23: #{mga_forward.23} parent=15 // pred_region
        %p424 = scmp.lt.s32.totalorder %s27, 1
        %s425 = scalar_select %p424, %s27, 1
        %s426 = smul.addr %s425, 4
        %s427 = smul.addr %s426, 4
        %s428 = scalar_lea.vmem %s1, %s427
      $region24: #{mga_forward.23} parent=15 // pred_fallthru
        _
      // Predicated region
      $region25: #{mga_forward.23} parent=15 // pred_check
        %p429 = pneg %p103
      $region26: #{mga_forward.23} parent=15 // pred_check_branch
        %431 = sbr.rel (%p429) target = $region28
      $region27: #{mga_forward.23} parent=15 // pred_region
        %p432 = scmp.lt.s32.totalorder %s27, 1
        %s433 = scalar_select %p432, %s27, 1
        %s434 = scalar_lea.vmem %s2, %s433
      $region28: #{mga_forward.23} parent=15 // pred_fallthru
        _
      // Predicated region
      $region29: #{mga_forward.23} parent=15 // pred_check
        %p435 = pneg %p129
      $region30: #{mga_forward.23} parent=15 // pred_check_branch
        %437 = sbr.rel (%p435) target = $region32
      $region31: #{mga_forward.23} parent=15 // pred_region
        %p438 = scmp.lt.s32.totalorder %s27, 1
        %s439 = scalar_select %p438, %s27, 1
        %s440 = smul.addr %s439, 4
        %s441 = smul.addr %s440, 4
        %s442 = scalar_lea.vmem %s3, %s441
      $region32: #{mga_forward.23} parent=15 // pred_fallthru
        _
      // Predicated region
      $region33: #{mga_forward.23} parent=15 // pred_check
        %p443 = pneg %p155
      $region34: #{mga_forward.23} parent=15 // pred_check_branch
        %445 = sbr.rel (%p443) target = $region36
      $region35: #{mga_forward.23} parent=15 // pred_region
        %p446 = scmp.lt.s32.totalorder %s27, 1
        %s447 = scalar_select %p446, %s27, 1
        %s448 = scalar_lea.vmem %s4, %s447
      $region36: #{mga_forward.23} parent=15 // pred_fallthru
        _
      // Predicated region
      $region37: #{mga_forward.23} parent=15 // pred_check
        %p449 = pneg %p181
      $region38: #{mga_forward.23} parent=15 // pred_check_branch
        %451 = sbr.rel (%p449) target = $region40
      $region39: #{mga_forward.23} parent=15 // pred_region
        %p452 = scmp.lt.s32.totalorder %s27, 1
        %s453 = scalar_select %p452, %s27, 1
        %s454 = scalar_lea.vmem %s5, %s453
      $region40: #{mga_forward.23} parent=15 // pred_fallthru
        _
      // Predicated region
      $region41: #{mga_forward.23} parent=15 // pred_check
        %p455 = pneg %p207
      $region42: #{mga_forward.23} parent=15 // pred_check_branch
        %457 = sbr.rel (%p455) target = $region44
      $region43: #{mga_forward.23} parent=15 // pred_region
        %p458 = scmp.lt.s32.totalorder %s27, 1
        %s459 = scalar_select %p458, %s27, 1
        %s460 = scalar_lea.vmem %s6, %s459
      $region44: #{mga_forward.23} parent=15 // pred_fallthru
        _
      // Predicated region
      $region45: #{mga_forward.23} parent=15 // pred_check
        %p461 = pneg %p233
      $region46: #{mga_forward.23} parent=15 // pred_check_branch
        %463 = sbr.rel (%p461) target = $region48
      $region47: #{mga_forward.23} parent=15 // pred_region
        %p464 = scmp.lt.s32.totalorder %s27, 1
        %s465 = scalar_select %p464, %s27, 1
        %s466 = scalar_lea.vmem %s7, %s465
      $region48: #{mga_forward.23} parent=15 // pred_fallthru
        _
      // Predicated region
      $region49: #{mga_forward.23} parent=15 // pred_check
        %p467 = pneg %p259
      $region50: #{mga_forward.23} parent=15 // pred_check_branch
        %469 = sbr.rel (%p467) target = $region52
      $region51: #{mga_forward.23} parent=15 // pred_region
        %p470 = scmp.lt.s32.totalorder %s27, 1
        %s471 = scalar_select %p470, %s27, 1
        %s472 = scalar_lea.vmem %s8, %s471
      $region52: #{mga_forward.23} parent=15 // pred_fallthru
        _
      // Predicated region
      $region53: #{mga_forward.23} parent=15 // pred_check
        %p473 = pneg %p285
      $region54: #{mga_forward.23} parent=15 // pred_check_branch
        %475 = sbr.rel (%p473) target = $region56
      $region55: #{mga_forward.23} parent=15 // pred_region
        %p476 = scmp.lt.s32.totalorder %s27, 1
        %s477 = scalar_select %p476, %s27, 1
        %s478 = smul.addr %s477, 4
        %s479 = smul.addr %s478, 4
        %s480 = scalar_lea.vmem %s9, %s479
      $region56: #{mga_forward.23} parent=15 // pred_fallthru
        _
      // Predicated region
      $region57: #{mga_forward.23} parent=15 // pred_check
        %p481 = pneg %p311
      $region58: #{mga_forward.23} parent=15 // pred_check_branch
        %483 = sbr.rel (%p481) target = $region60
      $region59: #{mga_forward.23} parent=15 // pred_region
        %p484 = scmp.lt.s32.totalorder %s27, 1
        %s485 = scalar_select %p484, %s27, 1
        %s486 = scalar_lea.vmem %s10, %s485
      $region60: #{mga_forward.23} parent=15 // pred_fallthru
        _
      // Predicated region
      $region61: #{mga_forward.23} parent=15 // pred_check
        %p487 = pneg %p337
      $region62: #{mga_forward.23} parent=15 // pred_check_branch
        %489 = sbr.rel (%p487) target = $region64
      $region63: #{mga_forward.23} parent=15 // pred_region
        %p490 = scmp.lt.s32.totalorder %s27, 1
        %s491 = scalar_select %p490, %s27, 1
        %s492 = smul.addr %s491, 16
        %s493 = smul.addr %s492, 4
        %s494 = scalar_lea.vmem %s11, %s493
      $region64: #{mga_forward.23} parent=15 // pred_fallthru
        _
      // Predicated region
      $region65: #{mga_forward.23} parent=15 // pred_check
        %p495 = pneg %p363
      $region66: #{mga_forward.23} parent=15 // pred_check_branch
        %497 = sbr.rel (%p495) target = $region68
      $region67: #{mga_forward.23} parent=15 // pred_region
        %p498 = scmp.lt.s32.totalorder %s27, 1
        %s499 = scalar_select %p498, %s27, 1
        %s500 = scalar_lea.vmem %s12, %s499
      $region68: #{mga_forward.23} parent=15 // pred_fallthru
        _
    $region16: #{mga_forward.23} parent=5 // pred_fallthru
      _
    %p501 = scmp.le.s32.totalorder 1, %s19
    %p502 = scmp.lt.s32.totalorder %s19, 5
    %p503 = pnand %p501, %p502
    %p504 = pneg %p503
    // Predicated region
    $region69: #{mga_forward.23} parent=5 // pred_check
      _
    $region70: #{mga_forward.23} parent=5 // pred_check_branch
      %506 = sbr.rel (%p503) target = $region72
    $region71: #{mga_forward.23} parent=5 // pred_region
      %s507 = ssub.s32 %s19, 1
      %p508 = scmp.lt.s32.totalorder %s28, 1
      %s509 = scalar_select %p508, %s28, 1
      %s510 = smul.addr %s509, 8
      %s511 = scalar_lea.vmem %s0, %s510
      %p512 = pneg %p57
      %p513 = pneg %p54
      %p514 = scmp.lt.s32.totalorder %s29, 1
      %s515 = scalar_select %p514, %s29, 1
      %s516 = smul.addr %s515, 4
      %s517 = smul.addr %s516, 4
      %s518 = scalar_lea.vmem %s1, %s517
      %p519 = pneg %p83
      %p520 = pneg %p80
      %p521 = scmp.lt.s32.totalorder %s29, 1
      %s522 = scalar_select %p521, %s29, 1
      %s523 = scalar_lea.vmem %s2, %s522
      %p524 = pneg %p109
      %p525 = pneg %p106
      %p526 = scmp.lt.s32.totalorder %s29, 1
      %s527 = scalar_select %p526, %s29, 1
      %s528 = smul.addr %s527, 4
      %s529 = smul.addr %s528, 4
      %s530 = scalar_lea.vmem %s3, %s529
      %p531 = pneg %p135
      %p532 = pneg %p132
      %p533 = scmp.lt.s32.totalorder %s29, 1
      %s534 = scalar_select %p533, %s29, 1
      %s535 = scalar_lea.vmem %s4, %s534
      %p536 = pneg %p161
      %p537 = pneg %p158
      %p538 = scmp.lt.s32.totalorder %s29, 1
      %s539 = scalar_select %p538, %s29, 1
      %s540 = scalar_lea.vmem %s5, %s539
      %p541 = pneg %p187
      %p542 = pneg %p184
      %p543 = scmp.lt.s32.totalorder %s29, 1
      %s544 = scalar_select %p543, %s29, 1
      %s545 = scalar_lea.vmem %s6, %s544
      %p546 = pneg %p213
      %p547 = pneg %p210
      %p548 = scmp.lt.s32.totalorder %s29, 1
      %s549 = scalar_select %p548, %s29, 1
      %s550 = scalar_lea.vmem %s7, %s549
      %p551 = pneg %p239
      %p552 = pneg %p236
      %p553 = scmp.lt.s32.totalorder %s29, 1
      %s554 = scalar_select %p553, %s29, 1
      %s555 = scalar_lea.vmem %s8, %s554
      %p556 = pneg %p265
      %p557 = pneg %p262
      %p558 = scmp.lt.s32.totalorder %s29, 1
      %s559 = scalar_select %p558, %s29, 1
      %s560 = smul.addr %s559, 4
      %s561 = smul.addr %s560, 4
      %s562 = scalar_lea.vmem %s9, %s561
      %p563 = pneg %p291
      %p564 = pneg %p288
      %p565 = scmp.lt.s32.totalorder %s29, 1
      %s566 = scalar_select %p565, %s29, 1
      %s567 = scalar_lea.vmem %s10, %s566
      %p568 = pneg %p317
      %p569 = pneg %p314
      %p570 = scmp.lt.s32.totalorder %s29, 1
      %s571 = scalar_select %p570, %s29, 1
      %s572 = smul.addr %s571, 16
      %s573 = smul.addr %s572, 4
      %s574 = scalar_lea.vmem %s11, %s573
      %p575 = pneg %p343
      %p576 = pneg %p340
      %p577 = scmp.lt.s32.totalorder %s29, 1
      %s578 = scalar_select %p577, %s29, 1
      %s579 = scalar_lea.vmem %s12, %s578
      %p580 = pneg %p369
      %p581 = pneg %p366
      %p582 = pneg %p395
      %p583 = pneg %p392
      %p584 = scmp.lt.s32.totalorder %s28, 1
      %s585 = scalar_select %p584, %s28, 1
      %s586 = smul.addr %s585, 8
      %s587 = scalar_lea.vmem %s13, %s586
      %p588 = scmp.lt.s32.totalorder %s28, 1
      %s589 = scalar_select %p588, %s28, 1
      %s590 = smul.addr %s589, 8
      %s591 = scalar_lea.vmem %s0, %s590
      %p592 = scmp.lt.s32.totalorder %s29, 1
      %s593 = scalar_select %p592, %s29, 1
      %s594 = smul.addr %s593, 4
      %s595 = smul.addr %s594, 4
      %s596 = scalar_lea.vmem %s1, %s595
      %p597 = scmp.lt.s32.totalorder %s29, 1
      %s598 = scalar_select %p597, %s29, 1
      %s599 = scalar_lea.vmem %s2, %s598
      %p600 = scmp.lt.s32.totalorder %s29, 1
      %s601 = scalar_select %p600, %s29, 1
      %s602 = smul.addr %s601, 4
      %s603 = smul.addr %s602, 4
      %s604 = scalar_lea.vmem %s3, %s603
      %p605 = scmp.lt.s32.totalorder %s29, 1
      %s606 = scalar_select %p605, %s29, 1
      %s607 = scalar_lea.vmem %s4, %s606
      %p608 = scmp.lt.s32.totalorder %s29, 1
      %s609 = scalar_select %p608, %s29, 1
      %s610 = scalar_lea.vmem %s5, %s609
      %p611 = scmp.lt.s32.totalorder %s29, 1
      %s612 = scalar_select %p611, %s29, 1
      %s613 = scalar_lea.vmem %s6, %s612
      %p614 = scmp.lt.s32.totalorder %s29, 1
      %s615 = scalar_select %p614, %s29, 1
      %s616 = scalar_lea.vmem %s7, %s615
      %p617 = scmp.lt.s32.totalorder %s29, 1
      %s618 = scalar_select %p617, %s29, 1
      %s619 = scalar_lea.vmem %s8, %s618
      %p620 = scmp.lt.s32.totalorder %s29, 1
      %s621 = scalar_select %p620, %s29, 1
      %s622 = smul.addr %s621, 4
      %s623 = smul.addr %s622, 4
      %s624 = scalar_lea.vmem %s9, %s623
      %p625 = scmp.lt.s32.totalorder %s29, 1
      %s626 = scalar_select %p625, %s29, 1
      %s627 = scalar_lea.vmem %s10, %s626
      %p628 = scmp.lt.s32.totalorder %s29, 1
      %s629 = scalar_select %p628, %s29, 1
      %s630 = smul.addr %s629, 16
      %s631 = smul.addr %s630, 4
      %s632 = scalar_lea.vmem %s11, %s631
      %p633 = scmp.lt.s32.totalorder %s29, 1
      %s634 = scalar_select %p633, %s29, 1
      %s635 = scalar_lea.vmem %s12, %s634
      %p636 = scmp.lt.s32.totalorder %s28, 1
      %s637 = scalar_select %p636, %s28, 1
      %s638 = smul.addr %s637, 8
      %s639 = scalar_lea.vmem %s13, %s638
      %p641 = scmp.eq.s32.totalorder %s29, 0
      // Predicated region
      $region73: #{mga_forward.23} parent=71 // pred_check
        %p642 = pneg %p641
      $region74: #{mga_forward.23} parent=71 // pred_check_branch
        %644 = sbr.rel (%p642) target = $region76
      $region75: #{mga_forward.23} parent=71 // pred_region
        %v645 = vld [vmem:[%s591] sm:$0xff]
        %vm646 = vcmask 261120
        %647 = vst.msk [vmem:[#allocation2] sm:$0xff] %vm646, %v645
      $region76: #{mga_forward.23} parent=71 // pred_fallthru
        _
      %v648 = vld [vmem:[#allocation2] sm:$0xff]
      %v649 = vld [vmem:[%s610] sm:$0x1]
      %v650 = vld [vmem:[%s613] sm:$0x1]
      %vm651 = vcmask 261120
      %v652 = vsel %vm651, %v648, 0.0
      %653 = vadd.xlane.f32.xlu0 %v652
      %v654 = vpop.xlane.xlu0 %653
      %v655 = vrcp.pop 32.0
      %v656 = vmul.f32 %v654, %v655
      %v657 = vsub.f32 %v648, %v656
      %v658 = vmul.f32 %v657, %v657
      %v659 = vsel %vm651, %v658, 0.0
      %660 = vadd.xlane.f32.xlu0 %v659
      %v661 = vpop.xlane.xlu0 %660
      %v662 = vmul.f32 %v661, %v655
      %v663 = vadd.f32 %v662, 1e-05
      %v664 = vrsqrt.pop %v663
      %v665 = vmul.f32 %v657, %v664
      %v667 = vlaneseq
      %v668 = vshrl.u32 %v667, 7
      %v669 = vsub.s32 0, %v668
      %v670 = vrot.slane %v649, %v669
      %v672 = vmul.f32 %v665, %v670
      %v674 = vlaneseq
      %v675 = vshrl.u32 %v674, 7
      %v676 = vsub.s32 0, %v675
      %v677 = vrot.slane %v650, %v676
      %v679 = vadd.f32 %v672, %v677
      %v680 = vpack.c.bf16 %v679, %v679
      %v681 = vld [vmem:[%s596] sm:$0xf]
      %v682 = vld [vmem:[%s596 + $0x4] sm:$0xf]
      %v683 = vld [vmem:[%s596 + $0x8] sm:$0xf]
      %v684 = vld [vmem:[%s596 + $0xc] sm:$0xf]
      %v685 = vld [vmem:[%s599] sm:$0x1]
      %v687 = vlaneseq
      %v688 = vshrl.u32 %v687, 7
      %v689 = vsub.s32 0, %v688
      %v690 = vrot.slane %v685, %v689
      %v696 = vunpack.c.l.b16 %v681
      %v697 = vunpack.c.l.b16 %v682
      %v698 = vunpack.c.l.b16 %v683
      %v699 = vunpack.c.l.b16 %v684
      %v700 = vpack.c.b16 %v697, %v696
      %v701 = vpack.c.b16 %v699, %v698
      %v705 = vsel %vm651, %v680, 0
      %707 = vmatprep.subr.bf16.mxu0 0
      %708 = vmatpush1.bf16.msra.mxu0 %v700
      %709 = vmatprep.subr.bf16.mxu0 0
      %710 = vmatpush1.bf16.msra.mxu0 %v701
      %711 = vmatprep.subr.bf16.mxu0 0
      %712 = vmatpush1.bf16.msra.mxu0 0
      %713 = vmatprep.subr.bf16.mxu0 0
      %714 = vmatpush1.bf16.msra.mxu0 0
      %715 = vmatprep.subr.bf16.mxu0 0
      %716 = vmatpush1.bf16.msra.mxu0 0
      %717 = vmatprep.subr.bf16.mxu0 0
      %718 = vmatpush1.bf16.msra.mxu0 0
      %719 = vmatprep.subr.bf16.mxu0 0
      %720 = vmatpush1.bf16.msra.mxu0 0
      %721 = vmatprep.subr.bf16.mxu0 0
      %722 = vmatpush1.bf16.msra.mxu0 0
      %723 = vmatprep.subr.bf16.mxu0 0
      %724 = vmatpush1.bf16.msra.mxu0 0
      %725 = vmatprep.subr.bf16.mxu0 0
      %726 = vmatpush1.bf16.msra.mxu0 0
      %727 = vmatprep.subr.bf16.mxu0 0
      %728 = vmatpush1.bf16.msra.mxu0 0
      %729 = vmatprep.subr.bf16.mxu0 0
      %730 = vmatpush1.bf16.msra.mxu0 0
      %731 = vmatprep.subr.bf16.mxu0 0
      %732 = vmatpush1.bf16.msra.mxu0 0
      %733 = vmatprep.subr.bf16.mxu0 0
      %734 = vmatpush1.bf16.msra.mxu0 0
      %735 = vmatprep.subr.bf16.mxu0 0
      %736 = vmatpush1.bf16.msra.mxu0 0
      %737 = vmatprep.subr.bf16.mxu0 0
      %738 = vmatpush1.bf16.msra.mxu0 0
      %739 = vmatprep.mubr.bf16.mxu0 0
      %740 = vmatmul.mubr.bf16.gmra.mrb[0].mxu0 %v705
      %v741 = vpop.f32.mrb[0].mxu0
      %v742 = vadd.f32 %v690, %v741
      %v743 = vpop.f32.mrb[0].mxu0
      %v744 = vpop.f32.mrb[0].mxu0
      %v745 = vpop.f32.mrb[0].mxu0
      %746 = vdwg.mxu0
      %v747 = vpack.c.bf16 %v742, %v742
      %vm748 = vcmask 781312
      %749 = vst.msk [vmem:[#allocation3] sm:$0xf] %vm748, %v747
      %v750 = vlaneseq
      %v751 = vshrl.u32 %v750, 7
      %v752 = vlaneseq
      %v753 = vand.u32 %v752, 127
      %vm754 = vcmp.le.s32.totalorder %v753, %v751
      %v755 = vsel %vm754, 0.0, -inf
      %v756 = vld [vmem:[#allocation3] sm:$0xf]
      %v758 = vunpack.c.l.b16 %v756
      %v759 = vpack.c.b16 %v758, %v758
      %760 = vrot.lane.b32.xlu0 %v759, 96
      %v761 = vpop.permute.xlu0 %760
      %vm762 = vcmask 64512
      %v764 = vsel %vm762, %v756, 0
      %v767 = vsel %vm762, %v761, 0
      %769 = vmatprep.subr.bf16.mxu0 0
      %770 = vmatpush1.bf16.xpose.msra.mxu0 %v767
      %771 = vmatprep.subr.bf16.mxu0 0
      %772 = vmatpush1.bf16.xpose.msra.mxu0 0
      %773 = vmatprep.subr.bf16.mxu0 0
      %774 = vmatpush1.bf16.xpose.msra.mxu0 0
      %775 = vmatprep.subr.bf16.mxu0 0
      %776 = vmatpush1.bf16.xpose.msra.mxu0 0
      %777 = vmatprep.subr.bf16.mxu0 0
      %778 = vmatpush1.bf16.xpose.msra.mxu0 0
      %779 = vmatprep.subr.bf16.mxu0 0
      %780 = vmatpush1.bf16.xpose.msra.mxu0 0
      %781 = vmatprep.subr.bf16.mxu0 0
      %782 = vmatpush1.bf16.xpose.msra.mxu0 0
      %783 = vmatprep.subr.bf16.mxu0 0
      %784 = vmatpush1.bf16.xpose.msra.mxu0 0
      %785 = vmatprep.subr.bf16.mxu0 0
      %786 = vmatpush1.bf16.xpose.msra.mxu0 0
      %787 = vmatprep.subr.bf16.mxu0 0
      %788 = vmatpush1.bf16.xpose.msra.mxu0 0
      %789 = vmatprep.subr.bf16.mxu0 0
      %790 = vmatpush1.bf16.xpose.msra.mxu0 0
      %791 = vmatprep.subr.bf16.mxu0 0
      %792 = vmatpush1.bf16.xpose.msra.mxu0 0
      %793 = vmatprep.subr.bf16.mxu0 0
      %794 = vmatpush1.bf16.xpose.msra.mxu0 0
      %795 = vmatprep.subr.bf16.mxu0 0
      %796 = vmatpush1.bf16.xpose.msra.mxu0 0
      %797 = vmatprep.subr.bf16.mxu0 0
      %798 = vmatpush1.bf16.xpose.msra.mxu0 0
      %799 = vmatprep.subr.bf16.mxu0 0
      %800 = vmatpush1.bf16.xpose.msra.mxu0 0
      %801 = vmatprep.mubr.bf16.mxu0 0
      %802 = vmatmul.mubr.bf16.gmra.mrb[0].mxu0 %v764
      %v803 = vpop.f32.mrb[0].mxu0
      %v804 = vadd.f32 0.0, %v803
      %v805 = vpop.f32.mrb[0].mxu0
      %v806 = vpop.f32.mrb[0].mxu0
      %v807 = vpop.f32.mrb[0].mxu0
      %808 = vdwg.mxu0
      %v809 = vmul.f32 %v804, 0.35355338
      %v810 = vadd.f32 %v809, %v755
      %v811 = vsel %vm762, %v810, -inf
      %812 = vmax.xlane.f32.xlu0 %v811
      %v813 = vpop.xlane.xlu0 %812
      %v814 = vsub.f32 %v810, %v813
      %v815 = vmul.f32 %v814, 1.442695
      %v816 = vpow.pop %v815
      %v817 = vsel %vm762, %v816, 0.0
      %818 = vadd.xlane.f32.xlu0 %v817
      %v819 = vpop.xlane.xlu0 %818
      %v820 = vrcp.pop %v819
      %v821 = vmul.f32 %v816, %v820
      %v822 = vpack.c.bf16 %v821, %v821
      %823 = vrot.lane.b32.xlu0 %v759, 64
      %v824 = vpop.permute.xlu0 %823
      %v826 = vsel %vm762, %v822, 0
      %vm828 = vcmask 1043456
      %v830 = vsel %vm828, %v824, 0
      %832 = vmatprep.subr.bf16.mxu0 0
      %833 = vmatpush1.bf16.msra.mxu0 %v830
      %834 = vmatprep.subr.bf16.mxu0 0
      %835 = vmatpush1.bf16.msra.mxu0 0
      %836 = vmatprep.subr.bf16.mxu0 0
      %837 = vmatpush1.bf16.msra.mxu0 0
      %838 = vmatprep.subr.bf16.mxu0 0
      %839 = vmatpush1.bf16.msra.mxu0 0
      %840 = vmatprep.subr.bf16.mxu0 0
      %841 = vmatpush1.bf16.msra.mxu0 0
      %842 = vmatprep.subr.bf16.mxu0 0
      %843 = vmatpush1.bf16.msra.mxu0 0
      %844 = vmatprep.subr.bf16.mxu0 0
      %845 = vmatpush1.bf16.msra.mxu0 0
      %846 = vmatprep.subr.bf16.mxu0 0
      %847 = vmatpush1.bf16.msra.mxu0 0
      %848 = vmatprep.subr.bf16.mxu0 0
      %849 = vmatpush1.bf16.msra.mxu0 0
      %850 = vmatprep.subr.bf16.mxu0 0
      %851 = vmatpush1.bf16.msra.mxu0 0
      %852 = vmatprep.subr.bf16.mxu0 0
      %853 = vmatpush1.bf16.msra.mxu0 0
      %854 = vmatprep.subr.bf16.mxu0 0
      %855 = vmatpush1.bf16.msra.mxu0 0
      %856 = vmatprep.subr.bf16.mxu0 0
      %857 = vmatpush1.bf16.msra.mxu0 0
      %858 = vmatprep.subr.bf16.mxu0 0
      %859 = vmatpush1.bf16.msra.mxu0 0
      %860 = vmatprep.subr.bf16.mxu0 0
      %861 = vmatpush1.bf16.msra.mxu0 0
      %862 = vmatprep.subr.bf16.mxu0 0
      %863 = vmatpush1.bf16.msra.mxu0 0
      %864 = vmatprep.mubr.bf16.mxu0 0
      %865 = vmatmul.mubr.bf16.gmra.mrb[0].mxu0 %v826
      %v866 = vpop.f32.mrb[0].mxu0
      %v867 = vadd.f32 0.0, %v866
      %v868 = vpop.f32.mrb[0].mxu0
      %v869 = vpop.f32.mrb[0].mxu0
      %v870 = vpop.f32.mrb[0].mxu0
      %871 = vdwg.mxu0
      %v872 = vpack.c.bf16 %v867, %v867
      %vm873 = vcmask 60416
      %874 = vst.msk [vmem:[#allocation4] sm:$0xf] %vm873, %v872
      %v875 = vld [vmem:[#allocation3] sm:$0xf]
      %v877 = vunpack.c.l.b16 %v875
      %v878 = vpack.c.b16 %v877, %v877
      %879 = vrot.lane.b32.xlu0 %v878, 120
      %v880 = vpop.permute.xlu0 %879
      %881 = vrot.lane.b32.xlu0 %v878, 88
      %v882 = vpop.permute.xlu0 %881
      %v884 = vsel %vm762, %v880, 0
      %v887 = vsel %vm762, %v882, 0
      %889 = vmatprep.subr.bf16.mxu0 0
      %890 = vmatpush1.bf16.xpose.msra.mxu0 %v887
      %891 = vmatprep.subr.bf16.mxu0 0
      %892 = vmatpush1.bf16.xpose.msra.mxu0 0
      %893 = vmatprep.subr.bf16.mxu0 0
      %894 = vmatpush1.bf16.xpose.msra.mxu0 0
      %895 = vmatprep.subr.bf16.mxu0 0
      %896 = vmatpush1.bf16.xpose.msra.mxu0 0
      %897 = vmatprep.subr.bf16.mxu0 0
      %898 = vmatpush1.bf16.xpose.msra.mxu0 0
      %899 = vmatprep.subr.bf16.mxu0 0
      %900 = vmatpush1.bf16.xpose.msra.mxu0 0
      %901 = vmatprep.subr.bf16.mxu0 0
      %902 = vmatpush1.bf16.xpose.msra.mxu0 0
      %903 = vmatprep.subr.bf16.mxu0 0
      %904 = vmatpush1.bf16.xpose.msra.mxu0 0
      %905 = vmatprep.subr.bf16.mxu0 0
      %906 = vmatpush1.bf16.xpose.msra.mxu0 0
      %907 = vmatprep.subr.bf16.mxu0 0
      %908 = vmatpush1.bf16.xpose.msra.mxu0 0
      %909 = vmatprep.subr.bf16.mxu0 0
      %910 = vmatpush1.bf16.xpose.msra.mxu0 0
      %911 = vmatprep.subr.bf16.mxu0 0
      %912 = vmatpush1.bf16.xpose.msra.mxu0 0
      %913 = vmatprep.subr.bf16.mxu0 0
      %914 = vmatpush1.bf16.xpose.msra.mxu0 0
      %915 = vmatprep.subr.bf16.mxu0 0
      %916 = vmatpush1.bf16.xpose.msra.mxu0 0
      %917 = vmatprep.subr.bf16.mxu0 0
      %918 = vmatpush1.bf16.xpose.msra.mxu0 0
      %919 = vmatprep.subr.bf16.mxu0 0
      %920 = vmatpush1.bf16.xpose.msra.mxu0 0
      %921 = vmatprep.mubr.bf16.mxu0 0
      %922 = vmatmul.mubr.bf16.gmra.mrb[0].mxu0 %v884
      %v923 = vpop.f32.mrb[0].mxu0
      %v924 = vadd.f32 0.0, %v923
      %v925 = vpop.f32.mrb[0].mxu0
      %v926 = vpop.f32.mrb[0].mxu0
      %v927 = vpop.f32.mrb[0].mxu0
      %928 = vdwg.mxu0
      %v929 = vmul.f32 %v924, 0.35355338
      %v930 = vadd.f32 %v929, %v755
      %v931 = vsel %vm762, %v930, -inf
      %932 = vmax.xlane.f32.xlu0 %v931
      %v933 = vpop.xlane.xlu0 %932
      %v934 = vsub.f32 %v930, %v933
      %v935 = vmul.f32 %v934, 1.442695
      %v936 = vpow.pop %v935
      %v937 = vsel %vm762, %v936, 0.0
      %938 = vadd.xlane.f32.xlu0 %v937
      %v939 = vpop.xlane.xlu0 %938
      %v940 = vrcp.pop %v939
      %v941 = vmul.f32 %v936, %v940
      %v942 = vpack.c.bf16 %v941, %v941
      %943 = vrot.lane.b32.xlu0 %v878, 56
      %v944 = vpop.permute.xlu0 %943
      %v946 = vsel %vm762, %v942, 0
      %v949 = vsel %vm828, %v944, 0
      %951 = vmatprep.subr.bf16.mxu0 0
      %952 = vmatpush1.bf16.msra.mxu0 %v949
      %953 = vmatprep.subr.bf16.mxu0 0
      %954 = vmatpush1.bf16.msra.mxu0 0
      %955 = vmatprep.subr.bf16.mxu0 0
      %956 = vmatpush1.bf16.msra.mxu0 0
      %957 = vmatprep.subr.bf16.mxu0 0
      %958 = vmatpush1.bf16.msra.mxu0 0
      %959 = vmatprep.subr.bf16.mxu0 0
      %960 = vmatpush1.bf16.msra.mxu0 0
      %961 = vmatprep.subr.bf16.mxu0 0
      %962 = vmatpush1.bf16.msra.mxu0 0
      %963 = vmatprep.subr.bf16.mxu0 0
      %964 = vmatpush1.bf16.msra.mxu0 0
      %965 = vmatprep.subr.bf16.mxu0 0
      %966 = vmatpush1.bf16.msra.mxu0 0
      %967 = vmatprep.subr.bf16.mxu0 0
      %968 = vmatpush1.bf16.msra.mxu0 0
      %969 = vmatprep.subr.bf16.mxu0 0
      %970 = vmatpush1.bf16.msra.mxu0 0
      %971 = vmatprep.subr.bf16.mxu0 0
      %972 = vmatpush1.bf16.msra.mxu0 0
      %973 = vmatprep.subr.bf16.mxu0 0
      %974 = vmatpush1.bf16.msra.mxu0 0
      %975 = vmatprep.subr.bf16.mxu0 0
      %976 = vmatpush1.bf16.msra.mxu0 0
      %977 = vmatprep.subr.bf16.mxu0 0
      %978 = vmatpush1.bf16.msra.mxu0 0
      %979 = vmatprep.subr.bf16.mxu0 0
      %980 = vmatpush1.bf16.msra.mxu0 0
      %981 = vmatprep.subr.bf16.mxu0 0
      %982 = vmatpush1.bf16.msra.mxu0 0
      %983 = vmatprep.mubr.bf16.mxu0 0
      %984 = vmatmul.mubr.bf16.gmra.mrb[0].mxu0 %v946
      %v985 = vpop.f32.mrb[0].mxu0
      %v986 = vadd.f32 0.0, %v985
      %v987 = vpop.f32.mrb[0].mxu0
      %v988 = vpop.f32.mrb[0].mxu0
      %v989 = vpop.f32.mrb[0].mxu0
      %990 = vdwg.mxu0
      %v991 = vpack.c.bf16 %v986, %v986
      %v993 = vunpack.c.l.b16 %v991
      %v994 = vpack.c.b16 %v993, %v993
      %995 = vrot.lane.b32.xlu0 %v994, 8
      %v996 = vpop.permute.xlu0 %995
      %vm998 = vcmask 126016
      %999 = vst.msk [vmem:[#allocation4] sm:$0xf] %vm998, %v996
      %v1000 = vld [vmem:[#allocation3] sm:$0xf]
      %v1002 = vunpack.c.l.b16 %v1000
      %v1003 = vpack.c.b16 %v1002, %v1002
      %1004 = vrot.lane.b32.xlu0 %v1003, 112
      %v1005 = vpop.permute.xlu0 %1004
      %1006 = vrot.lane.b32.xlu0 %v1003, 80
      %v1007 = vpop.permute.xlu0 %1006
      %v1009 = vsel %vm762, %v1005, 0
      %v1012 = vsel %vm762, %v1007, 0
      %1014 = vmatprep.subr.bf16.mxu0 0
      %1015 = vmatpush1.bf16.xpose.msra.mxu0 %v1012
      %1016 = vmatprep.subr.bf16.mxu0 0
      %1017 = vmatpush1.bf16.xpose.msra.mxu0 0
      %1018 = vmatprep.subr.bf16.mxu0 0
      %1019 = vmatpush1.bf16.xpose.msra.mxu0 0
      %1020 = vmatprep.subr.bf16.mxu0 0
      %1021 = vmatpush1.bf16.xpose.msra.mxu0 0
      %1022 = vmatprep.subr.bf16.mxu0 0
      %1023 = vmatpush1.bf16.xpose.msra.mxu0 0
      %1024 = vmatprep.subr.bf16.mxu0 0
      %1025 = vmatpush1.bf16.xpose.msra.mxu0 0
      %1026 = vmatprep.subr.bf16.mxu0 0
      %1027 = vmatpush1.bf16.xpose.msra.mxu0 0
      %1028 = vmatprep.subr.bf16.mxu0 0
      %1029 = vmatpush1.bf16.xpose.msra.mxu0 0
      %1030 = vmatprep.subr.bf16.mxu0 0
      %1031 = vmatpush1.bf16.xpose.msra.mxu0 0
      %1032 = vmatprep.subr.bf16.mxu0 0
      %1033 = vmatpush1.bf16.xpose.msra.mxu0 0
      %1034 = vmatprep.subr.bf16.mxu0 0
      %1035 = vmatpush1.bf16.xpose.msra.mxu0 0
      %1036 = vmatprep.subr.bf16.mxu0 0
      %1037 = vmatpush1.bf16.xpose.msra.mxu0 0
      %1038 = vmatprep.subr.bf16.mxu0 0
      %1039 = vmatpush1.bf16.xpose.msra.mxu0 0
      %1040 = vmatprep.subr.bf16.mxu0 0
      %1041 = vmatpush1.bf16.xpose.msra.mxu0 0
      %1042 = vmatprep.subr.bf16.mxu0 0
      %1043 = vmatpush1.bf16.xpose.msra.mxu0 0
      %1044 = vmatprep.subr.bf16.mxu0 0
      %1045 = vmatpush1.bf16.xpose.msra.mxu0 0
      %1046 = vmatprep.mubr.bf16.mxu0 0
      %1047 = vmatmul.mubr.bf16.gmra.mrb[0].mxu0 %v1009
      %v1048 = vpop.f32.mrb[0].mxu0
      %v1049 = vadd.f32 0.0, %v1048
      %v1050 = vpop.f32.mrb[0].mxu0
      %v1051 = vpop.f32.mrb[0].mxu0
      %v1052 = vpop.f32.mrb[0].mxu0
      %1053 = vdwg.mxu0
      %v1054 = vmul.f32 %v1049, 0.35355338
      %v1055 = vadd.f32 %v1054, %v755
      %v1056 = vsel %vm762, %v1055, -inf
      %1057 = vmax.xlane.f32.xlu0 %v1056
      %v1058 = vpop.xlane.xlu0 %1057
      %v1059 = vsub.f32 %v1055, %v1058
      %v1060 = vmul.f32 %v1059, 1.442695
      %v1061 = vpow.pop %v1060
      %v1062 = vsel %vm762, %v1061, 0.0
      %1063 = vadd.xlane.f32.xlu0 %v1062
      %v1064 = vpop.xlane.xlu0 %1063
      %v1065 = vrcp.pop %v1064
      %v1066 = vmul.f32 %v1061, %v1065
      %v1067 = vpack.c.bf16 %v1066, %v1066
      %1068 = vrot.lane.b32.xlu0 %v1003, 48
      %v1069 = vpop.permute.xlu0 %1068
      %v1071 = vsel %vm762, %v1067, 0
      %v1074 = vsel %vm828, %v1069, 0
      %1076 = vmatprep.subr.bf16.mxu0 0
      %1077 = vmatpush1.bf16.msra.mxu0 %v1074
      %1078 = vmatprep.subr.bf16.mxu0 0
      %1079 = vmatpush1.bf16.msra.mxu0 0
      %1080 = vmatprep.subr.bf16.mxu0 0
      %1081 = vmatpush1.bf16.msra.mxu0 0
      %1082 = vmatprep.subr.bf16.mxu0 0
      %1083 = vmatpush1.bf16.msra.mxu0 0
      %1084 = vmatprep.subr.bf16.mxu0 0
      %1085 = vmatpush1.bf16.msra.mxu0 0
      %1086 = vmatprep.subr.bf16.mxu0 0
      %1087 = vmatpush1.bf16.msra.mxu0 0
      %1088 = vmatprep.subr.bf16.mxu0 0
      %1089 = vmatpush1.bf16.msra.mxu0 0
      %1090 = vmatprep.subr.bf16.mxu0 0
      %1091 = vmatpush1.bf16.msra.mxu0 0
      %1092 = vmatprep.subr.bf16.mxu0 0
      %1093 = vmatpush1.bf16.msra.mxu0 0
      %1094 = vmatprep.subr.bf16.mxu0 0
      %1095 = vmatpush1.bf16.msra.mxu0 0
      %1096 = vmatprep.subr.bf16.mxu0 0
      %1097 = vmatpush1.bf16.msra.mxu0 0
      %1098 = vmatprep.subr.bf16.mxu0 0
      %1099 = vmatpush1.bf16.msra.mxu0 0
      %1100 = vmatprep.subr.bf16.mxu0 0
      %1101 = vmatpush1.bf16.msra.mxu0 0
      %1102 = vmatprep.subr.bf16.mxu0 0
      %1103 = vmatpush1.bf16.msra.mxu0 0
      %1104 = vmatprep.subr.bf16.mxu0 0
      %1105 = vmatpush1.bf16.msra.mxu0 0
      %1106 = vmatprep.subr.bf16.mxu0 0
      %1107 = vmatpush1.bf16.msra.mxu0 0
      %1108 = vmatprep.mubr.bf16.mxu0 0
      %1109 = vmatmul.mubr.bf16.gmra.mrb[0].mxu0 %v1071
      %v1110 = vpop.f32.mrb[0].mxu0
      %v1111 = vadd.f32 0.0, %v1110
      %v1112 = vpop.f32.mrb[0].mxu0
      %v1113 = vpop.f32.mrb[0].mxu0
      %v1114 = vpop.f32.mrb[0].mxu0
      %1115 = vdwg.mxu0
      %v1116 = vpack.c.bf16 %v1111, %v1111
      %v1118 = vunpack.c.l.b16 %v1116
      %v1119 = vpack.c.b16 %v1118, %v1118
      %1120 = vrot.lane.b32.xlu0 %v1119, 16
      %v1121 = vpop.permute.xlu0 %1120
      %vm1123 = vcmask 191616
      %1124 = vst.msk [vmem:[#allocation4] sm:$0xf] %vm1123, %v1121
      %v1125 = vld [vmem:[#allocation3] sm:$0xf]
      %v1127 = vunpack.c.l.b16 %v1125
      %v1128 = vpack.c.b16 %v1127, %v1127
      %1129 = vrot.lane.b32.xlu0 %v1128, 104
      %v1130 = vpop.permute.xlu0 %1129
      %1131 = vrot.lane.b32.xlu0 %v1128, 72
      %v1132 = vpop.permute.xlu0 %1131
      %v1134 = vsel %vm762, %v1130, 0
      %v1137 = vsel %vm762, %v1132, 0
      %1139 = vmatprep.subr.bf16.mxu0 0
      %1140 = vmatpush1.bf16.xpose.msra.mxu0 %v1137
      %1141 = vmatprep.subr.bf16.mxu0 0
      %1142 = vmatpush1.bf16.xpose.msra.mxu0 0
      %1143 = vmatprep.subr.bf16.mxu0 0
      %1144 = vmatpush1.bf16.xpose.msra.mxu0 0
      %1145 = vmatprep.subr.bf16.mxu0 0
      %1146 = vmatpush1.bf16.xpose.msra.mxu0 0
      %1147 = vmatprep.subr.bf16.mxu0 0
      %1148 = vmatpush1.bf16.xpose.msra.mxu0 0
      %1149 = vmatprep.subr.bf16.mxu0 0
      %1150 = vmatpush1.bf16.xpose.msra.mxu0 0
      %1151 = vmatprep.subr.bf16.mxu0 0
      %1152 = vmatpush1.bf16.xpose.msra.mxu0 0
      %1153 = vmatprep.subr.bf16.mxu0 0
      %1154 = vmatpush1.bf16.xpose.msra.mxu0 0
      %1155 = vmatprep.subr.bf16.mxu0 0
      %1156 = vmatpush1.bf16.xpose.msra.mxu0 0
      %1157 = vmatprep.subr.bf16.mxu0 0
      %1158 = vmatpush1.bf16.xpose.msra.mxu0 0
      %1159 = vmatprep.subr.bf16.mxu0 0
      %1160 = vmatpush1.bf16.xpose.msra.mxu0 0
      %1161 = vmatprep.subr.bf16.mxu0 0
      %1162 = vmatpush1.bf16.xpose.msra.mxu0 0
      %1163 = vmatprep.subr.bf16.mxu0 0
      %1164 = vmatpush1.bf16.xpose.msra.mxu0 0
      %1165 = vmatprep.subr.bf16.mxu0 0
      %1166 = vmatpush1.bf16.xpose.msra.mxu0 0
      %1167 = vmatprep.subr.bf16.mxu0 0
      %1168 = vmatpush1.bf16.xpose.msra.mxu0 0
      %1169 = vmatprep.subr.bf16.mxu0 0
      %1170 = vmatpush1.bf16.xpose.msra.mxu0 0
      %1171 = vmatprep.mubr.bf16.mxu0 0
      %1172 = vmatmul.mubr.bf16.gmra.mrb[0].mxu0 %v1134
      %v1173 = vpop.f32.mrb[0].mxu0
      %v1174 = vadd.f32 0.0, %v1173
      %v1175 = vpop.f32.mrb[0].mxu0
      %v1176 = vpop.f32.mrb[0].mxu0
      %v1177 = vpop.f32.mrb[0].mxu0
      %1178 = vdwg.mxu0
      %v1179 = vmul.f32 %v1174, 0.35355338
      %v1180 = vadd.f32 %v1179, %v755
      %v1181 = vsel %vm762, %v1180, -inf
      %1182 = vmax.xlane.f32.xlu0 %v1181
      %v1183 = vpop.xlane.xlu0 %1182
      %v1184 = vsub.f32 %v1180, %v1183
      %v1185 = vmul.f32 %v1184, 1.442695
      %v1186 = vpow.pop %v1185
      %v1187 = vsel %vm762, %v1186, 0.0
      %1188 = vadd.xlane.f32.xlu0 %v1187
      %v1189 = vpop.xlane.xlu0 %1188
      %v1190 = vrcp.pop %v1189
      %v1191 = vmul.f32 %v1186, %v1190
      %v1192 = vpack.c.bf16 %v1191, %v1191
      %1193 = vrot.lane.b32.xlu0 %v1128, 40
      %v1194 = vpop.permute.xlu0 %1193
      %v1196 = vsel %vm762, %v1192, 0
      %v1199 = vsel %vm828, %v1194, 0
      %1201 = vmatprep.subr.bf16.mxu0 0
      %1202 = vmatpush1.bf16.msra.mxu0 %v1199
      %1203 = vmatprep.subr.bf16.mxu0 0
      %1204 = vmatpush1.bf16.msra.mxu0 0
      %1205 = vmatprep.subr.bf16.mxu0 0
      %1206 = vmatpush1.bf16.msra.mxu0 0
      %1207 = vmatprep.subr.bf16.mxu0 0
      %1208 = vmatpush1.bf16.msra.mxu0 0
      %1209 = vmatprep.subr.bf16.mxu0 0
      %1210 = vmatpush1.bf16.msra.mxu0 0
      %1211 = vmatprep.subr.bf16.mxu0 0
      %1212 = vmatpush1.bf16.msra.mxu0 0
      %1213 = vmatprep.subr.bf16.mxu0 0
      %1214 = vmatpush1.bf16.msra.mxu0 0
      %1215 = vmatprep.subr.bf16.mxu0 0
      %1216 = vmatpush1.bf16.msra.mxu0 0
      %1217 = vmatprep.subr.bf16.mxu0 0
      %1218 = vmatpush1.bf16.msra.mxu0 0
      %1219 = vmatprep.subr.bf16.mxu0 0
      %1220 = vmatpush1.bf16.msra.mxu0 0
      %1221 = vmatprep.subr.bf16.mxu0 0
      %1222 = vmatpush1.bf16.msra.mxu0 0
      %1223 = vmatprep.subr.bf16.mxu0 0
      %1224 = vmatpush1.bf16.msra.mxu0 0
      %1225 = vmatprep.subr.bf16.mxu0 0
      %1226 = vmatpush1.bf16.msra.mxu0 0
      %1227 = vmatprep.subr.bf16.mxu0 0
      %1228 = vmatpush1.bf16.msra.mxu0 0
      %1229 = vmatprep.subr.bf16.mxu0 0
      %1230 = vmatpush1.bf16.msra.mxu0 0
      %1231 = vmatprep.subr.bf16.mxu0 0
      %1232 = vmatpush1.bf16.msra.mxu0 0
      %1233 = vmatprep.mubr.bf16.mxu0 0
      %1234 = vmatmul.mubr.bf16.gmra.mrb[0].mxu0 %v1196
      %v1235 = vpop.f32.mrb[0].mxu0
      %v1236 = vadd.f32 0.0, %v1235
      %v1237 = vpop.f32.mrb[0].mxu0
      %v1238 = vpop.f32.mrb[0].mxu0
      %v1239 = vpop.f32.mrb[0].mxu0
      %1240 = vdwg.mxu0
      %v1241 = vpack.c.bf16 %v1236, %v1236
      %v1243 = vunpack.c.l.b16 %v1241
      %v1244 = vpack.c.b16 %v1243, %v1243
      %1245 = vrot.lane.b32.xlu0 %v1244, 24
      %v1246 = vpop.permute.xlu0 %1245
      %vm1248 = vcmask 257216
      %1249 = vst.msk [vmem:[#allocation4] sm:$0xf] %vm1248, %v1246
      %v1250 = vld [vmem:[#allocation4] sm:$0xf]
      %v1251 = vld [vmem:[%s604] sm:$0xf]
      %v1252 = vld [vmem:[%s604 + $0x4] sm:$0xf]
      %v1253 = vld [vmem:[%s604 + $0x8] sm:$0xf]
      %v1254 = vld [vmem:[%s604 + $0xc] sm:$0xf]
      %v1255 = vld [vmem:[%s607] sm:$0x1]
      %v1257 = vlaneseq
      %v1258 = vshrl.u32 %v1257, 7
      %v1259 = vsub.s32 0, %v1258
      %v1260 = vrot.slane %v1255, %v1259
      %v1266 = vunpack.c.l.b16 %v1251
      %v1267 = vunpack.c.l.b16 %v1252
      %v1268 = vunpack.c.l.b16 %v1253
      %v1269 = vunpack.c.l.b16 %v1254
      %v1270 = vpack.c.b16 %v1267, %v1266
      %v1271 = vpack.c.b16 %v1269, %v1268
      %v1275 = vsel %vm651, %v1250, 0
      %1277 = vmatprep.subr.bf16.mxu0 0
      %1278 = vmatpush1.bf16.msra.mxu0 %v1270
      %1279 = vmatprep.subr.bf16.mxu0 0
      %1280 = vmatpush1.bf16.msra.mxu0 %v1271
      %1281 = vmatprep.subr.bf16.mxu0 0
      %1282 = vmatpush1.bf16.msra.mxu0 0
      %1283 = vmatprep.subr.bf16.mxu0 0
      %1284 = vmatpush1.bf16.msra.mxu0 0
      %1285 = vmatprep.subr.bf16.mxu0 0
      %1286 = vmatpush1.bf16.msra.mxu0 0
      %1287 = vmatprep.subr.bf16.mxu0 0
      %1288 = vmatpush1.bf16.msra.mxu0 0
      %1289 = vmatprep.subr.bf16.mxu0 0
      %1290 = vmatpush1.bf16.msra.mxu0 0
      %1291 = vmatprep.subr.bf16.mxu0 0
      %1292 = vmatpush1.bf16.msra.mxu0 0
      %1293 = vmatprep.subr.bf16.mxu0 0
      %1294 = vmatpush1.bf16.msra.mxu0 0
      %1295 = vmatprep.subr.bf16.mxu0 0
      %1296 = vmatpush1.bf16.msra.mxu0 0
      %1297 = vmatprep.subr.bf16.mxu0 0
      %1298 = vmatpush1.bf16.msra.mxu0 0
      %1299 = vmatprep.subr.bf16.mxu0 0
      %1300 = vmatpush1.bf16.msra.mxu0 0
      %1301 = vmatprep.subr.bf16.mxu0 0
      %1302 = vmatpush1.bf16.msra.mxu0 0
      %1303 = vmatprep.subr.bf16.mxu0 0
      %1304 = vmatpush1.bf16.msra.mxu0 0
      %1305 = vmatprep.subr.bf16.mxu0 0
      %1306 = vmatpush1.bf16.msra.mxu0 0
      %1307 = vmatprep.subr.bf16.mxu0 0
      %1308 = vmatpush1.bf16.msra.mxu0 0
      %1309 = vmatprep.mubr.bf16.mxu0 0
      %1310 = vmatmul.mubr.bf16.gmra.mrb[0].mxu0 %v1275
      %v1311 = vpop.f32.mrb[0].mxu0
      %v1312 = vadd.f32 %v1260, %v1311
      %v1313 = vpop.f32.mrb[0].mxu0
      %v1314 = vpop.f32.mrb[0].mxu0
      %v1315 = vpop.f32.mrb[0].mxu0
      %1316 = vdwg.mxu0
      %v1317 = vadd.f32 %v648, %v1312
      %v1318 = vld [vmem:[%s616] sm:$0x1]
      %v1319 = vld [vmem:[%s619] sm:$0x1]
      %v1320 = vsel %vm651, %v1317, 0.0
      %1321 = vadd.xlane.f32.xlu0 %v1320
      %v1322 = vpop.xlane.xlu0 %1321
      %v1323 = vmul.f32 %v1322, %v655
      %v1324 = vsub.f32 %v1317, %v1323
      %v1325 = vmul.f32 %v1324, %v1324
      %v1326 = vsel %vm651, %v1325, 0.0
      %1327 = vadd.xlane.f32.xlu0 %v1326
      %v1328 = vpop.xlane.xlu0 %1327
      %v1329 = vmul.f32 %v1328, %v655
      %v1330 = vadd.f32 %v1329, 1e-05
      %v1331 = vrsqrt.pop %v1330
      %v1332 = vmul.f32 %v1324, %v1331
      %v1334 = vlaneseq
      %v1335 = vshrl.u32 %v1334, 7
      %v1336 = vsub.s32 0, %v1335
      %v1337 = vrot.slane %v1318, %v1336
      %v1339 = vmul.f32 %v1332, %v1337
      %v1341 = vlaneseq
      %v1342 = vshrl.u32 %v1341, 7
      %v1343 = vsub.s32 0, %v1342
      %v1344 = vrot.slane %v1319, %v1343
      %v1346 = vadd.f32 %v1339, %v1344
      %v1347 = vpack.c.bf16 %v1346, %v1346
      %v1348 = vld [vmem:[%s624] sm:$0xf]
      %v1349 = vld [vmem:[%s624 + $0x4] sm:$0xf]
      %v1350 = vld [vmem:[%s624 + $0x8] sm:$0xf]
      %v1351 = vld [vmem:[%s624 + $0xc] sm:$0xf]
      %v1352 = vld [vmem:[%s627] sm:$0x1]
      %v1354 = vlaneseq
      %v1355 = vshrl.u32 %v1354, 7
      %v1356 = vsub.s32 0, %v1355
      %v1357 = vrot.slane %v1352, %v1356
      %v1363 = vunpack.c.l.b16 %v1348
      %v1364 = vunpack.c.l.b16 %v1349
      %v1365 = vunpack.c.l.b16 %v1350
      %v1366 = vunpack.c.l.b16 %v1351
      %v1367 = vpack.c.b16 %v1364, %v1363
      %v1368 = vpack.c.b16 %v1366, %v1365
      %v1372 = vsel %vm651, %v1347, 0
      %1374 = vmatprep.subr.bf16.mxu0 0
      %1375 = vmatpush1.bf16.msra.mxu0 %v1367
      %1376 = vmatprep.subr.bf16.mxu0 0
      %1377 = vmatpush1.bf16.msra.mxu0 %v1368
      %1378 = vmatprep.subr.bf16.mxu0 0
      %1379 = vmatpush1.bf16.msra.mxu0 0
      %1380 = vmatprep.subr.bf16.mxu0 0
      %1381 = vmatpush1.bf16.msra.mxu0 0
      %1382 = vmatprep.subr.bf16.mxu0 0
      %1383 = vmatpush1.bf16.msra.mxu0 0
      %1384 = vmatprep.subr.bf16.mxu0 0
      %1385 = vmatpush1.bf16.msra.mxu0 0
      %1386 = vmatprep.subr.bf16.mxu0 0
      %1387 = vmatpush1.bf16.msra.mxu0 0
      %1388 = vmatprep.subr.bf16.mxu0 0
      %1389 = vmatpush1.bf16.msra.mxu0 0
      %1390 = vmatprep.subr.bf16.mxu0 0
      %1391 = vmatpush1.bf16.msra.mxu0 0
      %1392 = vmatprep.subr.bf16.mxu0 0
      %1393 = vmatpush1.bf16.msra.mxu0 0
      %1394 = vmatprep.subr.bf16.mxu0 0
      %1395 = vmatpush1.bf16.msra.mxu0 0
      %1396 = vmatprep.subr.bf16.mxu0 0
      %1397 = vmatpush1.bf16.msra.mxu0 0
      %1398 = vmatprep.subr.bf16.mxu0 0
      %1399 = vmatpush1.bf16.msra.mxu0 0
      %1400 = vmatprep.subr.bf16.mxu0 0
      %1401 = vmatpush1.bf16.msra.mxu0 0
      %1402 = vmatprep.subr.bf16.mxu0 0
      %1403 = vmatpush1.bf16.msra.mxu0 0
      %1404 = vmatprep.subr.bf16.mxu0 0
      %1405 = vmatpush1.bf16.msra.mxu0 0
      %1406 = vmatprep.mubr.bf16.mxu0 0
      %1407 = vmatmul.mubr.bf16.gmra.mrb[0].mxu0 %v1372
      %v1408 = vpop.f32.mrb[0].mxu0
      %v1409 = vadd.f32 %v1357, %v1408
      %v1410 = vpop.f32.mrb[0].mxu0
      %v1411 = vpop.f32.mrb[0].mxu0
      %v1412 = vpop.f32.mrb[0].mxu0
      %1413 = vdwg.mxu0
      %v1414 = vmul.f32 %v1409, 1.702
      %v1415 = vxor.u32 %v1414, 2147483648
      %v1416 = vmul.f32 %v1415, 1.442695
      %v1417 = vpow.pop %v1416
      %v1418 = vadd.f32 %v1417, 1.0
      %v1419 = vrcp.pop %v1418
      %v1420 = vmul.f32 1.0, %v1419
      %v1421 = vmul.f32 %v1409, %v1420
      %v1422 = vpack.c.bf16 %v1421, %v1421
      %v1423 = vld [vmem:[%s632] sm:$0xf]
      %v1424 = vld [vmem:[%s632 + $0x4] sm:$0xf]
      %v1425 = vld [vmem:[%s632 + $0x8] sm:$0xf]
      %v1426 = vld [vmem:[%s632 + $0xc] sm:$0xf]
      %v1427 = vld [vmem:[%s632 + $0x10] sm:$0xf]
      %v1428 = vld [vmem:[%s632 + $0x14] sm:$0xf]
      %v1429 = vld [vmem:[%s632 + $0x18] sm:$0xf]
      %v1430 = vld [vmem:[%s632 + $0x1c] sm:$0xf]
      %v1431 = vld [vmem:[%s632 + $0x20] sm:$0xf]
      %v1432 = vld [vmem:[%s632 + $0x24] sm:$0xf]
      %v1433 = vld [vmem:[%s632 + $0x28] sm:$0xf]
      %v1434 = vld [vmem:[%s632 + $0x2c] sm:$0xf]
      %v1435 = vld [vmem:[%s632 + $0x30] sm:$0xf]
      %v1436 = vld [vmem:[%s632 + $0x34] sm:$0xf]
      %v1437 = vld [vmem:[%s632 + $0x38] sm:$0xf]
      %v1438 = vld [vmem:[%s632 + $0x3c] sm:$0xf]
      %v1455 = vunpack.c.l.b16 %v1423
      %v1456 = vunpack.c.l.b16 %v1424
      %v1457 = vunpack.c.l.b16 %v1425
      %v1458 = vunpack.c.l.b16 %v1426
      %v1459 = vunpack.c.l.b16 %v1427
      %v1460 = vunpack.c.l.b16 %v1428
      %v1461 = vunpack.c.l.b16 %v1429
      %v1462 = vunpack.c.l.b16 %v1430
      %v1463 = vunpack.c.l.b16 %v1431
      %v1464 = vunpack.c.l.b16 %v1432
      %v1465 = vunpack.c.l.b16 %v1433
      %v1466 = vunpack.c.l.b16 %v1434
      %v1467 = vunpack.c.l.b16 %v1435
      %v1468 = vunpack.c.l.b16 %v1436
      %v1469 = vunpack.c.l.b16 %v1437
      %v1470 = vunpack.c.l.b16 %v1438
      %v1471 = vpack.c.b16 %v1456, %v1455
      %v1472 = vpack.c.b16 %v1458, %v1457
      %v1473 = vpack.c.b16 %v1460, %v1459
      %v1474 = vpack.c.b16 %v1462, %v1461
      %v1475 = vpack.c.b16 %v1464, %v1463
      %v1476 = vpack.c.b16 %v1466, %v1465
      %v1477 = vpack.c.b16 %v1468, %v1467
      %v1478 = vpack.c.b16 %v1470, %v1469
      %1487 = vmatprep.subr.bf16.mxu0 0
      %1488 = vmatpush1.bf16.msra.mxu0 %v1471
      %1489 = vmatprep.subr.bf16.mxu0 0
      %1490 = vmatpush1.bf16.msra.mxu0 %v1472
      %1491 = vmatprep.subr.bf16.mxu0 0
      %1492 = vmatpush1.bf16.msra.mxu0 %v1473
      %1493 = vmatprep.subr.bf16.mxu0 0
      %1494 = vmatpush1.bf16.msra.mxu0 %v1474
      %1495 = vmatprep.subr.bf16.mxu0 0
      %1496 = vmatpush1.bf16.msra.mxu0 %v1475
      %1497 = vmatprep.subr.bf16.mxu0 0
      %1498 = vmatpush1.bf16.msra.mxu0 %v1476
      %1499 = vmatprep.subr.bf16.mxu0 0
      %1500 = vmatpush1.bf16.msra.mxu0 %v1477
      %1501 = vmatprep.subr.bf16.mxu0 0
      %1502 = vmatpush1.bf16.msra.mxu0 %v1478
      %1503 = vmatprep.subr.bf16.mxu0 0
      %1504 = vmatpush1.bf16.msra.mxu0 0
      %1505 = vmatprep.subr.bf16.mxu0 0
      %1506 = vmatpush1.bf16.msra.mxu0 0
      %1507 = vmatprep.subr.bf16.mxu0 0
      %1508 = vmatpush1.bf16.msra.mxu0 0
      %1509 = vmatprep.subr.bf16.mxu0 0
      %1510 = vmatpush1.bf16.msra.mxu0 0
      %1511 = vmatprep.subr.bf16.mxu0 0
      %1512 = vmatpush1.bf16.msra.mxu0 0
      %1513 = vmatprep.subr.bf16.mxu0 0
      %1514 = vmatpush1.bf16.msra.mxu0 0
      %1515 = vmatprep.subr.bf16.mxu0 0
      %1516 = vmatpush1.bf16.msra.mxu0 0
      %1517 = vmatprep.subr.bf16.mxu0 0
      %1518 = vmatpush1.bf16.msra.mxu0 0
      %1519 = vmatprep.mubr.bf16.mxu0 0
      %1520 = vmatmul.mubr.bf16.gmra.mrb[0].mxu0 %v1422
      %v1521 = vpop.f32.mrb[0].mxu0
      %v1522 = vadd.f32 0.0, %v1521
      %v1523 = vpop.f32.mrb[0].mxu0
      %v1524 = vpop.f32.mrb[0].mxu0
      %v1525 = vpop.f32.mrb[0].mxu0
      %1526 = vdwg.mxu0
      %v1527 = vadd.f32 %v1317, %v1522
      %v1528 = vld [vmem:[%s635] sm:$0x1]
      %v1530 = vlaneseq
      %v1531 = vshrl.u32 %v1530, 7
      %v1532 = vsub.s32 0, %v1531
      %v1533 = vrot.slane %v1528, %v1532
      %v1535 = vadd.f32 %v1527, %v1533
      %1536 = vst.msk [vmem:[#allocation2] sm:$0xff] %vm651, %v1535
      %p1537 = scmp.eq.s32.totalorder %s29, 1
      // Predicated region
      $region77: #{mga_forward.23} parent=71 // pred_check
        %p1538 = pneg %p1537
      $region78: #{mga_forward.23} parent=71 // pred_check_branch
        %1540 = sbr.rel (%p1538) target = $region80
      $region79: #{mga_forward.23} parent=71 // pred_region
        %1541 = vst.msk [vmem:[%s639] sm:$0xff] %vm651, %v1535
      $region80: #{mga_forward.23} parent=71 // pred_fallthru
        _
      %p1542 = scmp.lt.s32.totalorder %s28, 1
      %s1543 = scalar_select %p1542, %s28, 1
      %s1544 = smul.addr %s1543, 8
      %s1545 = scalar_lea.vmem %s13, %s1544
      // Predicated region
      $region81: #{mga_forward.23} parent=71 // pred_check
        %p1546 = pneg %p392
      $region82: #{mga_forward.23} parent=71 // pred_check_branch
        %1548 = sbr.rel (%p1546) target = $region84
      $region83: #{mga_forward.23} parent=71 // pred_region
        _
      $region84: #{mga_forward.23} parent=71 // pred_fallthru
        _
    $region72: #{mga_forward.23} parent=5 // pred_fallthru
      _
    %p1549 = scmp.le.s32.totalorder 2, %s19
    // Predicated region
    $region85: #{mga_forward.23} parent=5 // pred_check
      %p1550 = pneg %p1549
    $region86: #{mga_forward.23} parent=5 // pred_check_branch
      %1552 = sbr.rel (%p1550) target = $region88
    $region87: #{mga_forward.23} parent=5 // pred_region
      %s1553 = ssub.s32 %s19, 2
      // Predicated region
      $region89: #{mga_forward.23} parent=87 // pred_check
        %p1554 = pneg %p398
      $region90: #{mga_forward.23} parent=87 // pred_check_branch
        %1556 = sbr.rel (%p1554) target = $region92
      $region91: #{mga_forward.23} parent=87 // pred_region
        %p1557 = scmp.lt.s32.totalorder %s30, 1
        %s1558 = scalar_select %p1557, %s30, 1
        %s1559 = smul.addr %s1558, 8
        %s1560 = scalar_lea.vmem %s13, %s1559
      $region92: #{mga_forward.23} parent=87 // pred_fallthru
        _
    $region88: #{mga_forward.23} parent=5 // pred_fallthru
      _
  $region6: #{mga_forward.23} parent=0 // loop_footer
    %s23 = sadd.s32 1, %s19
  $region7: #{mga_forward.23} parent=0 // loop_footer_branch
    %18 = sbr.rel target = $region3
  $region8: #{mga_forward.23} parent=0 // loop_exit
    _

</llo_original>
